<compile_context>
chip_gen: v7x
topology: tpu7x:2x2x1
jax: 0.10.0
libtpu: 0.0.40
codegen_flags: <defaults>
</compile_context>

<pallas_src>
import numpy as np
import jax
import jax.numpy as jnp
from jax.experimental import pallas as pl
from jax.experimental.pallas import tpu as pltpu

# ----------------------------------------------------------------------------
# Config (same synthetic values: 16x16x4 input -> 1x1x32 features).
# ----------------------------------------------------------------------------
config = {
    "input_channels": 4,
    "conv1": (8, 3, 2),    # (out_channels, kernel, stride)  16 -> 7
    "conv2": (16, 3, 2),   #                                   7 -> 3
    "conv3": (32, 3, 1),   #                                   3 -> 1
    "output_conv3": (32, 1, 1),
    "BVAE_hidden": 32,
    "BVAE_latent": 8,
}

NEG_SLOPE = 0.01  # F.leaky_relu default negative slope

# Static derived sizes ---------------------------------------------------------
C_IN = config["input_channels"]
C1, K1, S1 = config["conv1"]
C2, K2, S2 = config["conv2"]
C3, K3, S3 = config["conv3"]
H = W = 16
OH1 = (H - K1) // S1 + 1      # 7
OW1 = (W - K1) // S1 + 1      # 7
OH2 = (OH1 - K2) // S2 + 1    # 3
OW2 = (OW1 - K2) // S2 + 1    # 3
FLAT = int(np.prod(config["output_conv3"]))   # 32
HID = config["BVAE_hidden"]
LAT = config["BVAE_latent"]

R2 = OH2 * OW2                # conv2 output positions (9) == conv3 taps (K3*K3)
T2 = K2 * K2                  # conv2 taps (9)
KPATCH1 = K1 * K1 * C_IN      # 36
NROWS = T2 * R2               # duplicated conv1-output rows per image (81)

# Row selection for the wrapper im2col: duplicate/reorder conv1-output rows so
# that in-kernel conv2's K*K shifted dots read CONTIGUOUS slices.
# Order: (ki2, kj2) outer, (oh2, ow2) inner.
ROW_SEL = np.asarray(
    [(S2 * oh + ki) * OW1 + (S2 * ow + kj)
     for ki in range(K2) for kj in range(K2)
     for oh in range(OH2) for ow in range(OW2)],
    dtype=np.int32,
)


def _rup(x, m):
    return ((x + m - 1) // m) * m


# Weight / bias slab layout (operand consolidation) ---------------------------
SLAB_LANES = 32                                   # max over {C1,C2,C3,HID,2*LAT}
_W_SIZES = (K1 * K1 * C_IN, K2 * K2 * C1, K3 * K3 * C2, FLAT, HID)
_W_PADDED = tuple(_rup(s, 8) for s in _W_SIZES)   # 8-aligned section starts
_W_CUM = np.cumsum((0,) + _W_PADDED)
_W_OFF = tuple(int(v) for v in _W_CUM[:5])        # (0, 40, 112, 256, 288)
W_ROWS = int(_W_CUM[-1])                          # 320
B_ROWS = 8                                        # 5 bias rows, padded to a tile


# ----------------------------------------------------------------------------
# Fused encoder kernel: one batch block (B_TILE images) per grid step.
# ----------------------------------------------------------------------------
def _encoder_kernel(x_ref, w_ref, b_ref, out_ref):
    bt = out_ref.shape[0]          # B_TILE (static)
    rb = R2 * bt                   # rows per conv2 tap group

    def lrelu(v):
        return jnp.where(v >= 0, v, NEG_SLOPE * v)

    x = x_ref[0]                   # (NROWS*B_TILE, 36), rows ordered (tap, pos, batch)
    Wm = w_ref[...]                # (W_ROWS, 32) packed weight slab
    Bm = b_ref[...]                # (B_ROWS, 32) packed bias slab

    w1 = Wm[_W_OFF[0]:_W_OFF[0] + K1 * K1 * C_IN, :C1]
    w2 = Wm[_W_OFF[1]:_W_OFF[1] + T2 * C1, :C2]
    w3 = Wm[_W_OFF[2]:_W_OFF[2] + R2 * C2, :C3]
    wfc = Wm[_W_OFF[3]:_W_OFF[3] + FLAT, :HID]
    wh = Wm[_W_OFF[4]:_W_OFF[4] + HID, :2 * LAT]

    b1 = Bm[0:1, :C1]
    b2 = Bm[1:2, :C2]
    b3 = Bm[2:3, :C3]
    bfc = Bm[3:4, :HID]
    bh = Bm[4:5, :2 * LAT]

    # ---- conv1: one MXU matmul over all duplicated im2col rows --------------
    a1 = lrelu(jnp.dot(x, w1, preferred_element_type=jnp.float32) + b1)
    # a1: (T2*R2*B_TILE, C1), rows ordered (tap, pos, batch)

    # ---- conv2: 9 tap dots over contiguous, 8-aligned row slices ------------
    acc2 = jnp.zeros((rb, C2), jnp.float32)
    for t in range(T2):
        acc2 = acc2 + jnp.dot(a1[t * rb:(t + 1) * rb, :],
                              w2[t * C1:(t + 1) * C1, :],
                              preferred_element_type=jnp.float32)
    a2 = lrelu(acc2 + b2)          # (R2*B_TILE, C2), rows ordered (pos, batch)

    # ---- conv3 (3x3 on 3x3 -> 1x1): 9 position dots, each M = B_TILE --------
    acc3 = jnp.zeros((bt, C3), jnp.float32)
    for r in range(K3 * K3):       # K3*K3 == R2
        acc3 = acc3 + jnp.dot(a2[r * bt:(r + 1) * bt, :],
                              w3[r * C2:(r + 1) * C2, :],
                              preferred_element_type=jnp.float32)
    a3 = lrelu(acc3 + b3)          # (B_TILE, C3) == flattened features

    # ---- fc + fused mean/log_std heads, merged output ------------------------
    h = lrelu(jnp.dot(a3, wfc, preferred_element_type=jnp.float32) + bfc)
    z = jnp.dot(h, wh, preferred_element_type=jnp.float32) + bh   # (B_TILE, 2*LAT)

    lane = jax.lax.broadcasted_iota(jnp.int32, z.shape, 1)
    out_ref[...] = jnp.where(lane < LAT, jnp.tanh(z), z)


# ----------------------------------------------------------------------------
# Wrapper: one-time layout prep (jit-fused) + a single pallas_call.
# ----------------------------------------------------------------------------
def _im2col_conv1(img):
    # img: (N, C, H, W) -> (N, NROWS, K1*K1*C) with patch lanes ordered
    # (ki, kj, c) and rows duplicated / ordered (tap2, pos2) per ROW_SEL.
    n, c, _, _ = img.shape
    patches = []
    for ki in range(K1):
        for kj in range(K1):
            patches.append(img[:, :,
                               ki: ki + S1 * (OH1 - 1) + 1: S1,
                               kj: kj + S1 * (OW1 - 1) + 1: S1])   # (N, C, OH1, OW1)
    p = jnp.stack(patches, axis=0).reshape(K1, K1, n, c, OH1, OW1)
    p = p.transpose(2, 4, 5, 0, 1, 3)                              # (N, OH1, OW1, KH, KW, C)
    cols = p.reshape(n, OH1 * OW1, K1 * K1 * c)
    return cols[:, ROW_SEL, :]                                     # (N, 81, 36)


@jax.jit
def encoder_forward(params, img):
    n = img.shape[0]
    w1, b1 = params["conv1"]
    w2, b2 = params["conv2"]
    w3, b3 = params["conv3"]
    fcw, fcb = params["fc"]
    mw, mb = params["mean"]
    lw, lb = params["log_std"]

    # Pre-flatten weights to (KH*KW*IC, OC) matching the (ki, kj, c) patch order.
    w1f = w1.transpose(2, 3, 1, 0).reshape(K1 * K1 * C_IN, C1)
    w2f = w2.transpose(2, 3, 1, 0).reshape(K2 * K2 * C1, C2)
    w3f = w3.transpose(2, 3, 1, 0).reshape(K3 * K3 * C2, C3)
    wfc = fcw.T                                                    # (FLAT, HID)
    wh = jnp.concatenate([mw.T, lw.T], axis=1)                     # (HID, 2*LAT)

    # Pack all weights into one lane-padded slab (rows 8-aligned per section).
    def pad_block(m, rows):
        return jnp.pad(m, ((0, rows - m.shape[0]), (0, SLAB_LANES - m.shape[1])))

    wslab = jnp.concatenate([
        pad_block(w1f, _W_PADDED[0]),
        pad_block(w2f, _W_PADDED[1]),
        pad_block(w3f, _W_PADDED[2]),
        pad_block(wfc, _W_PADDED[3]),
        pad_block(wh, _W_PADDED[4]),
    ], axis=0).astype(jnp.float32)                                 # (W_ROWS, 32)

    # Pack all biases into one small slab.
    def bias_row(b):
        return jnp.pad(b.reshape(1, -1), ((0, 0), (0, SLAB_LANES - b.shape[0])))

    bslab = jnp.concatenate([
        bias_row(b1), bias_row(b2), bias_row(b3), bias_row(fcb),
        bias_row(jnp.concatenate([mb, lb])),
    ], axis=0)
    bslab = jnp.pad(bslab, ((0, B_ROWS - bslab.shape[0]), (0, 0))).astype(jnp.float32)

    # Input prep: im2col, pad batch, arrange rows (tap, pos, batch) per block.
    cols = _im2col_conv1(img.astype(jnp.float32))                  # (N, 81, 36)

    b_tile = min(32, _rup(n, 8))            # multiple of 8; VMEM-safe on v5e/v7x
    n_pad = _rup(n, b_tile)
    nb = n_pad // b_tile
    if n_pad > n:
        cols = jnp.pad(cols, ((0, n_pad - n), (0, 0), (0, 0)))
    xk = cols.reshape(nb, b_tile, NROWS, KPATCH1).transpose(0, 2, 1, 3)
    xk = xk.reshape(nb, NROWS * b_tile, KPATCH1)                   # rows: (tap,pos,batch)

    out = pl.pallas_call(
        _encoder_kernel,
        out_shape=jax.ShapeDtypeStruct((n_pad, 2 * LAT), jnp.float32),
        grid=(nb,),
        in_specs=[
            pl.BlockSpec((1, NROWS * b_tile, KPATCH1), lambda i: (i, 0, 0)),
            pl.BlockSpec((W_ROWS, SLAB_LANES), lambda i: (0, 0)),
            pl.BlockSpec((B_ROWS, SLAB_LANES), lambda i: (0, 0)),
        ],
        out_specs=pl.BlockSpec((b_tile, 2 * LAT), lambda i: (i, 0)),
        compiler_params=pltpu.CompilerParams(
            dimension_semantics=("parallel",)),     # batch blocks across TCs on v7x
    )(xk, wslab, bslab)

    out = out[:n]
    return out[:, :LAT], out[:, LAT:]


# ----------------------------------------------------------------------------
# Parameter init (deterministic, PyTorch-default-style uniform(-1/sqrt(fanin)))
# ----------------------------------------------------------------------------
def _init_conv(key, oc, ic, k):
    k1, k2 = jax.random.split(key)
    bound = 1.0 / np.sqrt(ic * k * k)
    w = jax.random.uniform(k1, (oc, ic, k, k), jnp.float32, -bound, bound)
    b = jax.random.uniform(k2, (oc,), jnp.float32, -bound, bound)
    return w, b


def _init_linear(key, fan_in, fan_out):
    k1, k2 = jax.random.split(key)
    bound = 1.0 / np.sqrt(fan_in)
    w = jax.random.uniform(k1, (fan_out, fan_in), jnp.float32, -bound, bound)
    b = jax.random.uniform(k2, (fan_out,), jnp.float32, -bound, bound)
    return w, b


def init_params(key):
    ks = jax.random.split(key, 6)
    return {
        "conv1": _init_conv(ks[0], C1, C_IN, K1),
        "conv2": _init_conv(ks[1], C2, C1, K2),
        "conv3": _init_conv(ks[2], C3, C2, K3),
        "fc": _init_linear(ks[3], FLAT, HID),
        "mean": _init_linear(ks[4], HID, LAT),
        "log_std": _init_linear(ks[5], HID, LAT),
    }


# ----------------------------------------------------------------------------
# Pure-JAX reference (for correctness check against the Pallas path)
# ----------------------------------------------------------------------------
def encoder_reference(params, img):
    def conv(x, w, b, stride):
        y = jax.lax.conv_general_dilated(
            x, w, (stride, stride), "VALID",
            dimension_numbers=("NCHW", "OIHW", "NCHW"),
        )
        return y + b.reshape(1, -1, 1, 1)

    def lrelu(x):
        return jnp.where(x >= 0, x, NEG_SLOPE * x)

    out = lrelu(conv(img, *params["conv1"], config["conv1"][2]))
    out = lrelu(conv(out, *params["conv2"], config["conv2"][2]))
    out = lrelu(conv(out, *params["conv3"], config["conv3"][2]))
    out = out.reshape(-1, FLAT)
    fcw, fcb = params["fc"]
    out = lrelu(out @ fcw.T + fcb)
    mw, mb = params["mean"]
    lw, lb = params["log_std"]
    return jnp.tanh(out @ mw.T + mb), out @ lw.T + lb


# ----------------------------------------------------------------------------
if __name__ == "__main__":
    key = jax.random.PRNGKey(0)
    pkey, xkey = jax.random.split(key)
    params = init_params(pkey)

    # Small case (batch=2 -> single grid block, padded batch).
    img = jax.random.normal(xkey, (2, C_IN, 16, 16), jnp.float32)
    mean, log_std = encoder_forward(params, img)
    jax.block_until_ready((mean, log_std))

    ref_mean, ref_log_std = encoder_reference(params, img)
    np.testing.assert_allclose(np.asarray(mean), np.asarray(ref_mean),
                               rtol=1e-5, atol=1e-5)
    np.testing.assert_allclose(np.asarray(log_std), np.asarray(ref_log_std),
                               rtol=1e-5, atol=1e-5)
    assert mean.shape == (2, LAT)
    assert log_std.shape == (2, LAT)

    # Larger case exercising batch padding + a multi-block ("parallel") grid.
    img2 = jax.random.normal(jax.random.PRNGKey(1), (40, C_IN, 16, 16), jnp.float32)
    m2, l2 = encoder_forward(params, img2)
    jax.block_until_ready((m2, l2))
    rm2, rl2 = encoder_reference(params, img2)
    np.testing.assert_allclose(np.asarray(m2), np.asarray(rm2), rtol=1e-5, atol=1e-5)
    np.testing.assert_allclose(np.asarray(l2), np.asarray(rl2), rtol=1e-5, atol=1e-5)

    print("KERNEL_OK")
</pallas_src>

<mosaic_0001>
module attributes {stable_mosaic.version = 11 : i64} {
  func.func @_encoder_kernel(%arg0: i32, %arg1: memref<1x648x36xf32, #tpu.memory_space<vmem>>, %arg2: memref<320x32xf32, #tpu.memory_space<vmem>>, %arg3: memref<8x32xf32, #tpu.memory_space<vmem>>, %arg4: memref<8x16xf32, #tpu.memory_space<vmem>>) attributes {dimension_semantics = [#tpu.dimension_semantics<parallel>], iteration_bounds = array<i64: 1>, scalar_prefetch = 0 : i64, scratch_operands = 0 : i64, tpu.core_type = #tpu.core_type<tc>, window_params = [{transform_indices = @transform_0, window_bounds = array<i64: 1, 648, 36>}, {pipeline_mode = #tpu.pipeline_mode<synchronous>, transform_indices = @transform_1, window_bounds = array<i64: 320, 32>}, {pipeline_mode = #tpu.pipeline_mode<synchronous>, transform_indices = @transform_2, window_bounds = array<i64: 8, 32>}, {transform_indices = @transform_3, window_bounds = array<i64: 8, 16>}]} {
    %c0 = arith.constant 0 : index
    %c0_0 = arith.constant 0 : index
    %c0_1 = arith.constant 0 : index
    %0 = vector.load %arg1[%c0, %c0_0, %c0_1] : memref<1x648x36xf32, #tpu.memory_space<vmem>>, vector<1x648x36xf32>
    %1 = vector.shape_cast %0 : vector<1x648x36xf32> to vector<648x36xf32>
    %c0_2 = arith.constant 0 : index
    %c0_3 = arith.constant 0 : index
    %2 = vector.load %arg2[%c0_2, %c0_3] : memref<320x32xf32, #tpu.memory_space<vmem>>, vector<320x32xf32>
    %c0_4 = arith.constant 0 : index
    %c0_5 = arith.constant 0 : index
    %3 = vector.load %arg3[%c0_4, %c0_5] : memref<8x32xf32, #tpu.memory_space<vmem>>, vector<8x32xf32>
    %4 = vector.extract_strided_slice %2 {offsets = [0, 0], sizes = [36, 8], strides = [1, 1]} : vector<320x32xf32> to vector<36x8xf32>
    %5 = vector.extract_strided_slice %2 {offsets = [40, 0], sizes = [72, 16], strides = [1, 1]} : vector<320x32xf32> to vector<72x16xf32>
    %6 = vector.extract_strided_slice %2 {offsets = [112, 0], sizes = [144, 32], strides = [1, 1]} : vector<320x32xf32> to vector<144x32xf32>
    %7 = vector.extract_strided_slice %2 {offsets = [256, 0], sizes = [32, 32], strides = [1, 1]} : vector<320x32xf32> to vector<32x32xf32>
    %8 = vector.extract_strided_slice %2 {offsets = [288, 0], sizes = [32, 16], strides = [1, 1]} : vector<320x32xf32> to vector<32x16xf32>
    %9 = vector.extract_strided_slice %3 {offsets = [0, 0], sizes = [1, 8], strides = [1, 1]} : vector<8x32xf32> to vector<1x8xf32>
    %10 = vector.extract_strided_slice %3 {offsets = [1, 0], sizes = [1, 16], strides = [1, 1]} : vector<8x32xf32> to vector<1x16xf32>
    %11 = vector.extract_strided_slice %3 {offsets = [2, 0], sizes = [1, 32], strides = [1, 1]} : vector<8x32xf32> to vector<1x32xf32>
    %12 = vector.extract_strided_slice %3 {offsets = [3, 0], sizes = [1, 32], strides = [1, 1]} : vector<8x32xf32> to vector<1x32xf32>
    %13 = vector.extract_strided_slice %3 {offsets = [4, 0], sizes = [1, 16], strides = [1, 1]} : vector<8x32xf32> to vector<1x16xf32>
    %cst = arith.constant dense<0.000000e+00> : vector<648x8xf32>
    %14 = tpu.matmul %1, %4, %cst {dimension_numbers = #tpu.dot_dimension_numbers<[1], [0], [0], [1], [0, 0, 1, 1], [], []>} : vector<648x36xf32>, vector<36x8xf32>, vector<648x8xf32> -> vector<648x8xf32>
    %15 = vector.broadcast %9 : vector<1x8xf32> to vector<648x8xf32>
    %16 = arith.addf %14, %15 : vector<648x8xf32>
    %cst_6 = arith.constant 0.000000e+00 : f32
    %17 = vector.broadcast %cst_6 : f32 to vector<648x8xf32>
    %18 = arith.cmpf oge, %16, %17 : vector<648x8xf32>
    %cst_7 = arith.constant 0.00999999977 : f32
    %19 = vector.broadcast %cst_7 : f32 to vector<648x8xf32>
    %20 = arith.mulf %19, %16 : vector<648x8xf32>
    %21 = arith.select %18, %16, %20 : vector<648x8xi1>, vector<648x8xf32>
    %cst_8 = arith.constant 0.000000e+00 : f32
    %22 = vector.broadcast %cst_8 : f32 to vector<72x16xf32>
    %23 = vector.extract_strided_slice %21 {offsets = [0, 0], sizes = [72, 8], strides = [1, 1]} : vector<648x8xf32> to vector<72x8xf32>
    %24 = vector.extract_strided_slice %5 {offsets = [0, 0], sizes = [8, 16], strides = [1, 1]} : vector<72x16xf32> to vector<8x16xf32>
    %cst_9 = arith.constant dense<0.000000e+00> : vector<72x16xf32>
    %25 = tpu.matmul %23, %24, %cst_9 {dimension_numbers = #tpu.dot_dimension_numbers<[1], [0], [0], [1], [0, 0, 1, 1], [], []>} : vector<72x8xf32>, vector<8x16xf32>, vector<72x16xf32> -> vector<72x16xf32>
    %26 = arith.addf %22, %25 : vector<72x16xf32>
    %27 = vector.extract_strided_slice %21 {offsets = [72, 0], sizes = [72, 8], strides = [1, 1]} : vector<648x8xf32> to vector<72x8xf32>
    %28 = vector.extract_strided_slice %5 {offsets = [8, 0], sizes = [8, 16], strides = [1, 1]} : vector<72x16xf32> to vector<8x16xf32>
    %cst_10 = arith.constant dense<0.000000e+00> : vector<72x16xf32>
    %29 = tpu.matmul %27, %28, %cst_10 {dimension_numbers = #tpu.dot_dimension_numbers<[1], [0], [0], [1], [0, 0, 1, 1], [], []>} : vector<72x8xf32>, vector<8x16xf32>, vector<72x16xf32> -> vector<72x16xf32>
    %30 = arith.addf %26, %29 : vector<72x16xf32>
    %31 = vector.extract_strided_slice %21 {offsets = [144, 0], sizes = [72, 8], strides = [1, 1]} : vector<648x8xf32> to vector<72x8xf32>
    %32 = vector.extract_strided_slice %5 {offsets = [16, 0], sizes = [8, 16], strides = [1, 1]} : vector<72x16xf32> to vector<8x16xf32>
    %cst_11 = arith.constant dense<0.000000e+00> : vector<72x16xf32>
    %33 = tpu.matmul %31, %32, %cst_11 {dimension_numbers = #tpu.dot_dimension_numbers<[1], [0], [0], [1], [0, 0, 1, 1], [], []>} : vector<72x8xf32>, vector<8x16xf32>, vector<72x16xf32> -> vector<72x16xf32>
    %34 = arith.addf %30, %33 : vector<72x16xf32>
    %35 = vector.extract_strided_slice %21 {offsets = [216, 0], sizes = [72, 8], strides = [1, 1]} : vector<648x8xf32> to vector<72x8xf32>
    %36 = vector.extract_strided_slice %5 {offsets = [24, 0], sizes = [8, 16], strides = [1, 1]} : vector<72x16xf32> to vector<8x16xf32>
    %cst_12 = arith.constant dense<0.000000e+00> : vector<72x16xf32>
    %37 = tpu.matmul %35, %36, %cst_12 {dimension_numbers = #tpu.dot_dimension_numbers<[1], [0], [0], [1], [0, 0, 1, 1], [], []>} : vector<72x8xf32>, vector<8x16xf32>, vector<72x16xf32> -> vector<72x16xf32>
    %38 = arith.addf %34, %37 : vector<72x16xf32>
    %39 = vector.extract_strided_slice %21 {offsets = [288, 0], sizes = [72, 8], strides = [1, 1]} : vector<648x8xf32> to vector<72x8xf32>
    %40 = vector.extract_strided_slice %5 {offsets = [32, 0], sizes = [8, 16], strides = [1, 1]} : vector<72x16xf32> to vector<8x16xf32>
    %cst_13 = arith.constant dense<0.000000e+00> : vector<72x16xf32>
    %41 = tpu.matmul %39, %40, %cst_13 {dimension_numbers = #tpu.dot_dimension_numbers<[1], [0], [0], [1], [0, 0, 1, 1], [], []>} : vector<72x8xf32>, vector<8x16xf32>, vector<72x16xf32> -> vector<72x16xf32>
    %42 = arith.addf %38, %41 : vector<72x16xf32>
    %43 = vector.extract_strided_slice %21 {offsets = [360, 0], sizes = [72, 8], strides = [1, 1]} : vector<648x8xf32> to vector<72x8xf32>
    %44 = vector.extract_strided_slice %5 {offsets = [40, 0], sizes = [8, 16], strides = [1, 1]} : vector<72x16xf32> to vector<8x16xf32>
    %cst_14 = arith.constant dense<0.000000e+00> : vector<72x16xf32>
    %45 = tpu.matmul %43, %44, %cst_14 {dimension_numbers = #tpu.dot_dimension_numbers<[1], [0], [0], [1], [0, 0, 1, 1], [], []>} : vector<72x8xf32>, vector<8x16xf32>, vector<72x16xf32> -> vector<72x16xf32>
    %46 = arith.addf %42, %45 : vector<72x16xf32>
    %47 = vector.extract_strided_slice %21 {offsets = [432, 0], sizes = [72, 8], strides = [1, 1]} : vector<648x8xf32> to vector<72x8xf32>
    %48 = vector.extract_strided_slice %5 {offsets = [48, 0], sizes = [8, 16], strides = [1, 1]} : vector<72x16xf32> to vector<8x16xf32>
    %cst_15 = arith.constant dense<0.000000e+00> : vector<72x16xf32>
    %49 = tpu.matmul %47, %48, %cst_15 {dimension_numbers = #tpu.dot_dimension_numbers<[1], [0], [0], [1], [0, 0, 1, 1], [], []>} : vector<72x8xf32>, vector<8x16xf32>, vector<72x16xf32> -> vector<72x16xf32>
    %50 = arith.addf %46, %49 : vector<72x16xf32>
    %51 = vector.extract_strided_slice %21 {offsets = [504, 0], sizes = [72, 8], strides = [1, 1]} : vector<648x8xf32> to vector<72x8xf32>
    %52 = vector.extract_strided_slice %5 {offsets = [56, 0], sizes = [8, 16], strides = [1, 1]} : vector<72x16xf32> to vector<8x16xf32>
    %cst_16 = arith.constant dense<0.000000e+00> : vector<72x16xf32>
    %53 = tpu.matmul %51, %52, %cst_16 {dimension_numbers = #tpu.dot_dimension_numbers<[1], [0], [0], [1], [0, 0, 1, 1], [], []>} : vector<72x8xf32>, vector<8x16xf32>, vector<72x16xf32> -> vector<72x16xf32>
    %54 = arith.addf %50, %53 : vector<72x16xf32>
    %55 = vector.extract_strided_slice %21 {offsets = [576, 0], sizes = [72, 8], strides = [1, 1]} : vector<648x8xf32> to vector<72x8xf32>
    %56 = vector.extract_strided_slice %5 {offsets = [64, 0], sizes = [8, 16], strides = [1, 1]} : vector<72x16xf32> to vector<8x16xf32>
    %cst_17 = arith.constant dense<0.000000e+00> : vector<72x16xf32>
    %57 = tpu.matmul %55, %56, %cst_17 {dimension_numbers = #tpu.dot_dimension_numbers<[1], [0], [0], [1], [0, 0, 1, 1], [], []>} : vector<72x8xf32>, vector<8x16xf32>, vector<72x16xf32> -> vector<72x16xf32>
    %58 = arith.addf %54, %57 : vector<72x16xf32>
    %59 = vector.broadcast %10 : vector<1x16xf32> to vector<72x16xf32>
    %60 = arith.addf %58, %59 : vector<72x16xf32>
    %cst_18 = arith.constant 0.000000e+00 : f32
    %61 = vector.broadcast %cst_18 : f32 to vector<72x16xf32>
    %62 = arith.cmpf oge, %60, %61 : vector<72x16xf32>
    %cst_19 = arith.constant 0.00999999977 : f32
    %63 = vector.broadcast %cst_19 : f32 to vector<72x16xf32>
    %64 = arith.mulf %63, %60 : vector<72x16xf32>
    %65 = arith.select %62, %60, %64 : vector<72x16xi1>, vector<72x16xf32>
    %cst_20 = arith.constant 0.000000e+00 : f32
    %66 = vector.broadcast %cst_20 : f32 to vector<8x32xf32>
    %67 = vector.extract_strided_slice %65 {offsets = [0, 0], sizes = [8, 16], strides = [1, 1]} : vector<72x16xf32> to vector<8x16xf32>
    %68 = vector.extract_strided_slice %6 {offsets = [0, 0], sizes = [16, 32], strides = [1, 1]} : vector<144x32xf32> to vector<16x32xf32>
    %cst_21 = arith.constant dense<0.000000e+00> : vector<8x32xf32>
    %69 = tpu.matmul %67, %68, %cst_21 {dimension_numbers = #tpu.dot_dimension_numbers<[1], [0], [0], [1], [0, 0, 1, 1], [], []>} : vector<8x16xf32>, vector<16x32xf32>, vector<8x32xf32> -> vector<8x32xf32>
    %70 = arith.addf %66, %69 : vector<8x32xf32>
    %71 = vector.extract_strided_slice %65 {offsets = [8, 0], sizes = [8, 16], strides = [1, 1]} : vector<72x16xf32> to vector<8x16xf32>
    %72 = vector.extract_strided_slice %6 {offsets = [16, 0], sizes = [16, 32], strides = [1, 1]} : vector<144x32xf32> to vector<16x32xf32>
    %cst_22 = arith.constant dense<0.000000e+00> : vector<8x32xf32>
    %73 = tpu.matmul %71, %72, %cst_22 {dimension_numbers = #tpu.dot_dimension_numbers<[1], [0], [0], [1], [0, 0, 1, 1], [], []>} : vector<8x16xf32>, vector<16x32xf32>, vector<8x32xf32> -> vector<8x32xf32>
    %74 = arith.addf %70, %73 : vector<8x32xf32>
    %75 = vector.extract_strided_slice %65 {offsets = [16, 0], sizes = [8, 16], strides = [1, 1]} : vector<72x16xf32> to vector<8x16xf32>
    %76 = vector.extract_strided_slice %6 {offsets = [32, 0], sizes = [16, 32], strides = [1, 1]} : vector<144x32xf32> to vector<16x32xf32>
    %cst_23 = arith.constant dense<0.000000e+00> : vector<8x32xf32>
    %77 = tpu.matmul %75, %76, %cst_23 {dimension_numbers = #tpu.dot_dimension_numbers<[1], [0], [0], [1], [0, 0, 1, 1], [], []>} : vector<8x16xf32>, vector<16x32xf32>, vector<8x32xf32> -> vector<8x32xf32>
    %78 = arith.addf %74, %77 : vector<8x32xf32>
    %79 = vector.extract_strided_slice %65 {offsets = [24, 0], sizes = [8, 16], strides = [1, 1]} : vector<72x16xf32> to vector<8x16xf32>
    %80 = vector.extract_strided_slice %6 {offsets = [48, 0], sizes = [16, 32], strides = [1, 1]} : vector<144x32xf32> to vector<16x32xf32>
    %cst_24 = arith.constant dense<0.000000e+00> : vector<8x32xf32>
    %81 = tpu.matmul %79, %80, %cst_24 {dimension_numbers = #tpu.dot_dimension_numbers<[1], [0], [0], [1], [0, 0, 1, 1], [], []>} : vector<8x16xf32>, vector<16x32xf32>, vector<8x32xf32> -> vector<8x32xf32>
    %82 = arith.addf %78, %81 : vector<8x32xf32>
    %83 = vector.extract_strided_slice %65 {offsets = [32, 0], sizes = [8, 16], strides = [1, 1]} : vector<72x16xf32> to vector<8x16xf32>
    %84 = vector.extract_strided_slice %6 {offsets = [64, 0], sizes = [16, 32], strides = [1, 1]} : vector<144x32xf32> to vector<16x32xf32>
    %cst_25 = arith.constant dense<0.000000e+00> : vector<8x32xf32>
    %85 = tpu.matmul %83, %84, %cst_25 {dimension_numbers = #tpu.dot_dimension_numbers<[1], [0], [0], [1], [0, 0, 1, 1], [], []>} : vector<8x16xf32>, vector<16x32xf32>, vector<8x32xf32> -> vector<8x32xf32>
    %86 = arith.addf %82, %85 : vector<8x32xf32>
    %87 = vector.extract_strided_slice %65 {offsets = [40, 0], sizes = [8, 16], strides = [1, 1]} : vector<72x16xf32> to vector<8x16xf32>
    %88 = vector.extract_strided_slice %6 {offsets = [80, 0], sizes = [16, 32], strides = [1, 1]} : vector<144x32xf32> to vector<16x32xf32>
    %cst_26 = arith.constant dense<0.000000e+00> : vector<8x32xf32>
    %89 = tpu.matmul %87, %88, %cst_26 {dimension_numbers = #tpu.dot_dimension_numbers<[1], [0], [0], [1], [0, 0, 1, 1], [], []>} : vector<8x16xf32>, vector<16x32xf32>, vector<8x32xf32> -> vector<8x32xf32>
    %90 = arith.addf %86, %89 : vector<8x32xf32>
    %91 = vector.extract_strided_slice %65 {offsets = [48, 0], sizes = [8, 16], strides = [1, 1]} : vector<72x16xf32> to vector<8x16xf32>
    %92 = vector.extract_strided_slice %6 {offsets = [96, 0], sizes = [16, 32], strides = [1, 1]} : vector<144x32xf32> to vector<16x32xf32>
    %cst_27 = arith.constant dense<0.000000e+00> : vector<8x32xf32>
    %93 = tpu.matmul %91, %92, %cst_27 {dimension_numbers = #tpu.dot_dimension_numbers<[1], [0], [0], [1], [0, 0, 1, 1], [], []>} : vector<8x16xf32>, vector<16x32xf32>, vector<8x32xf32> -> vector<8x32xf32>
    %94 = arith.addf %90, %93 : vector<8x32xf32>
    %95 = vector.extract_strided_slice %65 {offsets = [56, 0], sizes = [8, 16], strides = [1, 1]} : vector<72x16xf32> to vector<8x16xf32>
    %96 = vector.extract_strided_slice %6 {offsets = [112, 0], sizes = [16, 32], strides = [1, 1]} : vector<144x32xf32> to vector<16x32xf32>
    %cst_28 = arith.constant dense<0.000000e+00> : vector<8x32xf32>
    %97 = tpu.matmul %95, %96, %cst_28 {dimension_numbers = #tpu.dot_dimension_numbers<[1], [0], [0], [1], [0, 0, 1, 1], [], []>} : vector<8x16xf32>, vector<16x32xf32>, vector<8x32xf32> -> vector<8x32xf32>
    %98 = arith.addf %94, %97 : vector<8x32xf32>
    %99 = vector.extract_strided_slice %65 {offsets = [64, 0], sizes = [8, 16], strides = [1, 1]} : vector<72x16xf32> to vector<8x16xf32>
    %100 = vector.extract_strided_slice %6 {offsets = [128, 0], sizes = [16, 32], strides = [1, 1]} : vector<144x32xf32> to vector<16x32xf32>
    %cst_29 = arith.constant dense<0.000000e+00> : vector<8x32xf32>
    %101 = tpu.matmul %99, %100, %cst_29 {dimension_numbers = #tpu.dot_dimension_numbers<[1], [0], [0], [1], [0, 0, 1, 1], [], []>} : vector<8x16xf32>, vector<16x32xf32>, vector<8x32xf32> -> vector<8x32xf32>
    %102 = arith.addf %98, %101 : vector<8x32xf32>
    %103 = vector.broadcast %11 : vector<1x32xf32> to vector<8x32xf32>
    %104 = arith.addf %102, %103 : vector<8x32xf32>
    %cst_30 = arith.constant 0.000000e+00 : f32
    %105 = vector.broadcast %cst_30 : f32 to vector<8x32xf32>
    %106 = arith.cmpf oge, %104, %105 : vector<8x32xf32>
    %cst_31 = arith.constant 0.00999999977 : f32
    %107 = vector.broadcast %cst_31 : f32 to vector<8x32xf32>
    %108 = arith.mulf %107, %104 : vector<8x32xf32>
    %109 = arith.select %106, %104, %108 : vector<8x32xi1>, vector<8x32xf32>
    %cst_32 = arith.constant dense<0.000000e+00> : vector<8x32xf32>
    %110 = tpu.matmul %109, %7, %cst_32 {dimension_numbers = #tpu.dot_dimension_numbers<[1], [0], [0], [1], [0, 0, 1, 1], [], []>} : vector<8x32xf32>, vector<32x32xf32>, vector<8x32xf32> -> vector<8x32xf32>
    %111 = vector.broadcast %12 : vector<1x32xf32> to vector<8x32xf32>
    %112 = arith.addf %110, %111 : vector<8x32xf32>
    %cst_33 = arith.constant 0.000000e+00 : f32
    %113 = vector.broadcast %cst_33 : f32 to vector<8x32xf32>
    %114 = arith.cmpf oge, %112, %113 : vector<8x32xf32>
    %cst_34 = arith.constant 0.00999999977 : f32
    %115 = vector.broadcast %cst_34 : f32 to vector<8x32xf32>
    %116 = arith.mulf %115, %112 : vector<8x32xf32>
    %117 = arith.select %114, %112, %116 : vector<8x32xi1>, vector<8x32xf32>
    %cst_35 = arith.constant dense<0.000000e+00> : vector<8x16xf32>
    %118 = tpu.matmul %117, %8, %cst_35 {dimension_numbers = #tpu.dot_dimension_numbers<[1], [0], [0], [1], [0, 0, 1, 1], [], []>} : vector<8x32xf32>, vector<32x16xf32>, vector<8x16xf32> -> vector<8x16xf32>
    %119 = vector.broadcast %13 : vector<1x16xf32> to vector<8x16xf32>
    %120 = arith.addf %118, %119 : vector<8x16xf32>
    %121 = tpu.iota {dimensions = array<i32: 1>} : vector<8x16xi32>
    %c8_i32 = arith.constant 8 : i32
    %122 = vector.broadcast %c8_i32 : i32 to vector<8x16xi32>
    %123 = arith.cmpi slt, %121, %122 : vector<8x16xi32>
    %124 = math.tanh %120 : vector<8x16xf32>
    %125 = arith.select %123, %124, %120 : vector<8x16xi1>, vector<8x16xf32>
    %c0_36 = arith.constant 0 : index
    %c0_37 = arith.constant 0 : index
    %126 = vector.load %arg4[%c0_36, %c0_37] : memref<8x16xf32, #tpu.memory_space<vmem>>, vector<8x16xf32>
    tpu.vector_store %arg4[%c0_36, %c0_37], %125 {strides = array<i32>} : memref<8x16xf32, #tpu.memory_space<vmem>>, vector<8x16xf32>,
    return
  }
  func.func @transform_0(%arg0: i32) -> (i32, i32, i32) {
    %c0_i32 = arith.constant 0 : i32
    %c0_i32_0 = arith.constant 0 : i32
    %c0_i32_1 = arith.constant 0 : i32
    return %arg0, %c0_i32, %c0_i32_0 : i32, i32, i32
  }
  func.func @transform_1(%arg0: i32) -> (i32, i32) {
    %c0_i32 = arith.constant 0 : i32
    %c0_i32_0 = arith.constant 0 : i32
    %c0_i32_1 = arith.constant 0 : i32
    return %c0_i32, %c0_i32_0 : i32, i32
  }
  func.func @transform_2(%arg0: i32) -> (i32, i32) {
    %c0_i32 = arith.constant 0 : i32
    %c0_i32_0 = arith.constant 0 : i32
    %c0_i32_1 = arith.constant 0 : i32
    return %c0_i32, %c0_i32_0 : i32, i32
  }
  func.func @transform_3(%arg0: i32) -> (i32, i32) {
    %c0_i32 = arith.constant 0 : i32
    %c0_i32_0 = arith.constant 0 : i32
    return %arg0, %c0_i32 : i32, i32
  }
}

</mosaic_0001>

<llo_original>
// kernel: encoder_forward.1
$region0: #{encoder_forward.1}
  #allocation0 [shape = 'u32[]', space=smem, size = 0x4, offset = 0x4, fixed_abs, tag = 'smem constant byte address 0x4 - core index']
  #allocation1 [shape = 'u32[144,128]{1,0:T(1,128)}', space=vmem, size = 0x12000, scoped, tag = 'internal scratch']
  %s0 = inlined_call_operand.vmem [shape: f32[1,648,36], index: 0, kind: input, shape index: {}]
  %s1 = inlined_call_operand.vmem [shape: f32[320,32], index: 1, kind: input, shape index: {}]
  %s2 = inlined_call_operand.vmem [shape: f32[8,32], index: 2, kind: input, shape index: {}]
  %s3 = inlined_call_operand.vmem [shape: f32[8,16], index: 3, kind: output, shape index: {}]
  %s4 = sld [smem:[#allocation0]]
  $region22: #{encoder_forward.1} parent=0
    _
  %s6 = ssub.s32 1, %s4
  %s7 = scalar_select 0, %s6, %s4
  // Predicated region
  $region2: #{encoder_forward.1} parent=0 // pred_check
    _
  $region3: #{encoder_forward.1} parent=0 // pred_check_branch
    %9 = sbr.rel (0) target = $region5
  $region4: #{encoder_forward.1} parent=0 // pred_region
    _
  $region5: #{encoder_forward.1} parent=0 // pred_fallthru
    _
  // Predicated region
  $region6: #{encoder_forward.1} parent=0 // pred_check
    _
  $region7: #{encoder_forward.1} parent=0 // pred_check_branch
    %11 = sbr.rel (0) target = $region9
  $region8: #{encoder_forward.1} parent=0 // pred_region
    _
  $region9: #{encoder_forward.1} parent=0 // pred_fallthru
    _
  // Predicated region
  $region10: #{encoder_forward.1} parent=0 // pred_check
    _
  $region11: #{encoder_forward.1} parent=0 // pred_check_branch
    %13 = sbr.rel (0) target = $region13
  $region12: #{encoder_forward.1} parent=0 // pred_region
    _
  $region13: #{encoder_forward.1} parent=0 // pred_fallthru
    _
  %v14 = vld [vmem:[%s0] sm:$0xff]
  %v15 = vld [vmem:[%s0 + $0x8] sm:$0xff]
  %v16 = vld [vmem:[%s0 + $0x10] sm:$0xff]
  %v17 = vld [vmem:[%s0 + $0x18] sm:$0xff]
  %v18 = vld [vmem:[%s0 + $0x20] sm:$0xff]
  %v19 = vld [vmem:[%s0 + $0x28] sm:$0xff]
  %v20 = vld [vmem:[%s0 + $0x30] sm:$0xff]
  %v21 = vld [vmem:[%s0 + $0x38] sm:$0xff]
  %v22 = vld [vmem:[%s0 + $0x40] sm:$0xff]
  %v23 = vld [vmem:[%s0 + $0x48] sm:$0xff]
  %v24 = vld [vmem:[%s0 + $0x50] sm:$0xff]
  %v25 = vld [vmem:[%s0 + $0x58] sm:$0xff]
  %v26 = vld [vmem:[%s0 + $0x60] sm:$0xff]
  %v27 = vld [vmem:[%s0 + $0x68] sm:$0xff]
  %v28 = vld [vmem:[%s0 + $0x70] sm:$0xff]
  %v29 = vld [vmem:[%s0 + $0x78] sm:$0xff]
  %v30 = vld [vmem:[%s0 + $0x80] sm:$0xff]
  %v31 = vld [vmem:[%s0 + $0x88] sm:$0xff]
  %v32 = vld [vmem:[%s0 + $0x90] sm:$0xff]
  %v33 = vld [vmem:[%s0 + $0x98] sm:$0xff]
  %v34 = vld [vmem:[%s0 + $0xa0] sm:$0xff]
  %v35 = vld [vmem:[%s0 + $0xa8] sm:$0xff]
  %v36 = vld [vmem:[%s0 + $0xb0] sm:$0xff]
  %v37 = vld [vmem:[%s0 + $0xb8] sm:$0xff]
  %v38 = vld [vmem:[%s0 + $0xc0] sm:$0xff]
  %v39 = vld [vmem:[%s0 + $0xc8] sm:$0xff]
  %v40 = vld [vmem:[%s0 + $0xd0] sm:$0xff]
  %v41 = vld [vmem:[%s0 + $0xd8] sm:$0xff]
  %v42 = vld [vmem:[%s0 + $0xe0] sm:$0xff]
  %v43 = vld [vmem:[%s0 + $0xe8] sm:$0xff]
  %v44 = vld [vmem:[%s0 + $0xf0] sm:$0xff]
  %v45 = vld [vmem:[%s0 + $0xf8] sm:$0xff]
  %v46 = vld [vmem:[%s0 + $0x100] sm:$0xff]
  %v47 = vld [vmem:[%s0 + $0x108] sm:$0xff]
  %v48 = vld [vmem:[%s0 + $0x110] sm:$0xff]
  %v49 = vld [vmem:[%s0 + $0x118] sm:$0xff]
  %v50 = vld [vmem:[%s0 + $0x120] sm:$0xff]
  %v51 = vld [vmem:[%s0 + $0x128] sm:$0xff]
  %v52 = vld [vmem:[%s0 + $0x130] sm:$0xff]
  %v53 = vld [vmem:[%s0 + $0x138] sm:$0xff]
  %v54 = vld [vmem:[%s0 + $0x140] sm:$0xff]
  %v55 = vld [vmem:[%s0 + $0x148] sm:$0xff]
  %v56 = vld [vmem:[%s0 + $0x150] sm:$0xff]
  %v57 = vld [vmem:[%s0 + $0x158] sm:$0xff]
  %v58 = vld [vmem:[%s0 + $0x160] sm:$0xff]
  %v59 = vld [vmem:[%s0 + $0x168] sm:$0xff]
  %v60 = vld [vmem:[%s0 + $0x170] sm:$0xff]
  %v61 = vld [vmem:[%s0 + $0x178] sm:$0xff]
  %v62 = vld [vmem:[%s0 + $0x180] sm:$0xff]
  %v63 = vld [vmem:[%s0 + $0x188] sm:$0xff]
  %v64 = vld [vmem:[%s0 + $0x190] sm:$0xff]
  %v65 = vld [vmem:[%s0 + $0x198] sm:$0xff]
  %v66 = vld [vmem:[%s0 + $0x1a0] sm:$0xff]
  %v67 = vld [vmem:[%s0 + $0x1a8] sm:$0xff]
  %v68 = vld [vmem:[%s0 + $0x1b0] sm:$0xff]
  %v69 = vld [vmem:[%s0 + $0x1b8] sm:$0xff]
  %v70 = vld [vmem:[%s0 + $0x1c0] sm:$0xff]
  %v71 = vld [vmem:[%s0 + $0x1c8] sm:$0xff]
  %v72 = vld [vmem:[%s0 + $0x1d0] sm:$0xff]
  %v73 = vld [vmem:[%s0 + $0x1d8] sm:$0xff]
  %v74 = vld [vmem:[%s0 + $0x1e0] sm:$0xff]
  %v75 = vld [vmem:[%s0 + $0x1e8] sm:$0xff]
  %v76 = vld [vmem:[%s0 + $0x1f0] sm:$0xff]
  %v77 = vld [vmem:[%s0 + $0x1f8] sm:$0xff]
  %v78 = vld [vmem:[%s0 + $0x200] sm:$0xff]
  %v79 = vld [vmem:[%s0 + $0x208] sm:$0xff]
  %v80 = vld [vmem:[%s0 + $0x210] sm:$0xff]
  %v81 = vld [vmem:[%s0 + $0x218] sm:$0xff]
  %v82 = vld [vmem:[%s0 + $0x220] sm:$0xff]
  %v83 = vld [vmem:[%s0 + $0x228] sm:$0xff]
  %v84 = vld [vmem:[%s0 + $0x230] sm:$0xff]
  %v85 = vld [vmem:[%s0 + $0x238] sm:$0xff]
  %v86 = vld [vmem:[%s0 + $0x240] sm:$0xff]
  %v87 = vld [vmem:[%s0 + $0x248] sm:$0xff]
  %v88 = vld [vmem:[%s0 + $0x250] sm:$0xff]
  %v89 = vld [vmem:[%s0 + $0x258] sm:$0xff]
  %v90 = vld [vmem:[%s0 + $0x260] sm:$0xff]
  %v91 = vld [vmem:[%s0 + $0x268] sm:$0xff]
  %v92 = vld [vmem:[%s0 + $0x270] sm:$0xff]
  %v93 = vld [vmem:[%s0 + $0x278] sm:$0xff]
  %v94 = vld [vmem:[%s0 + $0x280] sm:$0xff]
  %v95 = vld [vmem:[%s1] sm:$0xff]
  %v96 = vld [vmem:[%s1 + $0x8] sm:$0xff]
  %v97 = vld [vmem:[%s1 + $0x10] sm:$0xff]
  %v98 = vld [vmem:[%s1 + $0x18] sm:$0xff]
  %v99 = vld [vmem:[%s1 + $0x20] sm:$0xff]
  %v100 = vld [vmem:[%s1 + $0x28] sm:$0xff]
  %v101 = vld [vmem:[%s1 + $0x30] sm:$0xff]
  %v102 = vld [vmem:[%s1 + $0x38] sm:$0xff]
  %v103 = vld [vmem:[%s1 + $0x40] sm:$0xff]
  %v104 = vld [vmem:[%s1 + $0x48] sm:$0xff]
  %v105 = vld [vmem:[%s1 + $0x50] sm:$0xff]
  %v106 = vld [vmem:[%s1 + $0x58] sm:$0xff]
  %v107 = vld [vmem:[%s1 + $0x60] sm:$0xff]
  %v108 = vld [vmem:[%s1 + $0x68] sm:$0xff]
  %v109 = vld [vmem:[%s1 + $0x70] sm:$0xff]
  %v110 = vld [vmem:[%s1 + $0x78] sm:$0xff]
  %v111 = vld [vmem:[%s1 + $0x80] sm:$0xff]
  %v112 = vld [vmem:[%s1 + $0x88] sm:$0xff]
  %v113 = vld [vmem:[%s1 + $0x90] sm:$0xff]
  %v114 = vld [vmem:[%s1 + $0x98] sm:$0xff]
  %v115 = vld [vmem:[%s1 + $0xa0] sm:$0xff]
  %v116 = vld [vmem:[%s1 + $0xa8] sm:$0xff]
  %v117 = vld [vmem:[%s1 + $0xb0] sm:$0xff]
  %v118 = vld [vmem:[%s1 + $0xb8] sm:$0xff]
  %v119 = vld [vmem:[%s1 + $0xc0] sm:$0xff]
  %v120 = vld [vmem:[%s1 + $0xc8] sm:$0xff]
  %v121 = vld [vmem:[%s1 + $0xd0] sm:$0xff]
  %v122 = vld [vmem:[%s1 + $0xd8] sm:$0xff]
  %v123 = vld [vmem:[%s1 + $0xe0] sm:$0xff]
  %v124 = vld [vmem:[%s1 + $0xe8] sm:$0xff]
  %v125 = vld [vmem:[%s1 + $0xf0] sm:$0xff]
  %v126 = vld [vmem:[%s1 + $0xf8] sm:$0xff]
  %v127 = vld [vmem:[%s1 + $0x100] sm:$0xff]
  %v128 = vld [vmem:[%s1 + $0x108] sm:$0xff]
  %v129 = vld [vmem:[%s1 + $0x110] sm:$0xff]
  %v130 = vld [vmem:[%s1 + $0x118] sm:$0xff]
  %v131 = vld [vmem:[%s1 + $0x120] sm:$0xff]
  %v132 = vld [vmem:[%s1 + $0x128] sm:$0xff]
  %v133 = vld [vmem:[%s1 + $0x130] sm:$0xff]
  %v134 = vld [vmem:[%s1 + $0x138] sm:$0xff]
  %v135 = vld [vmem:[%s2] sm:$0xff]
  %v136 = vlaneseq
  %v137 = vshrl.u32 %v136, 7
  %v138 = vsub.s32 0, %v137
  %v139 = vrot.slane %v135, %v138
  %vm140 = vcmask 293888
  %v142 = vsel %vm140, %v14, 0
  %v145 = vsel %vm140, %v15, 0
  %v148 = vsel %vm140, %v16, 0
  %v151 = vsel %vm140, %v17, 0
  %v154 = vsel %vm140, %v18, 0
  %v157 = vsel %vm140, %v19, 0
  %v160 = vsel %vm140, %v20, 0
  %v163 = vsel %vm140, %v21, 0
  %v166 = vsel %vm140, %v22, 0
  %v169 = vsel %vm140, %v23, 0
  %v172 = vsel %vm140, %v24, 0
  %v175 = vsel %vm140, %v25, 0
  %v178 = vsel %vm140, %v26, 0
  %v181 = vsel %vm140, %v27, 0
  %v184 = vsel %vm140, %v28, 0
  %v187 = vsel %vm140, %v29, 0
  %v190 = vsel %vm140, %v30, 0
  %v193 = vsel %vm140, %v31, 0
  %v196 = vsel %vm140, %v32, 0
  %v199 = vsel %vm140, %v33, 0
  %v202 = vsel %vm140, %v34, 0
  %v205 = vsel %vm140, %v35, 0
  %v208 = vsel %vm140, %v36, 0
  %v211 = vsel %vm140, %v37, 0
  %v214 = vsel %vm140, %v38, 0
  %v217 = vsel %vm140, %v39, 0
  %v220 = vsel %vm140, %v40, 0
  %v223 = vsel %vm140, %v41, 0
  %v226 = vsel %vm140, %v42, 0
  %v229 = vsel %vm140, %v43, 0
  %v232 = vsel %vm140, %v44, 0
  %v235 = vsel %vm140, %v45, 0
  %v238 = vsel %vm140, %v46, 0
  %v241 = vsel %vm140, %v47, 0
  %v244 = vsel %vm140, %v48, 0
  %v247 = vsel %vm140, %v49, 0
  %v250 = vsel %vm140, %v50, 0
  %v253 = vsel %vm140, %v51, 0
  %v256 = vsel %vm140, %v52, 0
  %v259 = vsel %vm140, %v53, 0
  %v262 = vsel %vm140, %v54, 0
  %v265 = vsel %vm140, %v55, 0
  %v268 = vsel %vm140, %v56, 0
  %v271 = vsel %vm140, %v57, 0
  %v274 = vsel %vm140, %v58, 0
  %v277 = vsel %vm140, %v59, 0
  %v280 = vsel %vm140, %v60, 0
  %v283 = vsel %vm140, %v61, 0
  %v286 = vsel %vm140, %v62, 0
  %v289 = vsel %vm140, %v63, 0
  %v292 = vsel %vm140, %v64, 0
  %v295 = vsel %vm140, %v65, 0
  %v298 = vsel %vm140, %v66, 0
  %v301 = vsel %vm140, %v67, 0
  %v304 = vsel %vm140, %v68, 0
  %v307 = vsel %vm140, %v69, 0
  %v310 = vsel %vm140, %v70, 0
  %v313 = vsel %vm140, %v71, 0
  %v316 = vsel %vm140, %v72, 0
  %v319 = vsel %vm140, %v73, 0
  %v322 = vsel %vm140, %v74, 0
  %v325 = vsel %vm140, %v75, 0
  %v328 = vsel %vm140, %v76, 0
  %v331 = vsel %vm140, %v77, 0
  %v334 = vsel %vm140, %v78, 0
  %v337 = vsel %vm140, %v79, 0
  %v340 = vsel %vm140, %v80, 0
  %v343 = vsel %vm140, %v81, 0
  %v346 = vsel %vm140, %v82, 0
  %v349 = vsel %vm140, %v83, 0
  %v352 = vsel %vm140, %v84, 0
  %v355 = vsel %vm140, %v85, 0
  %v358 = vsel %vm140, %v86, 0
  %v361 = vsel %vm140, %v87, 0
  %v364 = vsel %vm140, %v88, 0
  %v367 = vsel %vm140, %v89, 0
  %v370 = vsel %vm140, %v90, 0
  %v373 = vsel %vm140, %v91, 0
  %v376 = vsel %vm140, %v92, 0
  %v379 = vsel %vm140, %v93, 0
  %v382 = vsel %vm140, %v94, 0
  %vm384 = vcmask 1043456
  %v386 = vsel %vm384, %v99, 0
  %388 = vmatprep.subr.mxu0 0.0
  %389 = vmatpush1.msra.mxu0 %v95
  %390 = vmatprep.subr.mxu0 0.0
  %391 = vmatpush1.msra.mxu0 %v96
  %392 = vmatprep.subr.mxu0 0.0
  %393 = vmatpush1.msra.mxu0 %v97
  %394 = vmatprep.subr.mxu0 0.0
  %395 = vmatpush1.msra.mxu0 %v98
  %396 = vmatprep.subr.mxu0 0.0
  %397 = vmatpush1.msra.mxu0 %v386
  %398 = vmatprep.subr.mxu0 0.0
  %399 = vmatpush1.msra.mxu0 0.0
  %400 = vmatprep.subr.mxu0 0.0
  %401 = vmatpush1.msra.mxu0 0.0
  %402 = vmatprep.subr.mxu0 0.0
  %403 = vmatpush1.msra.mxu0 0.0
  %404 = vmatprep.subr.mxu0 0.0
  %405 = vmatpush1.msra.mxu0 0.0
  %406 = vmatprep.subr.mxu0 0.0
  %407 = vmatpush1.msra.mxu0 0.0
  %408 = vmatprep.subr.mxu0 0.0
  %409 = vmatpush1.msra.mxu0 0.0
  %410 = vmatprep.subr.mxu0 0.0
  %411 = vmatpush1.msra.mxu0 0.0
  %412 = vmatprep.subr.mxu0 0.0
  %413 = vmatpush1.msra.mxu0 0.0
  %414 = vmatprep.subr.mxu0 0.0
  %415 = vmatpush1.msra.mxu0 0.0
  %416 = vmatprep.subr.mxu0 0.0
  %417 = vmatpush1.msra.mxu0 0.0
  %418 = vmatprep.subr.mxu0 0.0
  %419 = vmatpush1.msra.mxu0 0.0
  %420 = vmatprep.subr.mxu0 0.0
  %421 = vmatpush1.msra.mxu0 0.0
  %422 = vmatprep.subr.mxu0 0.0
  %423 = vmatpush1.msra.mxu0 0.0
  %424 = vmatprep.subr.mxu0 0.0
  %425 = vmatpush1.msra.mxu0 0.0
  %426 = vmatprep.subr.mxu0 0.0
  %427 = vmatpush1.msra.mxu0 0.0
  %428 = vmatprep.subr.mxu0 0.0
  %429 = vmatpush1.msra.mxu0 0.0
  %430 = vmatprep.subr.mxu0 0.0
  %431 = vmatpush1.msra.mxu0 0.0
  %432 = vmatprep.subr.mxu0 0.0
  %433 = vmatpush1.msra.mxu0 0.0
  %434 = vmatprep.subr.mxu0 0.0
  %435 = vmatpush1.msra.mxu0 0.0
  %436 = vmatprep.subr.mxu0 0.0
  %437 = vmatpush1.msra.mxu0 0.0
  %438 = vmatprep.subr.mxu0 0.0
  %439 = vmatpush1.msra.mxu0 0.0
  %440 = vmatprep.subr.mxu0 0.0
  %441 = vmatpush1.msra.mxu0 0.0
  %442 = vmatprep.subr.mxu0 0.0
  %443 = vmatpush1.msra.mxu0 0.0
  %444 = vmatprep.subr.mxu0 0.0
  %445 = vmatpush1.msra.mxu0 0.0
  %446 = vmatprep.subr.mxu0 0.0
  %447 = vmatpush1.msra.mxu0 0.0
  %448 = vmatprep.subr.mxu0 0.0
  %449 = vmatpush1.msra.mxu0 0.0
  %450 = vmatprep.subr.mxu0 0.0
  %451 = vmatpush1.msra.mxu0 0.0
  %452 = vmatprep.mubr.f32.mxu0 0.0
  %453 = vmatmul.mubr.f32.gmra.mrb[0].mxu0 %v142
  %v454 = vpop.f32.mrb[0].mxu0
  %v455 = vadd.f32 %v139, %v454
  %v456 = vpop.f32.mrb[0].mxu0
  %457 = vmatprep.mubr.f32.mxu0 0.0
  %458 = vmatmul.mubr.f32.gmra.mrb[0].mxu0 %v145
  %v459 = vpop.f32.mrb[0].mxu0
  %v460 = vadd.f32 %v139, %v459
  %v461 = vpop.f32.mrb[0].mxu0
  %462 = vmatprep.mubr.f32.mxu0 0.0
  %463 = vmatmul.mubr.f32.gmra.mrb[0].mxu0 %v148
  %v464 = vpop.f32.mrb[0].mxu0
  %v465 = vadd.f32 %v139, %v464
  %v466 = vpop.f32.mrb[0].mxu0
  %467 = vmatprep.mubr.f32.mxu0 0.0
  %468 = vmatmul.mubr.f32.gmra.mrb[0].mxu0 %v151
  %v469 = vpop.f32.mrb[0].mxu0
  %v470 = vadd.f32 %v139, %v469
  %v471 = vpop.f32.mrb[0].mxu0
  %472 = vmatprep.mubr.f32.mxu0 0.0
  %473 = vmatmul.mubr.f32.gmra.mrb[0].mxu0 %v154
  %v474 = vpop.f32.mrb[0].mxu0
  %v475 = vadd.f32 %v139, %v474
  %v476 = vpop.f32.mrb[0].mxu0
  %477 = vmatprep.mubr.f32.mxu0 0.0
  %478 = vmatmul.mubr.f32.gmra.mrb[0].mxu0 %v157
  %v479 = vpop.f32.mrb[0].mxu0
  %v480 = vadd.f32 %v139, %v479
  %v481 = vpop.f32.mrb[0].mxu0
  %482 = vmatprep.mubr.f32.mxu0 0.0
  %483 = vmatmul.mubr.f32.gmra.mrb[0].mxu0 %v160
  %v484 = vpop.f32.mrb[0].mxu0
  %v485 = vadd.f32 %v139, %v484
  %v486 = vpop.f32.mrb[0].mxu0
  %487 = vmatprep.mubr.f32.mxu0 0.0
  %488 = vmatmul.mubr.f32.gmra.mrb[0].mxu0 %v163
  %v489 = vpop.f32.mrb[0].mxu0
  %v490 = vadd.f32 %v139, %v489
  %v491 = vpop.f32.mrb[0].mxu0
  %492 = vmatprep.mubr.f32.mxu0 0.0
  %493 = vmatmul.mubr.f32.gmra.mrb[0].mxu0 %v166
  %v494 = vpop.f32.mrb[0].mxu0
  %v495 = vadd.f32 %v139, %v494
  %v496 = vpop.f32.mrb[0].mxu0
  %497 = vmatprep.mubr.f32.mxu0 0.0
  %498 = vmatmul.mubr.f32.gmra.mrb[0].mxu0 %v169
  %v499 = vpop.f32.mrb[0].mxu0
  %v500 = vadd.f32 %v139, %v499
  %v501 = vpop.f32.mrb[0].mxu0
  %502 = vmatprep.mubr.f32.mxu0 0.0
  %503 = vmatmul.mubr.f32.gmra.mrb[0].mxu0 %v172
  %v504 = vpop.f32.mrb[0].mxu0
  %v505 = vadd.f32 %v139, %v504
  %v506 = vpop.f32.mrb[0].mxu0
  %507 = vmatprep.mubr.f32.mxu0 0.0
  %508 = vmatmul.mubr.f32.gmra.mrb[0].mxu0 %v175
  %v509 = vpop.f32.mrb[0].mxu0
  %v510 = vadd.f32 %v139, %v509
  %v511 = vpop.f32.mrb[0].mxu0
  %512 = vmatprep.mubr.f32.mxu0 0.0
  %513 = vmatmul.mubr.f32.gmra.mrb[0].mxu0 %v178
  %v514 = vpop.f32.mrb[0].mxu0
  %v515 = vadd.f32 %v139, %v514
  %v516 = vpop.f32.mrb[0].mxu0
  %517 = vmatprep.mubr.f32.mxu0 0.0
  %518 = vmatmul.mubr.f32.gmra.mrb[0].mxu0 %v181
  %v519 = vpop.f32.mrb[0].mxu0
  %v520 = vadd.f32 %v139, %v519
  %v521 = vpop.f32.mrb[0].mxu0
  %522 = vmatprep.mubr.f32.mxu0 0.0
  %523 = vmatmul.mubr.f32.gmra.mrb[0].mxu0 %v184
  %v524 = vpop.f32.mrb[0].mxu0
  %v525 = vadd.f32 %v139, %v524
  %v526 = vpop.f32.mrb[0].mxu0
  %527 = vmatprep.mubr.f32.mxu0 0.0
  %528 = vmatmul.mubr.f32.gmra.mrb[0].mxu0 %v187
  %v529 = vpop.f32.mrb[0].mxu0
  %v530 = vadd.f32 %v139, %v529
  %v531 = vpop.f32.mrb[0].mxu0
  %532 = vmatprep.mubr.f32.mxu0 0.0
  %533 = vmatmul.mubr.f32.gmra.mrb[0].mxu0 %v190
  %v534 = vpop.f32.mrb[0].mxu0
  %v535 = vadd.f32 %v139, %v534
  %v536 = vpop.f32.mrb[0].mxu0
  %537 = vmatprep.mubr.f32.mxu0 0.0
  %538 = vmatmul.mubr.f32.gmra.mrb[0].mxu0 %v193
  %v539 = vpop.f32.mrb[0].mxu0
  %v540 = vadd.f32 %v139, %v539
  %v541 = vpop.f32.mrb[0].mxu0
  %542 = vmatprep.mubr.f32.mxu0 0.0
  %543 = vmatmul.mubr.f32.gmra.mrb[0].mxu0 %v196
  %v544 = vpop.f32.mrb[0].mxu0
  %v545 = vadd.f32 %v139, %v544
  %v546 = vpop.f32.mrb[0].mxu0
  %547 = vmatprep.mubr.f32.mxu0 0.0
  %548 = vmatmul.mubr.f32.gmra.mrb[0].mxu0 %v199
  %v549 = vpop.f32.mrb[0].mxu0
  %v550 = vadd.f32 %v139, %v549
  %v551 = vpop.f32.mrb[0].mxu0
  %552 = vmatprep.mubr.f32.mxu0 0.0
  %553 = vmatmul.mubr.f32.gmra.mrb[0].mxu0 %v202
  %v554 = vpop.f32.mrb[0].mxu0
  %v555 = vadd.f32 %v139, %v554
  %v556 = vpop.f32.mrb[0].mxu0
  %557 = vmatprep.mubr.f32.mxu0 0.0
  %558 = vmatmul.mubr.f32.gmra.mrb[0].mxu0 %v205
  %v559 = vpop.f32.mrb[0].mxu0
  %v560 = vadd.f32 %v139, %v559
  %v561 = vpop.f32.mrb[0].mxu0
  %562 = vmatprep.mubr.f32.mxu0 0.0
  %563 = vmatmul.mubr.f32.gmra.mrb[0].mxu0 %v208
  %v564 = vpop.f32.mrb[0].mxu0
  %v565 = vadd.f32 %v139, %v564
  %v566 = vpop.f32.mrb[0].mxu0
  %567 = vmatprep.mubr.f32.mxu0 0.0
  %568 = vmatmul.mubr.f32.gmra.mrb[0].mxu0 %v211
  %v569 = vpop.f32.mrb[0].mxu0
  %v570 = vadd.f32 %v139, %v569
  %v571 = vpop.f32.mrb[0].mxu0
  %572 = vmatprep.mubr.f32.mxu0 0.0
  %573 = vmatmul.mubr.f32.gmra.mrb[0].mxu0 %v214
  %v574 = vpop.f32.mrb[0].mxu0
  %v575 = vadd.f32 %v139, %v574
  %v576 = vpop.f32.mrb[0].mxu0
  %577 = vmatprep.mubr.f32.mxu0 0.0
  %578 = vmatmul.mubr.f32.gmra.mrb[0].mxu0 %v217
  %v579 = vpop.f32.mrb[0].mxu0
  %v580 = vadd.f32 %v139, %v579
  %v581 = vpop.f32.mrb[0].mxu0
  %582 = vmatprep.mubr.f32.mxu0 0.0
  %583 = vmatmul.mubr.f32.gmra.mrb[0].mxu0 %v220
  %v584 = vpop.f32.mrb[0].mxu0
  %v585 = vadd.f32 %v139, %v584
  %v586 = vpop.f32.mrb[0].mxu0
  %587 = vmatprep.mubr.f32.mxu0 0.0
  %588 = vmatmul.mubr.f32.gmra.mrb[0].mxu0 %v223
  %v589 = vpop.f32.mrb[0].mxu0
  %v590 = vadd.f32 %v139, %v589
  %v591 = vpop.f32.mrb[0].mxu0
  %592 = vmatprep.mubr.f32.mxu0 0.0
  %593 = vmatmul.mubr.f32.gmra.mrb[0].mxu0 %v226
  %v594 = vpop.f32.mrb[0].mxu0
  %v595 = vadd.f32 %v139, %v594
  %v596 = vpop.f32.mrb[0].mxu0
  %597 = vmatprep.mubr.f32.mxu0 0.0
  %598 = vmatmul.mubr.f32.gmra.mrb[0].mxu0 %v229
  %v599 = vpop.f32.mrb[0].mxu0
  %v600 = vadd.f32 %v139, %v599
  %v601 = vpop.f32.mrb[0].mxu0
  %602 = vmatprep.mubr.f32.mxu0 0.0
  %603 = vmatmul.mubr.f32.gmra.mrb[0].mxu0 %v232
  %v604 = vpop.f32.mrb[0].mxu0
  %v605 = vadd.f32 %v139, %v604
  %v606 = vpop.f32.mrb[0].mxu0
  %607 = vmatprep.mubr.f32.mxu0 0.0
  %608 = vmatmul.mubr.f32.gmra.mrb[0].mxu0 %v235
  %v609 = vpop.f32.mrb[0].mxu0
  %v610 = vadd.f32 %v139, %v609
  %v611 = vpop.f32.mrb[0].mxu0
  %612 = vmatprep.mubr.f32.mxu0 0.0
  %613 = vmatmul.mubr.f32.gmra.mrb[0].mxu0 %v238
  %v614 = vpop.f32.mrb[0].mxu0
  %v615 = vadd.f32 %v139, %v614
  %v616 = vpop.f32.mrb[0].mxu0
  %617 = vmatprep.mubr.f32.mxu0 0.0
  %618 = vmatmul.mubr.f32.gmra.mrb[0].mxu0 %v241
  %v619 = vpop.f32.mrb[0].mxu0
  %v620 = vadd.f32 %v139, %v619
  %v621 = vpop.f32.mrb[0].mxu0
  %622 = vmatprep.mubr.f32.mxu0 0.0
  %623 = vmatmul.mubr.f32.gmra.mrb[0].mxu0 %v244
  %v624 = vpop.f32.mrb[0].mxu0
  %v625 = vadd.f32 %v139, %v624
  %v626 = vpop.f32.mrb[0].mxu0
  %627 = vmatprep.mubr.f32.mxu0 0.0
  %628 = vmatmul.mubr.f32.gmra.mrb[0].mxu0 %v247
  %v629 = vpop.f32.mrb[0].mxu0
  %v630 = vadd.f32 %v139, %v629
  %v631 = vpop.f32.mrb[0].mxu0
  %632 = vmatprep.mubr.f32.mxu0 0.0
  %633 = vmatmul.mubr.f32.gmra.mrb[0].mxu0 %v250
  %v634 = vpop.f32.mrb[0].mxu0
  %v635 = vadd.f32 %v139, %v634
  %v636 = vpop.f32.mrb[0].mxu0
  %637 = vmatprep.mubr.f32.mxu0 0.0
  %638 = vmatmul.mubr.f32.gmra.mrb[0].mxu0 %v253
  %v639 = vpop.f32.mrb[0].mxu0
  %v640 = vadd.f32 %v139, %v639
  %v641 = vpop.f32.mrb[0].mxu0
  %642 = vmatprep.mubr.f32.mxu0 0.0
  %643 = vmatmul.mubr.f32.gmra.mrb[0].mxu0 %v256
  %v644 = vpop.f32.mrb[0].mxu0
  %v645 = vadd.f32 %v139, %v644
  %v646 = vpop.f32.mrb[0].mxu0
  %647 = vmatprep.mubr.f32.mxu0 0.0
  %648 = vmatmul.mubr.f32.gmra.mrb[0].mxu0 %v259
  %v649 = vpop.f32.mrb[0].mxu0
  %v650 = vadd.f32 %v139, %v649
  %v651 = vpop.f32.mrb[0].mxu0
  %652 = vmatprep.mubr.f32.mxu0 0.0
  %653 = vmatmul.mubr.f32.gmra.mrb[0].mxu0 %v262
  %v654 = vpop.f32.mrb[0].mxu0
  %v655 = vadd.f32 %v139, %v654
  %v656 = vpop.f32.mrb[0].mxu0
  %657 = vmatprep.mubr.f32.mxu0 0.0
  %658 = vmatmul.mubr.f32.gmra.mrb[0].mxu0 %v265
  %v659 = vpop.f32.mrb[0].mxu0
  %v660 = vadd.f32 %v139, %v659
  %v661 = vpop.f32.mrb[0].mxu0
  %662 = vmatprep.mubr.f32.mxu0 0.0
  %663 = vmatmul.mubr.f32.gmra.mrb[0].mxu0 %v268
  %v664 = vpop.f32.mrb[0].mxu0
  %v665 = vadd.f32 %v139, %v664
  %v666 = vpop.f32.mrb[0].mxu0
  %667 = vmatprep.mubr.f32.mxu0 0.0
  %668 = vmatmul.mubr.f32.gmra.mrb[0].mxu0 %v271
  %v669 = vpop.f32.mrb[0].mxu0
  %v670 = vadd.f32 %v139, %v669
  %v671 = vpop.f32.mrb[0].mxu0
  %672 = vmatprep.mubr.f32.mxu0 0.0
  %673 = vmatmul.mubr.f32.gmra.mrb[0].mxu0 %v274
  %v674 = vpop.f32.mrb[0].mxu0
  %v675 = vadd.f32 %v139, %v674
  %v676 = vpop.f32.mrb[0].mxu0
  %677 = vmatprep.mubr.f32.mxu0 0.0
  %678 = vmatmul.mubr.f32.gmra.mrb[0].mxu0 %v277
  %v679 = vpop.f32.mrb[0].mxu0
  %v680 = vadd.f32 %v139, %v679
  %v681 = vpop.f32.mrb[0].mxu0
  %682 = vmatprep.mubr.f32.mxu0 0.0
  %683 = vmatmul.mubr.f32.gmra.mrb[0].mxu0 %v280
  %v684 = vpop.f32.mrb[0].mxu0
  %v685 = vadd.f32 %v139, %v684
  %v686 = vpop.f32.mrb[0].mxu0
  %687 = vmatprep.mubr.f32.mxu0 0.0
  %688 = vmatmul.mubr.f32.gmra.mrb[0].mxu0 %v283
  %v689 = vpop.f32.mrb[0].mxu0
  %v690 = vadd.f32 %v139, %v689
  %v691 = vpop.f32.mrb[0].mxu0
  %692 = vmatprep.mubr.f32.mxu0 0.0
  %693 = vmatmul.mubr.f32.gmra.mrb[0].mxu0 %v286
  %v694 = vpop.f32.mrb[0].mxu0
  %v695 = vadd.f32 %v139, %v694
  %v696 = vpop.f32.mrb[0].mxu0
  %697 = vmatprep.mubr.f32.mxu0 0.0
  %698 = vmatmul.mubr.f32.gmra.mrb[0].mxu0 %v289
  %v699 = vpop.f32.mrb[0].mxu0
  %v700 = vadd.f32 %v139, %v699
  %v701 = vpop.f32.mrb[0].mxu0
  %702 = vmatprep.mubr.f32.mxu0 0.0
  %703 = vmatmul.mubr.f32.gmra.mrb[0].mxu0 %v292
  %v704 = vpop.f32.mrb[0].mxu0
  %v705 = vadd.f32 %v139, %v704
  %v706 = vpop.f32.mrb[0].mxu0
  %707 = vmatprep.mubr.f32.mxu0 0.0
  %708 = vmatmul.mubr.f32.gmra.mrb[0].mxu0 %v295
  %v709 = vpop.f32.mrb[0].mxu0
  %v710 = vadd.f32 %v139, %v709
  %v711 = vpop.f32.mrb[0].mxu0
  %712 = vmatprep.mubr.f32.mxu0 0.0
  %713 = vmatmul.mubr.f32.gmra.mrb[0].mxu0 %v298
  %v714 = vpop.f32.mrb[0].mxu0
  %v715 = vadd.f32 %v139, %v714
  %v716 = vpop.f32.mrb[0].mxu0
  %717 = vmatprep.mubr.f32.mxu0 0.0
  %718 = vmatmul.mubr.f32.gmra.mrb[0].mxu0 %v301
  %v719 = vpop.f32.mrb[0].mxu0
  %v720 = vadd.f32 %v139, %v719
  %v721 = vpop.f32.mrb[0].mxu0
  %722 = vmatprep.mubr.f32.mxu0 0.0
  %723 = vmatmul.mubr.f32.gmra.mrb[0].mxu0 %v304
  %v724 = vpop.f32.mrb[0].mxu0
  %v725 = vadd.f32 %v139, %v724
  %v726 = vpop.f32.mrb[0].mxu0
  %727 = vmatprep.mubr.f32.mxu0 0.0
  %728 = vmatmul.mubr.f32.gmra.mrb[0].mxu0 %v307
  %v729 = vpop.f32.mrb[0].mxu0
  %v730 = vadd.f32 %v139, %v729
  %v731 = vpop.f32.mrb[0].mxu0
  %732 = vmatprep.mubr.f32.mxu0 0.0
  %733 = vmatmul.mubr.f32.gmra.mrb[0].mxu0 %v310
  %v734 = vpop.f32.mrb[0].mxu0
  %v735 = vadd.f32 %v139, %v734
  %v736 = vpop.f32.mrb[0].mxu0
  %737 = vmatprep.mubr.f32.mxu0 0.0
  %738 = vmatmul.mubr.f32.gmra.mrb[0].mxu0 %v313
  %v739 = vpop.f32.mrb[0].mxu0
  %v740 = vadd.f32 %v139, %v739
  %v741 = vpop.f32.mrb[0].mxu0
  %742 = vmatprep.mubr.f32.mxu0 0.0
  %743 = vmatmul.mubr.f32.gmra.mrb[0].mxu0 %v316
  %v744 = vpop.f32.mrb[0].mxu0
  %v745 = vadd.f32 %v139, %v744
  %v746 = vpop.f32.mrb[0].mxu0
  %747 = vmatprep.mubr.f32.mxu0 0.0
  %748 = vmatmul.mubr.f32.gmra.mrb[0].mxu0 %v319
  %v749 = vpop.f32.mrb[0].mxu0
  %v750 = vadd.f32 %v139, %v749
  %v751 = vpop.f32.mrb[0].mxu0
  %752 = vmatprep.mubr.f32.mxu0 0.0
  %753 = vmatmul.mubr.f32.gmra.mrb[0].mxu0 %v322
  %v754 = vpop.f32.mrb[0].mxu0
  %v755 = vadd.f32 %v139, %v754
  %v756 = vpop.f32.mrb[0].mxu0
  %757 = vmatprep.mubr.f32.mxu0 0.0
  %758 = vmatmul.mubr.f32.gmra.mrb[0].mxu0 %v325
  %v759 = vpop.f32.mrb[0].mxu0
  %v760 = vadd.f32 %v139, %v759
  %v761 = vpop.f32.mrb[0].mxu0
  %762 = vmatprep.mubr.f32.mxu0 0.0
  %763 = vmatmul.mubr.f32.gmra.mrb[0].mxu0 %v328
  %v764 = vpop.f32.mrb[0].mxu0
  %v765 = vadd.f32 %v139, %v764
  %v766 = vpop.f32.mrb[0].mxu0
  %767 = vmatprep.mubr.f32.mxu0 0.0
  %768 = vmatmul.mubr.f32.gmra.mrb[0].mxu0 %v331
  %v769 = vpop.f32.mrb[0].mxu0
  %v770 = vadd.f32 %v139, %v769
  %v771 = vpop.f32.mrb[0].mxu0
  %772 = vmatprep.mubr.f32.mxu0 0.0
  %773 = vmatmul.mubr.f32.gmra.mrb[0].mxu0 %v334
  %v774 = vpop.f32.mrb[0].mxu0
  %v775 = vadd.f32 %v139, %v774
  %v776 = vpop.f32.mrb[0].mxu0
  %777 = vmatprep.mubr.f32.mxu0 0.0
  %778 = vmatmul.mubr.f32.gmra.mrb[0].mxu0 %v337
  %v779 = vpop.f32.mrb[0].mxu0
  %v780 = vadd.f32 %v139, %v779
  %v781 = vpop.f32.mrb[0].mxu0
  %782 = vmatprep.mubr.f32.mxu0 0.0
  %783 = vmatmul.mubr.f32.gmra.mrb[0].mxu0 %v340
  %v784 = vpop.f32.mrb[0].mxu0
  %v785 = vadd.f32 %v139, %v784
  %v786 = vpop.f32.mrb[0].mxu0
  %787 = vmatprep.mubr.f32.mxu0 0.0
  %788 = vmatmul.mubr.f32.gmra.mrb[0].mxu0 %v343
  %v789 = vpop.f32.mrb[0].mxu0
  %v790 = vadd.f32 %v139, %v789
  %v791 = vpop.f32.mrb[0].mxu0
  %792 = vmatprep.mubr.f32.mxu0 0.0
  %793 = vmatmul.mubr.f32.gmra.mrb[0].mxu0 %v346
  %v794 = vpop.f32.mrb[0].mxu0
  %v795 = vadd.f32 %v139, %v794
  %v796 = vpop.f32.mrb[0].mxu0
  %797 = vmatprep.mubr.f32.mxu0 0.0
  %798 = vmatmul.mubr.f32.gmra.mrb[0].mxu0 %v349
  %v799 = vpop.f32.mrb[0].mxu0
  %v800 = vadd.f32 %v139, %v799
  %v801 = vpop.f32.mrb[0].mxu0
  %802 = vmatprep.mubr.f32.mxu0 0.0
  %803 = vmatmul.mubr.f32.gmra.mrb[0].mxu0 %v352
  %v804 = vpop.f32.mrb[0].mxu0
  %v805 = vadd.f32 %v139, %v804
  %v806 = vpop.f32.mrb[0].mxu0
  %807 = vmatprep.mubr.f32.mxu0 0.0
  %808 = vmatmul.mubr.f32.gmra.mrb[0].mxu0 %v355
  %v809 = vpop.f32.mrb[0].mxu0
  %v810 = vadd.f32 %v139, %v809
  %v811 = vpop.f32.mrb[0].mxu0
  %812 = vmatprep.mubr.f32.mxu0 0.0
  %813 = vmatmul.mubr.f32.gmra.mrb[0].mxu0 %v358
  %v814 = vpop.f32.mrb[0].mxu0
  %v815 = vadd.f32 %v139, %v814
  %v816 = vpop.f32.mrb[0].mxu0
  %817 = vmatprep.mubr.f32.mxu0 0.0
  %818 = vmatmul.mubr.f32.gmra.mrb[0].mxu0 %v361
  %v819 = vpop.f32.mrb[0].mxu0
  %v820 = vadd.f32 %v139, %v819
  %v821 = vpop.f32.mrb[0].mxu0
  %822 = vmatprep.mubr.f32.mxu0 0.0
  %823 = vmatmul.mubr.f32.gmra.mrb[0].mxu0 %v364
  %v824 = vpop.f32.mrb[0].mxu0
  %v825 = vadd.f32 %v139, %v824
  %v826 = vpop.f32.mrb[0].mxu0
  %827 = vmatprep.mubr.f32.mxu0 0.0
  %828 = vmatmul.mubr.f32.gmra.mrb[0].mxu0 %v367
  %v829 = vpop.f32.mrb[0].mxu0
  %v830 = vadd.f32 %v139, %v829
  %v831 = vpop.f32.mrb[0].mxu0
  %832 = vmatprep.mubr.f32.mxu0 0.0
  %833 = vmatmul.mubr.f32.gmra.mrb[0].mxu0 %v370
  %v834 = vpop.f32.mrb[0].mxu0
  %v835 = vadd.f32 %v139, %v834
  %v836 = vpop.f32.mrb[0].mxu0
  %837 = vmatprep.mubr.f32.mxu0 0.0
  %838 = vmatmul.mubr.f32.gmra.mrb[0].mxu0 %v373
  %v839 = vpop.f32.mrb[0].mxu0
  %v840 = vadd.f32 %v139, %v839
  %v841 = vpop.f32.mrb[0].mxu0
  %842 = vmatprep.mubr.f32.mxu0 0.0
  %843 = vmatmul.mubr.f32.gmra.mrb[0].mxu0 %v376
  %v844 = vpop.f32.mrb[0].mxu0
  %v845 = vadd.f32 %v139, %v844
  %v846 = vpop.f32.mrb[0].mxu0
  %847 = vmatprep.mubr.f32.mxu0 0.0
  %848 = vmatmul.mubr.f32.gmra.mrb[0].mxu0 %v379
  %v849 = vpop.f32.mrb[0].mxu0
  %v850 = vadd.f32 %v139, %v849
  %v851 = vpop.f32.mrb[0].mxu0
  %852 = vmatprep.mubr.f32.mxu0 0.0
  %853 = vmatmul.mubr.f32.gmra.mrb[0].mxu0 %v382
  %v854 = vpop.f32.mrb[0].mxu0
  %v855 = vadd.f32 %v139, %v854
  %v856 = vpop.f32.mrb[0].mxu0
  %857 = vdwg.mxu0
  %vm858 = vcmp.ge.f32.partialorder %v455, 0.0
  %vm859 = vcmp.ge.f32.partialorder %v460, 0.0
  %vm860 = vcmp.ge.f32.partialorder %v465, 0.0
  %vm861 = vcmp.ge.f32.partialorder %v470, 0.0
  %vm862 = vcmp.ge.f32.partialorder %v475, 0.0
  %vm863 = vcmp.ge.f32.partialorder %v480, 0.0
  %vm864 = vcmp.ge.f32.partialorder %v485, 0.0
  %vm865 = vcmp.ge.f32.partialorder %v490, 0.0
  %vm866 = vcmp.ge.f32.partialorder %v495, 0.0
  %vm867 = vcmp.ge.f32.partialorder %v500, 0.0
  %vm868 = vcmp.ge.f32.partialorder %v505, 0.0
  %vm869 = vcmp.ge.f32.partialorder %v510, 0.0
  %vm870 = vcmp.ge.f32.partialorder %v515, 0.0
  %vm871 = vcmp.ge.f32.partialorder %v520, 0.0
  %vm872 = vcmp.ge.f32.partialorder %v525, 0.0
  %vm873 = vcmp.ge.f32.partialorder %v530, 0.0
  %vm874 = vcmp.ge.f32.partialorder %v535, 0.0
  %vm875 = vcmp.ge.f32.partialorder %v540, 0.0
  %vm876 = vcmp.ge.f32.partialorder %v545, 0.0
  %vm877 = vcmp.ge.f32.partialorder %v550, 0.0
  %vm878 = vcmp.ge.f32.partialorder %v555, 0.0
  %vm879 = vcmp.ge.f32.partialorder %v560, 0.0
  %vm880 = vcmp.ge.f32.partialorder %v565, 0.0
  %vm881 = vcmp.ge.f32.partialorder %v570, 0.0
  %vm882 = vcmp.ge.f32.partialorder %v575, 0.0
  %vm883 = vcmp.ge.f32.partialorder %v580, 0.0
  %vm884 = vcmp.ge.f32.partialorder %v585, 0.0
  %vm885 = vcmp.ge.f32.partialorder %v590, 0.0
  %vm886 = vcmp.ge.f32.partialorder %v595, 0.0
  %vm887 = vcmp.ge.f32.partialorder %v600, 0.0
  %vm888 = vcmp.ge.f32.partialorder %v605, 0.0
  %vm889 = vcmp.ge.f32.partialorder %v610, 0.0
  %vm890 = vcmp.ge.f32.partialorder %v615, 0.0
  %vm891 = vcmp.ge.f32.partialorder %v620, 0.0
  %vm892 = vcmp.ge.f32.partialorder %v625, 0.0
  %vm893 = vcmp.ge.f32.partialorder %v630, 0.0
  %vm894 = vcmp.ge.f32.partialorder %v635, 0.0
  %vm895 = vcmp.ge.f32.partialorder %v640, 0.0
  %vm896 = vcmp.ge.f32.partialorder %v645, 0.0
  %vm897 = vcmp.ge.f32.partialorder %v650, 0.0
  %vm898 = vcmp.ge.f32.partialorder %v655, 0.0
  %vm899 = vcmp.ge.f32.partialorder %v660, 0.0
  %vm900 = vcmp.ge.f32.partialorder %v665, 0.0
  %vm901 = vcmp.ge.f32.partialorder %v670, 0.0
  %vm902 = vcmp.ge.f32.partialorder %v675, 0.0
  %vm903 = vcmp.ge.f32.partialorder %v680, 0.0
  %vm904 = vcmp.ge.f32.partialorder %v685, 0.0
  %vm905 = vcmp.ge.f32.partialorder %v690, 0.0
  %vm906 = vcmp.ge.f32.partialorder %v695, 0.0
  %vm907 = vcmp.ge.f32.partialorder %v700, 0.0
  %vm908 = vcmp.ge.f32.partialorder %v705, 0.0
  %vm909 = vcmp.ge.f32.partialorder %v710, 0.0
  %vm910 = vcmp.ge.f32.partialorder %v715, 0.0
  %vm911 = vcmp.ge.f32.partialorder %v720, 0.0
  %vm912 = vcmp.ge.f32.partialorder %v725, 0.0
  %vm913 = vcmp.ge.f32.partialorder %v730, 0.0
  %vm914 = vcmp.ge.f32.partialorder %v735, 0.0
  %vm915 = vcmp.ge.f32.partialorder %v740, 0.0
  %vm916 = vcmp.ge.f32.partialorder %v745, 0.0
  %vm917 = vcmp.ge.f32.partialorder %v750, 0.0
  %vm918 = vcmp.ge.f32.partialorder %v755, 0.0
  %vm919 = vcmp.ge.f32.partialorder %v760, 0.0
  %vm920 = vcmp.ge.f32.partialorder %v765, 0.0
  %vm921 = vcmp.ge.f32.partialorder %v770, 0.0
  %vm922 = vcmp.ge.f32.partialorder %v775, 0.0
  %vm923 = vcmp.ge.f32.partialorder %v780, 0.0
  %vm924 = vcmp.ge.f32.partialorder %v785, 0.0
  %vm925 = vcmp.ge.f32.partialorder %v790, 0.0
  %vm926 = vcmp.ge.f32.partialorder %v795, 0.0
  %vm927 = vcmp.ge.f32.partialorder %v800, 0.0
  %vm928 = vcmp.ge.f32.partialorder %v805, 0.0
  %vm929 = vcmp.ge.f32.partialorder %v810, 0.0
  %vm930 = vcmp.ge.f32.partialorder %v815, 0.0
  %vm931 = vcmp.ge.f32.partialorder %v820, 0.0
  %vm932 = vcmp.ge.f32.partialorder %v825, 0.0
  %vm933 = vcmp.ge.f32.partialorder %v830, 0.0
  %vm934 = vcmp.ge.f32.partialorder %v835, 0.0
  %vm935 = vcmp.ge.f32.partialorder %v840, 0.0
  %vm936 = vcmp.ge.f32.partialorder %v845, 0.0
  %vm937 = vcmp.ge.f32.partialorder %v850, 0.0
  %vm938 = vcmp.ge.f32.partialorder %v855, 0.0
  %v939 = vmul.f32 %v455, 0.01
  %v940 = vmul.f32 %v460, 0.01
  %v941 = vmul.f32 %v465, 0.01
  %v942 = vmul.f32 %v470, 0.01
  %v943 = vmul.f32 %v475, 0.01
  %v944 = vmul.f32 %v480, 0.01
  %v945 = vmul.f32 %v485, 0.01
  %v946 = vmul.f32 %v490, 0.01
  %v947 = vmul.f32 %v495, 0.01
  %v948 = vmul.f32 %v500, 0.01
  %v949 = vmul.f32 %v505, 0.01
  %v950 = vmul.f32 %v510, 0.01
  %v951 = vmul.f32 %v515, 0.01
  %v952 = vmul.f32 %v520, 0.01
  %v953 = vmul.f32 %v525, 0.01
  %v954 = vmul.f32 %v530, 0.01
  %v955 = vmul.f32 %v535, 0.01
  %v956 = vmul.f32 %v540, 0.01
  %v957 = vmul.f32 %v545, 0.01
  %v958 = vmul.f32 %v550, 0.01
  %v959 = vmul.f32 %v555, 0.01
  %v960 = vmul.f32 %v560, 0.01
  %v961 = vmul.f32 %v565, 0.01
  %v962 = vmul.f32 %v570, 0.01
  %v963 = vmul.f32 %v575, 0.01
  %v964 = vmul.f32 %v580, 0.01
  %v965 = vmul.f32 %v585, 0.01
  %v966 = vmul.f32 %v590, 0.01
  %v967 = vmul.f32 %v595, 0.01
  %v968 = vmul.f32 %v600, 0.01
  %v969 = vmul.f32 %v605, 0.01
  %v970 = vmul.f32 %v610, 0.01
  %v971 = vmul.f32 %v615, 0.01
  %v972 = vmul.f32 %v620, 0.01
  %v973 = vmul.f32 %v625, 0.01
  %v974 = vmul.f32 %v630, 0.01
  %v975 = vmul.f32 %v635, 0.01
  %v976 = vmul.f32 %v640, 0.01
  %v977 = vmul.f32 %v645, 0.01
  %v978 = vmul.f32 %v650, 0.01
  %v979 = vmul.f32 %v655, 0.01
  %v980 = vmul.f32 %v660, 0.01
  %v981 = vmul.f32 %v665, 0.01
  %v982 = vmul.f32 %v670, 0.01
  %v983 = vmul.f32 %v675, 0.01
  %v984 = vmul.f32 %v680, 0.01
  %v985 = vmul.f32 %v685, 0.01
  %v986 = vmul.f32 %v690, 0.01
  %v987 = vmul.f32 %v695, 0.01
  %v988 = vmul.f32 %v700, 0.01
  %v989 = vmul.f32 %v705, 0.01
  %v990 = vmul.f32 %v710, 0.01
  %v991 = vmul.f32 %v715, 0.01
  %v992 = vmul.f32 %v720, 0.01
  %v993 = vmul.f32 %v725, 0.01
  %v994 = vmul.f32 %v730, 0.01
  %v995 = vmul.f32 %v735, 0.01
  %v996 = vmul.f32 %v740, 0.01
  %v997 = vmul.f32 %v745, 0.01
  %v998 = vmul.f32 %v750, 0.01
  %v999 = vmul.f32 %v755, 0.01
  %v1000 = vmul.f32 %v760, 0.01
  %v1001 = vmul.f32 %v765, 0.01
  %v1002 = vmul.f32 %v770, 0.01
  %v1003 = vmul.f32 %v775, 0.01
  %v1004 = vmul.f32 %v780, 0.01
  %v1005 = vmul.f32 %v785, 0.01
  %v1006 = vmul.f32 %v790, 0.01
  %v1007 = vmul.f32 %v795, 0.01
  %v1008 = vmul.f32 %v800, 0.01
  %v1009 = vmul.f32 %v805, 0.01
  %v1010 = vmul.f32 %v810, 0.01
  %v1011 = vmul.f32 %v815, 0.01
  %v1012 = vmul.f32 %v820, 0.01
  %v1013 = vmul.f32 %v825, 0.01
  %v1014 = vmul.f32 %v830, 0.01
  %v1015 = vmul.f32 %v835, 0.01
  %v1016 = vmul.f32 %v840, 0.01
  %v1017 = vmul.f32 %v845, 0.01
  %v1018 = vmul.f32 %v850, 0.01
  %v1019 = vmul.f32 %v855, 0.01
  %v1020 = vsel %vm858, %v455, %v939
  %v1021 = vsel %vm859, %v460, %v940
  %v1022 = vsel %vm860, %v465, %v941
  %v1023 = vsel %vm861, %v470, %v942
  %v1024 = vsel %vm862, %v475, %v943
  %v1025 = vsel %vm863, %v480, %v944
  %v1026 = vsel %vm864, %v485, %v945
  %v1027 = vsel %vm865, %v490, %v946
  %v1028 = vsel %vm866, %v495, %v947
  %v1029 = vsel %vm867, %v500, %v948
  %v1030 = vsel %vm868, %v505, %v949
  %v1031 = vsel %vm869, %v510, %v950
  %v1032 = vsel %vm870, %v515, %v951
  %v1033 = vsel %vm871, %v520, %v952
  %v1034 = vsel %vm872, %v525, %v953
  %v1035 = vsel %vm873, %v530, %v954
  %v1036 = vsel %vm874, %v535, %v955
  %v1037 = vsel %vm875, %v540, %v956
  %v1038 = vsel %vm876, %v545, %v957
  %v1039 = vsel %vm877, %v550, %v958
  %v1040 = vsel %vm878, %v555, %v959
  %v1041 = vsel %vm879, %v560, %v960
  %v1042 = vsel %vm880, %v565, %v961
  %v1043 = vsel %vm881, %v570, %v962
  %v1044 = vsel %vm882, %v575, %v963
  %v1045 = vsel %vm883, %v580, %v964
  %v1046 = vsel %vm884, %v585, %v965
  %v1047 = vsel %vm885, %v590, %v966
  %v1048 = vsel %vm886, %v595, %v967
  %v1049 = vsel %vm887, %v600, %v968
  %v1050 = vsel %vm888, %v605, %v969
  %v1051 = vsel %vm889, %v610, %v970
  %v1052 = vsel %vm890, %v615, %v971
  %v1053 = vsel %vm891, %v620, %v972
  %v1054 = vsel %vm892, %v625, %v973
  %v1055 = vsel %vm893, %v630, %v974
  %v1056 = vsel %vm894, %v635, %v975
  %v1057 = vsel %vm895, %v640, %v976
  %v1058 = vsel %vm896, %v645, %v977
  %v1059 = vsel %vm897, %v650, %v978
  %v1060 = vsel %vm898, %v655, %v979
  %v1061 = vsel %vm899, %v660, %v980
  %v1062 = vsel %vm900, %v665, %v981
  %v1063 = vsel %vm901, %v670, %v982
  %v1064 = vsel %vm902, %v675, %v983
  %v1065 = vsel %vm903, %v680, %v984
  %v1066 = vsel %vm904, %v685, %v985
  %v1067 = vsel %vm905, %v690, %v986
  %v1068 = vsel %vm906, %v695, %v987
  %v1069 = vsel %vm907, %v700, %v988
  %v1070 = vsel %vm908, %v705, %v989
  %v1071 = vsel %vm909, %v710, %v990
  %v1072 = vsel %vm910, %v715, %v991
  %v1073 = vsel %vm911, %v720, %v992
  %v1074 = vsel %vm912, %v725, %v993
  %v1075 = vsel %vm913, %v730, %v994
  %v1076 = vsel %vm914, %v735, %v995
  %v1077 = vsel %vm915, %v740, %v996
  %v1078 = vsel %vm916, %v745, %v997
  %v1079 = vsel %vm917, %v750, %v998
  %v1080 = vsel %vm918, %v755, %v999
  %v1081 = vsel %vm919, %v760, %v1000
  %v1082 = vsel %vm920, %v765, %v1001
  %v1083 = vsel %vm921, %v770, %v1002
  %v1084 = vsel %vm922, %v775, %v1003
  %v1085 = vsel %vm923, %v780, %v1004
  %v1086 = vsel %vm924, %v785, %v1005
  %v1087 = vsel %vm925, %v790, %v1006
  %v1088 = vsel %vm926, %v795, %v1007
  %v1089 = vsel %vm927, %v800, %v1008
  %v1090 = vsel %vm928, %v805, %v1009
  %v1091 = vsel %vm929, %v810, %v1010
  %v1092 = vsel %vm930, %v815, %v1011
  %v1093 = vsel %vm931, %v820, %v1012
  %v1094 = vsel %vm932, %v825, %v1013
  %v1095 = vsel %vm933, %v830, %v1014
  %v1096 = vsel %vm934, %v835, %v1015
  %v1097 = vsel %vm935, %v840, %v1016
  %v1098 = vsel %vm936, %v845, %v1017
  %v1099 = vsel %vm937, %v850, %v1018
  %v1100 = vsel %vm938, %v855, %v1019
  %vm1101 = vcmask 64512
  %v1103 = vsel %vm1101, %v1029, 0
  %v1106 = vsel %vm1101, %v1030, 0
  %v1109 = vsel %vm1101, %v1031, 0
  %v1112 = vsel %vm1101, %v1032, 0
  %v1115 = vsel %vm1101, %v1033, 0
  %v1118 = vsel %vm1101, %v1034, 0
  %v1121 = vsel %vm1101, %v1035, 0
  %v1124 = vsel %vm1101, %v1036, 0
  %v1127 = vsel %vm1101, %v1037, 0
  %1129 = vmatprep.subr.mxu0 0.0
  %1130 = vmatpush1.msra.mxu0 %v101
  %1131 = vmatprep.subr.mxu0 0.0
  %1132 = vmatpush1.msra.mxu0 0.0
  %1133 = vmatprep.subr.mxu0 0.0
  %1134 = vmatpush1.msra.mxu0 0.0
  %1135 = vmatprep.subr.mxu0 0.0
  %1136 = vmatpush1.msra.mxu0 0.0
  %1137 = vmatprep.subr.mxu0 0.0
  %1138 = vmatpush1.msra.mxu0 0.0
  %1139 = vmatprep.subr.mxu0 0.0
  %1140 = vmatpush1.msra.mxu0 0.0
  %1141 = vmatprep.subr.mxu0 0.0
  %1142 = vmatpush1.msra.mxu0 0.0
  %1143 = vmatprep.subr.mxu0 0.0
  %1144 = vmatpush1.msra.mxu0 0.0
  %1145 = vmatprep.subr.mxu0 0.0
  %1146 = vmatpush1.msra.mxu0 0.0
  %1147 = vmatprep.subr.mxu0 0.0
  %1148 = vmatpush1.msra.mxu0 0.0
  %1149 = vmatprep.subr.mxu0 0.0
  %1150 = vmatpush1.msra.mxu0 0.0
  %1151 = vmatprep.subr.mxu0 0.0
  %1152 = vmatpush1.msra.mxu0 0.0
  %1153 = vmatprep.subr.mxu0 0.0
  %1154 = vmatpush1.msra.mxu0 0.0
  %1155 = vmatprep.subr.mxu0 0.0
  %1156 = vmatpush1.msra.mxu0 0.0
  %1157 = vmatprep.subr.mxu0 0.0
  %1158 = vmatpush1.msra.mxu0 0.0
  %1159 = vmatprep.subr.mxu0 0.0
  %1160 = vmatpush1.msra.mxu0 0.0
  %1161 = vmatprep.subr.mxu0 0.0
  %1162 = vmatpush1.msra.mxu0 0.0
  %1163 = vmatprep.subr.mxu0 0.0
  %1164 = vmatpush1.msra.mxu0 0.0
  %1165 = vmatprep.subr.mxu0 0.0
  %1166 = vmatpush1.msra.mxu0 0.0
  %1167 = vmatprep.subr.mxu0 0.0
  %1168 = vmatpush1.msra.mxu0 0.0
  %1169 = vmatprep.subr.mxu0 0.0
  %1170 = vmatpush1.msra.mxu0 0.0
  %1171 = vmatprep.subr.mxu0 0.0
  %1172 = vmatpush1.msra.mxu0 0.0
  %1173 = vmatprep.subr.mxu0 0.0
  %1174 = vmatpush1.msra.mxu0 0.0
  %1175 = vmatprep.subr.mxu0 0.0
  %1176 = vmatpush1.msra.mxu0 0.0
  %1177 = vmatprep.subr.mxu0 0.0
  %1178 = vmatpush1.msra.mxu0 0.0
  %1179 = vmatprep.subr.mxu0 0.0
  %1180 = vmatpush1.msra.mxu0 0.0
  %1181 = vmatprep.subr.mxu0 0.0
  %1182 = vmatpush1.msra.mxu0 0.0
  %1183 = vmatprep.subr.mxu0 0.0
  %1184 = vmatpush1.msra.mxu0 0.0
  %1185 = vmatprep.subr.mxu0 0.0
  %1186 = vmatpush1.msra.mxu0 0.0
  %1187 = vmatprep.subr.mxu0 0.0
  %1188 = vmatpush1.msra.mxu0 0.0
  %1189 = vmatprep.subr.mxu0 0.0
  %1190 = vmatpush1.msra.mxu0 0.0
  %1191 = vmatprep.subr.mxu0 0.0
  %1192 = vmatpush1.msra.mxu0 0.0
  %1193 = vmatprep.mubr.f32.mxu0 0.0
  %1194 = vmatmul.mubr.f32.gmra.mrb[0].mxu0 %v1103
  %v1195 = vpop.f32.mrb[0].mxu0
  %v1196 = vadd.f32 0.0, %v1195
  %v1197 = vpop.f32.mrb[0].mxu0
  %1198 = vmatprep.mubr.f32.mxu0 0.0
  %1199 = vmatmul.mubr.f32.gmra.mrb[0].mxu0 %v1106
  %v1200 = vpop.f32.mrb[0].mxu0
  %v1201 = vadd.f32 0.0, %v1200
  %v1202 = vpop.f32.mrb[0].mxu0
  %1203 = vmatprep.mubr.f32.mxu0 0.0
  %1204 = vmatmul.mubr.f32.gmra.mrb[0].mxu0 %v1109
  %v1205 = vpop.f32.mrb[0].mxu0
  %v1206 = vadd.f32 0.0, %v1205
  %v1207 = vpop.f32.mrb[0].mxu0
  %1208 = vmatprep.mubr.f32.mxu0 0.0
  %1209 = vmatmul.mubr.f32.gmra.mrb[0].mxu0 %v1112
  %v1210 = vpop.f32.mrb[0].mxu0
  %v1211 = vadd.f32 0.0, %v1210
  %v1212 = vpop.f32.mrb[0].mxu0
  %1213 = vmatprep.mubr.f32.mxu0 0.0
  %1214 = vmatmul.mubr.f32.gmra.mrb[0].mxu0 %v1115
  %v1215 = vpop.f32.mrb[0].mxu0
  %v1216 = vadd.f32 0.0, %v1215
  %v1217 = vpop.f32.mrb[0].mxu0
  %1218 = vmatprep.mubr.f32.mxu0 0.0
  %1219 = vmatmul.mubr.f32.gmra.mrb[0].mxu0 %v1118
  %v1220 = vpop.f32.mrb[0].mxu0
  %v1221 = vadd.f32 0.0, %v1220
  %v1222 = vpop.f32.mrb[0].mxu0
  %1223 = vmatprep.mubr.f32.mxu0 0.0
  %1224 = vmatmul.mubr.f32.gmra.mrb[0].mxu0 %v1121
  %v1225 = vpop.f32.mrb[0].mxu0
  %v1226 = vadd.f32 0.0, %v1225
  %v1227 = vpop.f32.mrb[0].mxu0
  %1228 = vmatprep.mubr.f32.mxu0 0.0
  %1229 = vmatmul.mubr.f32.gmra.mrb[0].mxu0 %v1124
  %v1230 = vpop.f32.mrb[0].mxu0
  %v1231 = vadd.f32 0.0, %v1230
  %v1232 = vpop.f32.mrb[0].mxu0
  %1233 = vmatprep.mubr.f32.mxu0 0.0
  %1234 = vmatmul.mubr.f32.gmra.mrb[0].mxu0 %v1127
  %v1235 = vpop.f32.mrb[0].mxu0
  %v1236 = vadd.f32 0.0, %v1235
  %v1237 = vpop.f32.mrb[0].mxu0
  %1238 = vdwg.mxu0
  %v1240 = vsel %vm1101, %v1020, 0
  %v1243 = vsel %vm1101, %v1021, 0
  %v1246 = vsel %vm1101, %v1022, 0
  %v1249 = vsel %vm1101, %v1023, 0
  %v1252 = vsel %vm1101, %v1024, 0
  %v1255 = vsel %vm1101, %v1025, 0
  %v1258 = vsel %vm1101, %v1026, 0
  %v1261 = vsel %vm1101, %v1027, 0
  %v1264 = vsel %vm1101, %v1028, 0
  %1266 = vmatprep.subr.mxu0 0.0
  %1267 = vmatpush1.msra.mxu0 %v100
  %1268 = vmatprep.subr.mxu0 0.0
  %1269 = vmatpush1.msra.mxu0 0.0
  %1270 = vmatprep.subr.mxu0 0.0
  %1271 = vmatpush1.msra.mxu0 0.0
  %1272 = vmatprep.subr.mxu0 0.0
  %1273 = vmatpush1.msra.mxu0 0.0
  %1274 = vmatprep.subr.mxu0 0.0
  %1275 = vmatpush1.msra.mxu0 0.0
  %1276 = vmatprep.subr.mxu0 0.0
  %1277 = vmatpush1.msra.mxu0 0.0
  %1278 = vmatprep.subr.mxu0 0.0
  %1279 = vmatpush1.msra.mxu0 0.0
  %1280 = vmatprep.subr.mxu0 0.0
  %1281 = vmatpush1.msra.mxu0 0.0
  %1282 = vmatprep.subr.mxu0 0.0
  %1283 = vmatpush1.msra.mxu0 0.0
  %1284 = vmatprep.subr.mxu0 0.0
  %1285 = vmatpush1.msra.mxu0 0.0
  %1286 = vmatprep.subr.mxu0 0.0
  %1287 = vmatpush1.msra.mxu0 0.0
  %1288 = vmatprep.subr.mxu0 0.0
  %1289 = vmatpush1.msra.mxu0 0.0
  %1290 = vmatprep.subr.mxu0 0.0
  %1291 = vmatpush1.msra.mxu0 0.0
  %1292 = vmatprep.subr.mxu0 0.0
  %1293 = vmatpush1.msra.mxu0 0.0
  %1294 = vmatprep.subr.mxu0 0.0
  %1295 = vmatpush1.msra.mxu0 0.0
  %1296 = vmatprep.subr.mxu0 0.0
  %1297 = vmatpush1.msra.mxu0 0.0
  %1298 = vmatprep.subr.mxu0 0.0
  %1299 = vmatpush1.msra.mxu0 0.0
  %1300 = vmatprep.subr.mxu0 0.0
  %1301 = vmatpush1.msra.mxu0 0.0
  %1302 = vmatprep.subr.mxu0 0.0
  %1303 = vmatpush1.msra.mxu0 0.0
  %1304 = vmatprep.subr.mxu0 0.0
  %1305 = vmatpush1.msra.mxu0 0.0
  %1306 = vmatprep.subr.mxu0 0.0
  %1307 = vmatpush1.msra.mxu0 0.0
  %1308 = vmatprep.subr.mxu0 0.0
  %1309 = vmatpush1.msra.mxu0 0.0
  %1310 = vmatprep.subr.mxu0 0.0
  %1311 = vmatpush1.msra.mxu0 0.0
  %1312 = vmatprep.subr.mxu0 0.0
  %1313 = vmatpush1.msra.mxu0 0.0
  %1314 = vmatprep.subr.mxu0 0.0
  %1315 = vmatpush1.msra.mxu0 0.0
  %1316 = vmatprep.subr.mxu0 0.0
  %1317 = vmatpush1.msra.mxu0 0.0
  %1318 = vmatprep.subr.mxu0 0.0
  %1319 = vmatpush1.msra.mxu0 0.0
  %1320 = vmatprep.subr.mxu0 0.0
  %1321 = vmatpush1.msra.mxu0 0.0
  %1322 = vmatprep.subr.mxu0 0.0
  %1323 = vmatpush1.msra.mxu0 0.0
  %1324 = vmatprep.subr.mxu0 0.0
  %1325 = vmatpush1.msra.mxu0 0.0
  %1326 = vmatprep.subr.mxu0 0.0
  %1327 = vmatpush1.msra.mxu0 0.0
  %1328 = vmatprep.subr.mxu0 0.0
  %1329 = vmatpush1.msra.mxu0 0.0
  %1330 = vmatprep.mubr.f32.mxu0 0.0
  %1331 = vmatmul.mubr.f32.gmra.mrb[0].mxu0 %v1240
  %v1332 = vpop.f32.mrb[0].mxu0
  %v1333 = vadd.f32 %v1196, %v1332
  %v1334 = vpop.f32.mrb[0].mxu0
  %1335 = vmatprep.mubr.f32.mxu0 0.0
  %1336 = vmatmul.mubr.f32.gmra.mrb[0].mxu0 %v1243
  %v1337 = vpop.f32.mrb[0].mxu0
  %v1338 = vadd.f32 %v1201, %v1337
  %v1339 = vpop.f32.mrb[0].mxu0
  %1340 = vmatprep.mubr.f32.mxu0 0.0
  %1341 = vmatmul.mubr.f32.gmra.mrb[0].mxu0 %v1246
  %v1342 = vpop.f32.mrb[0].mxu0
  %v1343 = vadd.f32 %v1206, %v1342
  %v1344 = vpop.f32.mrb[0].mxu0
  %1345 = vmatprep.mubr.f32.mxu0 0.0
  %1346 = vmatmul.mubr.f32.gmra.mrb[0].mxu0 %v1249
  %v1347 = vpop.f32.mrb[0].mxu0
  %v1348 = vadd.f32 %v1211, %v1347
  %v1349 = vpop.f32.mrb[0].mxu0
  %1350 = vmatprep.mubr.f32.mxu0 0.0
  %1351 = vmatmul.mubr.f32.gmra.mrb[0].mxu0 %v1252
  %v1352 = vpop.f32.mrb[0].mxu0
  %v1353 = vadd.f32 %v1216, %v1352
  %v1354 = vpop.f32.mrb[0].mxu0
  %1355 = vmatprep.mubr.f32.mxu0 0.0
  %1356 = vmatmul.mubr.f32.gmra.mrb[0].mxu0 %v1255
  %v1357 = vpop.f32.mrb[0].mxu0
  %v1358 = vadd.f32 %v1221, %v1357
  %v1359 = vpop.f32.mrb[0].mxu0
  %1360 = vmatprep.mubr.f32.mxu0 0.0
  %1361 = vmatmul.mubr.f32.gmra.mrb[0].mxu0 %v1258
  %v1362 = vpop.f32.mrb[0].mxu0
  %v1363 = vadd.f32 %v1226, %v1362
  %v1364 = vpop.f32.mrb[0].mxu0
  %1365 = vmatprep.mubr.f32.mxu0 0.0
  %1366 = vmatmul.mubr.f32.gmra.mrb[0].mxu0 %v1261
  %v1367 = vpop.f32.mrb[0].mxu0
  %v1368 = vadd.f32 %v1231, %v1367
  %v1369 = vpop.f32.mrb[0].mxu0
  %1370 = vmatprep.mubr.f32.mxu0 0.0
  %1371 = vmatmul.mubr.f32.gmra.mrb[0].mxu0 %v1264
  %v1372 = vpop.f32.mrb[0].mxu0
  %v1373 = vadd.f32 %v1236, %v1372
  %v1374 = vpop.f32.mrb[0].mxu0
  %1375 = vdwg.mxu0
  %v1377 = vsel %vm1101, %v1038, 0
  %v1380 = vsel %vm1101, %v1039, 0
  %v1383 = vsel %vm1101, %v1040, 0
  %v1386 = vsel %vm1101, %v1041, 0
  %v1389 = vsel %vm1101, %v1042, 0
  %v1392 = vsel %vm1101, %v1043, 0
  %v1395 = vsel %vm1101, %v1044, 0
  %v1398 = vsel %vm1101, %v1045, 0
  %v1401 = vsel %vm1101, %v1046, 0
  %1403 = vmatprep.subr.mxu0 0.0
  %1404 = vmatpush1.msra.mxu0 %v102
  %1405 = vmatprep.subr.mxu0 0.0
  %1406 = vmatpush1.msra.mxu0 0.0
  %1407 = vmatprep.subr.mxu0 0.0
  %1408 = vmatpush1.msra.mxu0 0.0
  %1409 = vmatprep.subr.mxu0 0.0
  %1410 = vmatpush1.msra.mxu0 0.0
  %1411 = vmatprep.subr.mxu0 0.0
  %1412 = vmatpush1.msra.mxu0 0.0
  %1413 = vmatprep.subr.mxu0 0.0
  %1414 = vmatpush1.msra.mxu0 0.0
  %1415 = vmatprep.subr.mxu0 0.0
  %1416 = vmatpush1.msra.mxu0 0.0
  %1417 = vmatprep.subr.mxu0 0.0
  %1418 = vmatpush1.msra.mxu0 0.0
  %1419 = vmatprep.subr.mxu0 0.0
  %1420 = vmatpush1.msra.mxu0 0.0
  %1421 = vmatprep.subr.mxu0 0.0
  %1422 = vmatpush1.msra.mxu0 0.0
  %1423 = vmatprep.subr.mxu0 0.0
  %1424 = vmatpush1.msra.mxu0 0.0
  %1425 = vmatprep.subr.mxu0 0.0
  %1426 = vmatpush1.msra.mxu0 0.0
  %1427 = vmatprep.subr.mxu0 0.0
  %1428 = vmatpush1.msra.mxu0 0.0
  %1429 = vmatprep.subr.mxu0 0.0
  %1430 = vmatpush1.msra.mxu0 0.0
  %1431 = vmatprep.subr.mxu0 0.0
  %1432 = vmatpush1.msra.mxu0 0.0
  %1433 = vmatprep.subr.mxu0 0.0
  %1434 = vmatpush1.msra.mxu0 0.0
  %1435 = vmatprep.subr.mxu0 0.0
  %1436 = vmatpush1.msra.mxu0 0.0
  %1437 = vmatprep.subr.mxu0 0.0
  %1438 = vmatpush1.msra.mxu0 0.0
  %1439 = vmatprep.subr.mxu0 0.0
  %1440 = vmatpush1.msra.mxu0 0.0
  %1441 = vmatprep.subr.mxu0 0.0
  %1442 = vmatpush1.msra.mxu0 0.0
  %1443 = vmatprep.subr.mxu0 0.0
  %1444 = vmatpush1.msra.mxu0 0.0
  %1445 = vmatprep.subr.mxu0 0.0
  %1446 = vmatpush1.msra.mxu0 0.0
  %1447 = vmatprep.subr.mxu0 0.0
  %1448 = vmatpush1.msra.mxu0 0.0
  %1449 = vmatprep.subr.mxu0 0.0
  %1450 = vmatpush1.msra.mxu0 0.0
  %1451 = vmatprep.subr.mxu0 0.0
  %1452 = vmatpush1.msra.mxu0 0.0
  %1453 = vmatprep.subr.mxu0 0.0
  %1454 = vmatpush1.msra.mxu0 0.0
  %1455 = vmatprep.subr.mxu0 0.0
  %1456 = vmatpush1.msra.mxu0 0.0
  %1457 = vmatprep.subr.mxu0 0.0
  %1458 = vmatpush1.msra.mxu0 0.0
  %1459 = vmatprep.subr.mxu0 0.0
  %1460 = vmatpush1.msra.mxu0 0.0
  %1461 = vmatprep.subr.mxu0 0.0
  %1462 = vmatpush1.msra.mxu0 0.0
  %1463 = vmatprep.subr.mxu0 0.0
  %1464 = vmatpush1.msra.mxu0 0.0
  %1465 = vmatprep.subr.mxu0 0.0
  %1466 = vmatpush1.msra.mxu0 0.0
  %1467 = vmatprep.mubr.f32.mxu0 0.0
  %1468 = vmatmul.mubr.f32.gmra.mrb[0].mxu0 %v1377
  %v1469 = vpop.f32.mrb[0].mxu0
  %v1470 = vadd.f32 0.0, %v1469
  %v1471 = vpop.f32.mrb[0].mxu0
  %1472 = vmatprep.mubr.f32.mxu0 0.0
  %1473 = vmatmul.mubr.f32.gmra.mrb[0].mxu0 %v1380
  %v1474 = vpop.f32.mrb[0].mxu0
  %v1475 = vadd.f32 0.0, %v1474
  %v1476 = vpop.f32.mrb[0].mxu0
  %1477 = vmatprep.mubr.f32.mxu0 0.0
  %1478 = vmatmul.mubr.f32.gmra.mrb[0].mxu0 %v1383
  %v1479 = vpop.f32.mrb[0].mxu0
  %v1480 = vadd.f32 0.0, %v1479
  %v1481 = vpop.f32.mrb[0].mxu0
  %1482 = vmatprep.mubr.f32.mxu0 0.0
  %1483 = vmatmul.mubr.f32.gmra.mrb[0].mxu0 %v1386
  %v1484 = vpop.f32.mrb[0].mxu0
  %v1485 = vadd.f32 0.0, %v1484
  %v1486 = vpop.f32.mrb[0].mxu0
  %1487 = vmatprep.mubr.f32.mxu0 0.0
  %1488 = vmatmul.mubr.f32.gmra.mrb[0].mxu0 %v1389
  %v1489 = vpop.f32.mrb[0].mxu0
  %v1490 = vadd.f32 0.0, %v1489
  %v1491 = vpop.f32.mrb[0].mxu0
  %1492 = vmatprep.mubr.f32.mxu0 0.0
  %1493 = vmatmul.mubr.f32.gmra.mrb[0].mxu0 %v1392
  %v1494 = vpop.f32.mrb[0].mxu0
  %v1495 = vadd.f32 0.0, %v1494
  %v1496 = vpop.f32.mrb[0].mxu0
  %1497 = vmatprep.mubr.f32.mxu0 0.0
  %1498 = vmatmul.mubr.f32.gmra.mrb[0].mxu0 %v1395
  %v1499 = vpop.f32.mrb[0].mxu0
  %v1500 = vadd.f32 0.0, %v1499
  %v1501 = vpop.f32.mrb[0].mxu0
  %1502 = vmatprep.mubr.f32.mxu0 0.0
  %1503 = vmatmul.mubr.f32.gmra.mrb[0].mxu0 %v1398
  %v1504 = vpop.f32.mrb[0].mxu0
  %v1505 = vadd.f32 0.0, %v1504
  %v1506 = vpop.f32.mrb[0].mxu0
  %1507 = vmatprep.mubr.f32.mxu0 0.0
  %1508 = vmatmul.mubr.f32.gmra.mrb[0].mxu0 %v1401
  %v1509 = vpop.f32.mrb[0].mxu0
  %v1510 = vadd.f32 0.0, %v1509
  %v1511 = vpop.f32.mrb[0].mxu0
  %1512 = vdwg.mxu0
  %v1513 = vadd.f32 %v1333, %v1470
  %v1514 = vadd.f32 %v1338, %v1475
  %v1515 = vadd.f32 %v1343, %v1480
  %v1516 = vadd.f32 %v1348, %v1485
  %v1517 = vadd.f32 %v1353, %v1490
  %v1518 = vadd.f32 %v1358, %v1495
  %v1519 = vadd.f32 %v1363, %v1500
  %v1520 = vadd.f32 %v1368, %v1505
  %v1521 = vadd.f32 %v1373, %v1510
  %v1523 = vsel %vm1101, %v1047, 0
  %v1526 = vsel %vm1101, %v1048, 0
  %v1529 = vsel %vm1101, %v1049, 0
  %v1532 = vsel %vm1101, %v1050, 0
  %v1535 = vsel %vm1101, %v1051, 0
  %v1538 = vsel %vm1101, %v1052, 0
  %v1541 = vsel %vm1101, %v1053, 0
  %v1544 = vsel %vm1101, %v1054, 0
  %v1547 = vsel %vm1101, %v1055, 0
  %1549 = vmatprep.subr.mxu0 0.0
  %1550 = vmatpush1.msra.mxu0 %v103
  %1551 = vmatprep.subr.mxu0 0.0
  %1552 = vmatpush1.msra.mxu0 0.0
  %1553 = vmatprep.subr.mxu0 0.0
  %1554 = vmatpush1.msra.mxu0 0.0
  %1555 = vmatprep.subr.mxu0 0.0
  %1556 = vmatpush1.msra.mxu0 0.0
  %1557 = vmatprep.subr.mxu0 0.0
  %1558 = vmatpush1.msra.mxu0 0.0
  %1559 = vmatprep.subr.mxu0 0.0
  %1560 = vmatpush1.msra.mxu0 0.0
  %1561 = vmatprep.subr.mxu0 0.0
  %1562 = vmatpush1.msra.mxu0 0.0
  %1563 = vmatprep.subr.mxu0 0.0
  %1564 = vmatpush1.msra.mxu0 0.0
  %1565 = vmatprep.subr.mxu0 0.0
  %1566 = vmatpush1.msra.mxu0 0.0
  %1567 = vmatprep.subr.mxu0 0.0
  %1568 = vmatpush1.msra.mxu0 0.0
  %1569 = vmatprep.subr.mxu0 0.0
  %1570 = vmatpush1.msra.mxu0 0.0
  %1571 = vmatprep.subr.mxu0 0.0
  %1572 = vmatpush1.msra.mxu0 0.0
  %1573 = vmatprep.subr.mxu0 0.0
  %1574 = vmatpush1.msra.mxu0 0.0
  %1575 = vmatprep.subr.mxu0 0.0
  %1576 = vmatpush1.msra.mxu0 0.0
  %1577 = vmatprep.subr.mxu0 0.0
  %1578 = vmatpush1.msra.mxu0 0.0
  %1579 = vmatprep.subr.mxu0 0.0
  %1580 = vmatpush1.msra.mxu0 0.0
  %1581 = vmatprep.subr.mxu0 0.0
  %1582 = vmatpush1.msra.mxu0 0.0
  %1583 = vmatprep.subr.mxu0 0.0
  %1584 = vmatpush1.msra.mxu0 0.0
  %1585 = vmatprep.subr.mxu0 0.0
  %1586 = vmatpush1.msra.mxu0 0.0
  %1587 = vmatprep.subr.mxu0 0.0
  %1588 = vmatpush1.msra.mxu0 0.0
  %1589 = vmatprep.subr.mxu0 0.0
  %1590 = vmatpush1.msra.mxu0 0.0
  %1591 = vmatprep.subr.mxu0 0.0
  %1592 = vmatpush1.msra.mxu0 0.0
  %1593 = vmatprep.subr.mxu0 0.0
  %1594 = vmatpush1.msra.mxu0 0.0
  %1595 = vmatprep.subr.mxu0 0.0
  %1596 = vmatpush1.msra.mxu0 0.0
  %1597 = vmatprep.subr.mxu0 0.0
  %1598 = vmatpush1.msra.mxu0 0.0
  %1599 = vmatprep.subr.mxu0 0.0
  %1600 = vmatpush1.msra.mxu0 0.0
  %1601 = vmatprep.subr.mxu0 0.0
  %1602 = vmatpush1.msra.mxu0 0.0
  %1603 = vmatprep.subr.mxu0 0.0
  %1604 = vmatpush1.msra.mxu0 0.0
  %1605 = vmatprep.subr.mxu0 0.0
  %1606 = vmatpush1.msra.mxu0 0.0
  %1607 = vmatprep.subr.mxu0 0.0
  %1608 = vmatpush1.msra.mxu0 0.0
  %1609 = vmatprep.subr.mxu0 0.0
  %1610 = vmatpush1.msra.mxu0 0.0
  %1611 = vmatprep.subr.mxu0 0.0
  %1612 = vmatpush1.msra.mxu0 0.0
  %1613 = vmatprep.mubr.f32.mxu0 0.0
  %1614 = vmatmul.mubr.f32.gmra.mrb[0].mxu0 %v1523
  %v1615 = vpop.f32.mrb[0].mxu0
  %v1616 = vadd.f32 0.0, %v1615
  %v1617 = vpop.f32.mrb[0].mxu0
  %1618 = vmatprep.mubr.f32.mxu0 0.0
  %1619 = vmatmul.mubr.f32.gmra.mrb[0].mxu0 %v1526
  %v1620 = vpop.f32.mrb[0].mxu0
  %v1621 = vadd.f32 0.0, %v1620
  %v1622 = vpop.f32.mrb[0].mxu0
  %1623 = vmatprep.mubr.f32.mxu0 0.0
  %1624 = vmatmul.mubr.f32.gmra.mrb[0].mxu0 %v1529
  %v1625 = vpop.f32.mrb[0].mxu0
  %v1626 = vadd.f32 0.0, %v1625
  %v1627 = vpop.f32.mrb[0].mxu0
  %1628 = vmatprep.mubr.f32.mxu0 0.0
  %1629 = vmatmul.mubr.f32.gmra.mrb[0].mxu0 %v1532
  %v1630 = vpop.f32.mrb[0].mxu0
  %v1631 = vadd.f32 0.0, %v1630
  %v1632 = vpop.f32.mrb[0].mxu0
  %1633 = vmatprep.mubr.f32.mxu0 0.0
  %1634 = vmatmul.mubr.f32.gmra.mrb[0].mxu0 %v1535
  %v1635 = vpop.f32.mrb[0].mxu0
  %v1636 = vadd.f32 0.0, %v1635
  %v1637 = vpop.f32.mrb[0].mxu0
  %1638 = vmatprep.mubr.f32.mxu0 0.0
  %1639 = vmatmul.mubr.f32.gmra.mrb[0].mxu0 %v1538
  %v1640 = vpop.f32.mrb[0].mxu0
  %v1641 = vadd.f32 0.0, %v1640
  %v1642 = vpop.f32.mrb[0].mxu0
  %1643 = vmatprep.mubr.f32.mxu0 0.0
  %1644 = vmatmul.mubr.f32.gmra.mrb[0].mxu0 %v1541
  %v1645 = vpop.f32.mrb[0].mxu0
  %v1646 = vadd.f32 0.0, %v1645
  %v1647 = vpop.f32.mrb[0].mxu0
  %1648 = vmatprep.mubr.f32.mxu0 0.0
  %1649 = vmatmul.mubr.f32.gmra.mrb[0].mxu0 %v1544
  %v1650 = vpop.f32.mrb[0].mxu0
  %v1651 = vadd.f32 0.0, %v1650
  %v1652 = vpop.f32.mrb[0].mxu0
  %1653 = vmatprep.mubr.f32.mxu0 0.0
  %1654 = vmatmul.mubr.f32.gmra.mrb[0].mxu0 %v1547
  %v1655 = vpop.f32.mrb[0].mxu0
  %v1656 = vadd.f32 0.0, %v1655
  %v1657 = vpop.f32.mrb[0].mxu0
  %1658 = vdwg.mxu0
  %v1659 = vadd.f32 %v1513, %v1616
  %v1660 = vadd.f32 %v1514, %v1621
  %v1661 = vadd.f32 %v1515, %v1626
  %v1662 = vadd.f32 %v1516, %v1631
  %v1663 = vadd.f32 %v1517, %v1636
  %v1664 = vadd.f32 %v1518, %v1641
  %v1665 = vadd.f32 %v1519, %v1646
  %v1666 = vadd.f32 %v1520, %v1651
  %v1667 = vadd.f32 %v1521, %v1656
  %v1669 = vsel %vm1101, %v1056, 0
  %v1672 = vsel %vm1101, %v1057, 0
  %v1675 = vsel %vm1101, %v1058, 0
  %v1678 = vsel %vm1101, %v1059, 0
  %v1681 = vsel %vm1101, %v1060, 0
  %v1684 = vsel %vm1101, %v1061, 0
  %v1687 = vsel %vm1101, %v1062, 0
  %v1690 = vsel %vm1101, %v1063, 0
  %v1693 = vsel %vm1101, %v1064, 0
  %1695 = vmatprep.subr.mxu0 0.0
  %1696 = vmatpush1.msra.mxu0 %v104
  %1697 = vmatprep.subr.mxu0 0.0
  %1698 = vmatpush1.msra.mxu0 0.0
  %1699 = vmatprep.subr.mxu0 0.0
  %1700 = vmatpush1.msra.mxu0 0.0
  %1701 = vmatprep.subr.mxu0 0.0
  %1702 = vmatpush1.msra.mxu0 0.0
  %1703 = vmatprep.subr.mxu0 0.0
  %1704 = vmatpush1.msra.mxu0 0.0
  %1705 = vmatprep.subr.mxu0 0.0
  %1706 = vmatpush1.msra.mxu0 0.0
  %1707 = vmatprep.subr.mxu0 0.0
  %1708 = vmatpush1.msra.mxu0 0.0
  %1709 = vmatprep.subr.mxu0 0.0
  %1710 = vmatpush1.msra.mxu0 0.0
  %1711 = vmatprep.subr.mxu0 0.0
  %1712 = vmatpush1.msra.mxu0 0.0
  %1713 = vmatprep.subr.mxu0 0.0
  %1714 = vmatpush1.msra.mxu0 0.0
  %1715 = vmatprep.subr.mxu0 0.0
  %1716 = vmatpush1.msra.mxu0 0.0
  %1717 = vmatprep.subr.mxu0 0.0
  %1718 = vmatpush1.msra.mxu0 0.0
  %1719 = vmatprep.subr.mxu0 0.0
  %1720 = vmatpush1.msra.mxu0 0.0
  %1721 = vmatprep.subr.mxu0 0.0
  %1722 = vmatpush1.msra.mxu0 0.0
  %1723 = vmatprep.subr.mxu0 0.0
  %1724 = vmatpush1.msra.mxu0 0.0
  %1725 = vmatprep.subr.mxu0 0.0
  %1726 = vmatpush1.msra.mxu0 0.0
  %1727 = vmatprep.subr.mxu0 0.0
  %1728 = vmatpush1.msra.mxu0 0.0
  %1729 = vmatprep.subr.mxu0 0.0
  %1730 = vmatpush1.msra.mxu0 0.0
  %1731 = vmatprep.subr.mxu0 0.0
  %1732 = vmatpush1.msra.mxu0 0.0
  %1733 = vmatprep.subr.mxu0 0.0
  %1734 = vmatpush1.msra.mxu0 0.0
  %1735 = vmatprep.subr.mxu0 0.0
  %1736 = vmatpush1.msra.mxu0 0.0
  %1737 = vmatprep.subr.mxu0 0.0
  %1738 = vmatpush1.msra.mxu0 0.0
  %1739 = vmatprep.subr.mxu0 0.0
  %1740 = vmatpush1.msra.mxu0 0.0
  %1741 = vmatprep.subr.mxu0 0.0
  %1742 = vmatpush1.msra.mxu0 0.0
  %1743 = vmatprep.subr.mxu0 0.0
  %1744 = vmatpush1.msra.mxu0 0.0
  %1745 = vmatprep.subr.mxu0 0.0
  %1746 = vmatpush1.msra.mxu0 0.0
  %1747 = vmatprep.subr.mxu0 0.0
  %1748 = vmatpush1.msra.mxu0 0.0
  %1749 = vmatprep.subr.mxu0 0.0
  %1750 = vmatpush1.msra.mxu0 0.0
  %1751 = vmatprep.subr.mxu0 0.0
  %1752 = vmatpush1.msra.mxu0 0.0
  %1753 = vmatprep.subr.mxu0 0.0
  %1754 = vmatpush1.msra.mxu0 0.0
  %1755 = vmatprep.subr.mxu0 0.0
  %1756 = vmatpush1.msra.mxu0 0.0
  %1757 = vmatprep.subr.mxu0 0.0
  %1758 = vmatpush1.msra.mxu0 0.0
  %1759 = vmatprep.mubr.f32.mxu0 0.0
  %1760 = vmatmul.mubr.f32.gmra.mrb[0].mxu0 %v1669
  %v1761 = vpop.f32.mrb[0].mxu0
  %v1762 = vadd.f32 0.0, %v1761
  %v1763 = vpop.f32.mrb[0].mxu0
  %1764 = vmatprep.mubr.f32.mxu0 0.0
  %1765 = vmatmul.mubr.f32.gmra.mrb[0].mxu0 %v1672
  %v1766 = vpop.f32.mrb[0].mxu0
  %v1767 = vadd.f32 0.0, %v1766
  %v1768 = vpop.f32.mrb[0].mxu0
  %1769 = vmatprep.mubr.f32.mxu0 0.0
  %1770 = vmatmul.mubr.f32.gmra.mrb[0].mxu0 %v1675
  %v1771 = vpop.f32.mrb[0].mxu0
  %v1772 = vadd.f32 0.0, %v1771
  %v1773 = vpop.f32.mrb[0].mxu0
  %1774 = vmatprep.mubr.f32.mxu0 0.0
  %1775 = vmatmul.mubr.f32.gmra.mrb[0].mxu0 %v1678
  %v1776 = vpop.f32.mrb[0].mxu0
  %v1777 = vadd.f32 0.0, %v1776
  %v1778 = vpop.f32.mrb[0].mxu0
  %1779 = vmatprep.mubr.f32.mxu0 0.0
  %1780 = vmatmul.mubr.f32.gmra.mrb[0].mxu0 %v1681
  %v1781 = vpop.f32.mrb[0].mxu0
  %v1782 = vadd.f32 0.0, %v1781
  %v1783 = vpop.f32.mrb[0].mxu0
  %1784 = vmatprep.mubr.f32.mxu0 0.0
  %1785 = vmatmul.mubr.f32.gmra.mrb[0].mxu0 %v1684
  %v1786 = vpop.f32.mrb[0].mxu0
  %v1787 = vadd.f32 0.0, %v1786
  %v1788 = vpop.f32.mrb[0].mxu0
  %1789 = vmatprep.mubr.f32.mxu0 0.0
  %1790 = vmatmul.mubr.f32.gmra.mrb[0].mxu0 %v1687
  %v1791 = vpop.f32.mrb[0].mxu0
  %v1792 = vadd.f32 0.0, %v1791
  %v1793 = vpop.f32.mrb[0].mxu0
  %1794 = vmatprep.mubr.f32.mxu0 0.0
  %1795 = vmatmul.mubr.f32.gmra.mrb[0].mxu0 %v1690
  %v1796 = vpop.f32.mrb[0].mxu0
  %v1797 = vadd.f32 0.0, %v1796
  %v1798 = vpop.f32.mrb[0].mxu0
  %1799 = vmatprep.mubr.f32.mxu0 0.0
  %1800 = vmatmul.mubr.f32.gmra.mrb[0].mxu0 %v1693
  %v1801 = vpop.f32.mrb[0].mxu0
  %v1802 = vadd.f32 0.0, %v1801
  %v1803 = vpop.f32.mrb[0].mxu0
  %1804 = vdwg.mxu0
  %v1805 = vadd.f32 %v1659, %v1762
  %v1806 = vadd.f32 %v1660, %v1767
  %v1807 = vadd.f32 %v1661, %v1772
  %v1808 = vadd.f32 %v1662, %v1777
  %v1809 = vadd.f32 %v1663, %v1782
  %v1810 = vadd.f32 %v1664, %v1787
  %v1811 = vadd.f32 %v1665, %v1792
  %v1812 = vadd.f32 %v1666, %v1797
  %v1813 = vadd.f32 %v1667, %v1802
  %v1815 = vsel %vm1101, %v1065, 0
  %v1818 = vsel %vm1101, %v1066, 0
  %v1821 = vsel %vm1101, %v1067, 0
  %v1824 = vsel %vm1101, %v1068, 0
  %v1827 = vsel %vm1101, %v1069, 0
  %v1830 = vsel %vm1101, %v1070, 0
  %v1833 = vsel %vm1101, %v1071, 0
  %v1836 = vsel %vm1101, %v1072, 0
  %v1839 = vsel %vm1101, %v1073, 0
  %1841 = vmatprep.subr.mxu0 0.0
  %1842 = vmatpush1.msra.mxu0 %v105
  %1843 = vmatprep.subr.mxu0 0.0
  %1844 = vmatpush1.msra.mxu0 0.0
  %1845 = vmatprep.subr.mxu0 0.0
  %1846 = vmatpush1.msra.mxu0 0.0
  %1847 = vmatprep.subr.mxu0 0.0
  %1848 = vmatpush1.msra.mxu0 0.0
  %1849 = vmatprep.subr.mxu0 0.0
  %1850 = vmatpush1.msra.mxu0 0.0
  %1851 = vmatprep.subr.mxu0 0.0
  %1852 = vmatpush1.msra.mxu0 0.0
  %1853 = vmatprep.subr.mxu0 0.0
  %1854 = vmatpush1.msra.mxu0 0.0
  %1855 = vmatprep.subr.mxu0 0.0
  %1856 = vmatpush1.msra.mxu0 0.0
  %1857 = vmatprep.subr.mxu0 0.0
  %1858 = vmatpush1.msra.mxu0 0.0
  %1859 = vmatprep.subr.mxu0 0.0
  %1860 = vmatpush1.msra.mxu0 0.0
  %1861 = vmatprep.subr.mxu0 0.0
  %1862 = vmatpush1.msra.mxu0 0.0
  %1863 = vmatprep.subr.mxu0 0.0
  %1864 = vmatpush1.msra.mxu0 0.0
  %1865 = vmatprep.subr.mxu0 0.0
  %1866 = vmatpush1.msra.mxu0 0.0
  %1867 = vmatprep.subr.mxu0 0.0
  %1868 = vmatpush1.msra.mxu0 0.0
  %1869 = vmatprep.subr.mxu0 0.0
  %1870 = vmatpush1.msra.mxu0 0.0
  %1871 = vmatprep.subr.mxu0 0.0
  %1872 = vmatpush1.msra.mxu0 0.0
  %1873 = vmatprep.subr.mxu0 0.0
  %1874 = vmatpush1.msra.mxu0 0.0
  %1875 = vmatprep.subr.mxu0 0.0
  %1876 = vmatpush1.msra.mxu0 0.0
  %1877 = vmatprep.subr.mxu0 0.0
  %1878 = vmatpush1.msra.mxu0 0.0
  %1879 = vmatprep.subr.mxu0 0.0
  %1880 = vmatpush1.msra.mxu0 0.0
  %1881 = vmatprep.subr.mxu0 0.0
  %1882 = vmatpush1.msra.mxu0 0.0
  %1883 = vmatprep.subr.mxu0 0.0
  %1884 = vmatpush1.msra.mxu0 0.0
  %1885 = vmatprep.subr.mxu0 0.0
  %1886 = vmatpush1.msra.mxu0 0.0
  %1887 = vmatprep.subr.mxu0 0.0
  %1888 = vmatpush1.msra.mxu0 0.0
  %1889 = vmatprep.subr.mxu0 0.0
  %1890 = vmatpush1.msra.mxu0 0.0
  %1891 = vmatprep.subr.mxu0 0.0
  %1892 = vmatpush1.msra.mxu0 0.0
  %1893 = vmatprep.subr.mxu0 0.0
  %1894 = vmatpush1.msra.mxu0 0.0
  %1895 = vmatprep.subr.mxu0 0.0
  %1896 = vmatpush1.msra.mxu0 0.0
  %1897 = vmatprep.subr.mxu0 0.0
  %1898 = vmatpush1.msra.mxu0 0.0
  %1899 = vmatprep.subr.mxu0 0.0
  %1900 = vmatpush1.msra.mxu0 0.0
  %1901 = vmatprep.subr.mxu0 0.0
  %1902 = vmatpush1.msra.mxu0 0.0
  %1903 = vmatprep.subr.mxu0 0.0
  %1904 = vmatpush1.msra.mxu0 0.0
  %1905 = vmatprep.mubr.f32.mxu0 0.0
  %1906 = vmatmul.mubr.f32.gmra.mrb[0].mxu0 %v1815
  %v1907 = vpop.f32.mrb[0].mxu0
  %v1908 = vadd.f32 0.0, %v1907
  %v1909 = vpop.f32.mrb[0].mxu0
  %1910 = vmatprep.mubr.f32.mxu0 0.0
  %1911 = vmatmul.mubr.f32.gmra.mrb[0].mxu0 %v1818
  %v1912 = vpop.f32.mrb[0].mxu0
  %v1913 = vadd.f32 0.0, %v1912
  %v1914 = vpop.f32.mrb[0].mxu0
  %1915 = vmatprep.mubr.f32.mxu0 0.0
  %1916 = vmatmul.mubr.f32.gmra.mrb[0].mxu0 %v1821
  %v1917 = vpop.f32.mrb[0].mxu0
  %v1918 = vadd.f32 0.0, %v1917
  %v1919 = vpop.f32.mrb[0].mxu0
  %1920 = vmatprep.mubr.f32.mxu0 0.0
  %1921 = vmatmul.mubr.f32.gmra.mrb[0].mxu0 %v1824
  %v1922 = vpop.f32.mrb[0].mxu0
  %v1923 = vadd.f32 0.0, %v1922
  %v1924 = vpop.f32.mrb[0].mxu0
  %1925 = vmatprep.mubr.f32.mxu0 0.0
  %1926 = vmatmul.mubr.f32.gmra.mrb[0].mxu0 %v1827
  %v1927 = vpop.f32.mrb[0].mxu0
  %v1928 = vadd.f32 0.0, %v1927
  %v1929 = vpop.f32.mrb[0].mxu0
  %1930 = vmatprep.mubr.f32.mxu0 0.0
  %1931 = vmatmul.mubr.f32.gmra.mrb[0].mxu0 %v1830
  %v1932 = vpop.f32.mrb[0].mxu0
  %v1933 = vadd.f32 0.0, %v1932
  %v1934 = vpop.f32.mrb[0].mxu0
  %1935 = vmatprep.mubr.f32.mxu0 0.0
  %1936 = vmatmul.mubr.f32.gmra.mrb[0].mxu0 %v1833
  %v1937 = vpop.f32.mrb[0].mxu0
  %v1938 = vadd.f32 0.0, %v1937
  %v1939 = vpop.f32.mrb[0].mxu0
  %1940 = vmatprep.mubr.f32.mxu0 0.0
  %1941 = vmatmul.mubr.f32.gmra.mrb[0].mxu0 %v1836
  %v1942 = vpop.f32.mrb[0].mxu0
  %v1943 = vadd.f32 0.0, %v1942
  %v1944 = vpop.f32.mrb[0].mxu0
  %1945 = vmatprep.mubr.f32.mxu0 0.0
  %1946 = vmatmul.mubr.f32.gmra.mrb[0].mxu0 %v1839
  %v1947 = vpop.f32.mrb[0].mxu0
  %v1948 = vadd.f32 0.0, %v1947
  %v1949 = vpop.f32.mrb[0].mxu0
  %1950 = vdwg.mxu0
  %v1951 = vadd.f32 %v1805, %v1908
  %v1952 = vadd.f32 %v1806, %v1913
  %v1953 = vadd.f32 %v1807, %v1918
  %v1954 = vadd.f32 %v1808, %v1923
  %v1955 = vadd.f32 %v1809, %v1928
  %v1956 = vadd.f32 %v1810, %v1933
  %v1957 = vadd.f32 %v1811, %v1938
  %v1958 = vadd.f32 %v1812, %v1943
  %v1959 = vadd.f32 %v1813, %v1948
  %v1961 = vsel %vm1101, %v1074, 0
  %v1964 = vsel %vm1101, %v1075, 0
  %v1967 = vsel %vm1101, %v1076, 0
  %v1970 = vsel %vm1101, %v1077, 0
  %v1973 = vsel %vm1101, %v1078, 0
  %v1976 = vsel %vm1101, %v1079, 0
  %v1979 = vsel %vm1101, %v1080, 0
  %v1982 = vsel %vm1101, %v1081, 0
  %v1985 = vsel %vm1101, %v1082, 0
  %1987 = vmatprep.subr.mxu0 0.0
  %1988 = vmatpush1.msra.mxu0 %v106
  %1989 = vmatprep.subr.mxu0 0.0
  %1990 = vmatpush1.msra.mxu0 0.0
  %1991 = vmatprep.subr.mxu0 0.0
  %1992 = vmatpush1.msra.mxu0 0.0
  %1993 = vmatprep.subr.mxu0 0.0
  %1994 = vmatpush1.msra.mxu0 0.0
  %1995 = vmatprep.subr.mxu0 0.0
  %1996 = vmatpush1.msra.mxu0 0.0
  %1997 = vmatprep.subr.mxu0 0.0
  %1998 = vmatpush1.msra.mxu0 0.0
  %1999 = vmatprep.subr.mxu0 0.0
  %2000 = vmatpush1.msra.mxu0 0.0
  %2001 = vmatprep.subr.mxu0 0.0
  %2002 = vmatpush1.msra.mxu0 0.0
  %2003 = vmatprep.subr.mxu0 0.0
  %2004 = vmatpush1.msra.mxu0 0.0
  %2005 = vmatprep.subr.mxu0 0.0
  %2006 = vmatpush1.msra.mxu0 0.0
  %2007 = vmatprep.subr.mxu0 0.0
  %2008 = vmatpush1.msra.mxu0 0.0
  %2009 = vmatprep.subr.mxu0 0.0
  %2010 = vmatpush1.msra.mxu0 0.0
  %2011 = vmatprep.subr.mxu0 0.0
  %2012 = vmatpush1.msra.mxu0 0.0
  %2013 = vmatprep.subr.mxu0 0.0
  %2014 = vmatpush1.msra.mxu0 0.0
  %2015 = vmatprep.subr.mxu0 0.0
  %2016 = vmatpush1.msra.mxu0 0.0
  %2017 = vmatprep.subr.mxu0 0.0
  %2018 = vmatpush1.msra.mxu0 0.0
  %2019 = vmatprep.subr.mxu0 0.0
  %2020 = vmatpush1.msra.mxu0 0.0
  %2021 = vmatprep.subr.mxu0 0.0
  %2022 = vmatpush1.msra.mxu0 0.0
  %2023 = vmatprep.subr.mxu0 0.0
  %2024 = vmatpush1.msra.mxu0 0.0
  %2025 = vmatprep.subr.mxu0 0.0
  %2026 = vmatpush1.msra.mxu0 0.0
  %2027 = vmatprep.subr.mxu0 0.0
  %2028 = vmatpush1.msra.mxu0 0.0
  %2029 = vmatprep.subr.mxu0 0.0
  %2030 = vmatpush1.msra.mxu0 0.0
  %2031 = vmatprep.subr.mxu0 0.0
  %2032 = vmatpush1.msra.mxu0 0.0
  %2033 = vmatprep.subr.mxu0 0.0
  %2034 = vmatpush1.msra.mxu0 0.0
  %2035 = vmatprep.subr.mxu0 0.0
  %2036 = vmatpush1.msra.mxu0 0.0
  %2037 = vmatprep.subr.mxu0 0.0
  %2038 = vmatpush1.msra.mxu0 0.0
  %2039 = vmatprep.subr.mxu0 0.0
  %2040 = vmatpush1.msra.mxu0 0.0
  %2041 = vmatprep.subr.mxu0 0.0
  %2042 = vmatpush1.msra.mxu0 0.0
  %2043 = vmatprep.subr.mxu0 0.0
  %2044 = vmatpush1.msra.mxu0 0.0
  %2045 = vmatprep.subr.mxu0 0.0
  %2046 = vmatpush1.msra.mxu0 0.0
  %2047 = vmatprep.subr.mxu0 0.0
  %2048 = vmatpush1.msra.mxu0 0.0
  %2049 = vmatprep.subr.mxu0 0.0
  %2050 = vmatpush1.msra.mxu0 0.0
  %2051 = vmatprep.mubr.f32.mxu0 0.0
  %2052 = vmatmul.mubr.f32.gmra.mrb[0].mxu0 %v1961
  %v2053 = vpop.f32.mrb[0].mxu0
  %v2054 = vadd.f32 0.0, %v2053
  %v2055 = vpop.f32.mrb[0].mxu0
  %2056 = vmatprep.mubr.f32.mxu0 0.0
  %2057 = vmatmul.mubr.f32.gmra.mrb[0].mxu0 %v1964
  %v2058 = vpop.f32.mrb[0].mxu0
  %v2059 = vadd.f32 0.0, %v2058
  %v2060 = vpop.f32.mrb[0].mxu0
  %2061 = vmatprep.mubr.f32.mxu0 0.0
  %2062 = vmatmul.mubr.f32.gmra.mrb[0].mxu0 %v1967
  %v2063 = vpop.f32.mrb[0].mxu0
  %v2064 = vadd.f32 0.0, %v2063
  %v2065 = vpop.f32.mrb[0].mxu0
  %2066 = vmatprep.mubr.f32.mxu0 0.0
  %2067 = vmatmul.mubr.f32.gmra.mrb[0].mxu0 %v1970
  %v2068 = vpop.f32.mrb[0].mxu0
  %v2069 = vadd.f32 0.0, %v2068
  %v2070 = vpop.f32.mrb[0].mxu0
  %2071 = vmatprep.mubr.f32.mxu0 0.0
  %2072 = vmatmul.mubr.f32.gmra.mrb[0].mxu0 %v1973
  %v2073 = vpop.f32.mrb[0].mxu0
  %v2074 = vadd.f32 0.0, %v2073
  %v2075 = vpop.f32.mrb[0].mxu0
  %2076 = vmatprep.mubr.f32.mxu0 0.0
  %2077 = vmatmul.mubr.f32.gmra.mrb[0].mxu0 %v1976
  %v2078 = vpop.f32.mrb[0].mxu0
  %v2079 = vadd.f32 0.0, %v2078
  %v2080 = vpop.f32.mrb[0].mxu0
  %2081 = vmatprep.mubr.f32.mxu0 0.0
  %2082 = vmatmul.mubr.f32.gmra.mrb[0].mxu0 %v1979
  %v2083 = vpop.f32.mrb[0].mxu0
  %v2084 = vadd.f32 0.0, %v2083
  %v2085 = vpop.f32.mrb[0].mxu0
  %2086 = vmatprep.mubr.f32.mxu0 0.0
  %2087 = vmatmul.mubr.f32.gmra.mrb[0].mxu0 %v1982
  %v2088 = vpop.f32.mrb[0].mxu0
  %v2089 = vadd.f32 0.0, %v2088
  %v2090 = vpop.f32.mrb[0].mxu0
  %2091 = vmatprep.mubr.f32.mxu0 0.0
  %2092 = vmatmul.mubr.f32.gmra.mrb[0].mxu0 %v1985
  %v2093 = vpop.f32.mrb[0].mxu0
  %v2094 = vadd.f32 0.0, %v2093
  %v2095 = vpop.f32.mrb[0].mxu0
  %2096 = vdwg.mxu0
  %v2097 = vadd.f32 %v1951, %v2054
  %v2098 = vadd.f32 %v1952, %v2059
  %v2099 = vadd.f32 %v1953, %v2064
  %v2100 = vadd.f32 %v1954, %v2069
  %v2101 = vadd.f32 %v1955, %v2074
  %v2102 = vadd.f32 %v1956, %v2079
  %v2103 = vadd.f32 %v1957, %v2084
  %v2104 = vadd.f32 %v1958, %v2089
  %v2105 = vadd.f32 %v1959, %v2094
  %v2107 = vsel %vm1101, %v1083, 0
  %v2110 = vsel %vm1101, %v1084, 0
  %v2113 = vsel %vm1101, %v1085, 0
  %v2116 = vsel %vm1101, %v1086, 0
  %v2119 = vsel %vm1101, %v1087, 0
  %v2122 = vsel %vm1101, %v1088, 0
  %v2125 = vsel %vm1101, %v1089, 0
  %v2128 = vsel %vm1101, %v1090, 0
  %v2131 = vsel %vm1101, %v1091, 0
  %2133 = vmatprep.subr.mxu0 0.0
  %2134 = vmatpush1.msra.mxu0 %v107
  %2135 = vmatprep.subr.mxu0 0.0
  %2136 = vmatpush1.msra.mxu0 0.0
  %2137 = vmatprep.subr.mxu0 0.0
  %2138 = vmatpush1.msra.mxu0 0.0
  %2139 = vmatprep.subr.mxu0 0.0
  %2140 = vmatpush1.msra.mxu0 0.0
  %2141 = vmatprep.subr.mxu0 0.0
  %2142 = vmatpush1.msra.mxu0 0.0
  %2143 = vmatprep.subr.mxu0 0.0
  %2144 = vmatpush1.msra.mxu0 0.0
  %2145 = vmatprep.subr.mxu0 0.0
  %2146 = vmatpush1.msra.mxu0 0.0
  %2147 = vmatprep.subr.mxu0 0.0
  %2148 = vmatpush1.msra.mxu0 0.0
  %2149 = vmatprep.subr.mxu0 0.0
  %2150 = vmatpush1.msra.mxu0 0.0
  %2151 = vmatprep.subr.mxu0 0.0
  %2152 = vmatpush1.msra.mxu0 0.0
  %2153 = vmatprep.subr.mxu0 0.0
  %2154 = vmatpush1.msra.mxu0 0.0
  %2155 = vmatprep.subr.mxu0 0.0
  %2156 = vmatpush1.msra.mxu0 0.0
  %2157 = vmatprep.subr.mxu0 0.0
  %2158 = vmatpush1.msra.mxu0 0.0
  %2159 = vmatprep.subr.mxu0 0.0
  %2160 = vmatpush1.msra.mxu0 0.0
  %2161 = vmatprep.subr.mxu0 0.0
  %2162 = vmatpush1.msra.mxu0 0.0
  %2163 = vmatprep.subr.mxu0 0.0
  %2164 = vmatpush1.msra.mxu0 0.0
  %2165 = vmatprep.subr.mxu0 0.0
  %2166 = vmatpush1.msra.mxu0 0.0
  %2167 = vmatprep.subr.mxu0 0.0
  %2168 = vmatpush1.msra.mxu0 0.0
  %2169 = vmatprep.subr.mxu0 0.0
  %2170 = vmatpush1.msra.mxu0 0.0
  %2171 = vmatprep.subr.mxu0 0.0
  %2172 = vmatpush1.msra.mxu0 0.0
  %2173 = vmatprep.subr.mxu0 0.0
  %2174 = vmatpush1.msra.mxu0 0.0
  %2175 = vmatprep.subr.mxu0 0.0
  %2176 = vmatpush1.msra.mxu0 0.0
  %2177 = vmatprep.subr.mxu0 0.0
  %2178 = vmatpush1.msra.mxu0 0.0
  %2179 = vmatprep.subr.mxu0 0.0
  %2180 = vmatpush1.msra.mxu0 0.0
  %2181 = vmatprep.subr.mxu0 0.0
  %2182 = vmatpush1.msra.mxu0 0.0
  %2183 = vmatprep.subr.mxu0 0.0
  %2184 = vmatpush1.msra.mxu0 0.0
  %2185 = vmatprep.subr.mxu0 0.0
  %2186 = vmatpush1.msra.mxu0 0.0
  %2187 = vmatprep.subr.mxu0 0.0
  %2188 = vmatpush1.msra.mxu0 0.0
  %2189 = vmatprep.subr.mxu0 0.0
  %2190 = vmatpush1.msra.mxu0 0.0
  %2191 = vmatprep.subr.mxu0 0.0
  %2192 = vmatpush1.msra.mxu0 0.0
  %2193 = vmatprep.subr.mxu0 0.0
  %2194 = vmatpush1.msra.mxu0 0.0
  %2195 = vmatprep.subr.mxu0 0.0
  %2196 = vmatpush1.msra.mxu0 0.0
  %2197 = vmatprep.mubr.f32.mxu0 0.0
  %2198 = vmatmul.mubr.f32.gmra.mrb[0].mxu0 %v2107
  %v2199 = vpop.f32.mrb[0].mxu0
  %v2200 = vadd.f32 0.0, %v2199
  %v2201 = vpop.f32.mrb[0].mxu0
  %2202 = vmatprep.mubr.f32.mxu0 0.0
  %2203 = vmatmul.mubr.f32.gmra.mrb[0].mxu0 %v2110
  %v2204 = vpop.f32.mrb[0].mxu0
  %v2205 = vadd.f32 0.0, %v2204
  %v2206 = vpop.f32.mrb[0].mxu0
  %2207 = vmatprep.mubr.f32.mxu0 0.0
  %2208 = vmatmul.mubr.f32.gmra.mrb[0].mxu0 %v2113
  %v2209 = vpop.f32.mrb[0].mxu0
  %v2210 = vadd.f32 0.0, %v2209
  %v2211 = vpop.f32.mrb[0].mxu0
  %2212 = vmatprep.mubr.f32.mxu0 0.0
  %2213 = vmatmul.mubr.f32.gmra.mrb[0].mxu0 %v2116
  %v2214 = vpop.f32.mrb[0].mxu0
  %v2215 = vadd.f32 0.0, %v2214
  %v2216 = vpop.f32.mrb[0].mxu0
  %2217 = vmatprep.mubr.f32.mxu0 0.0
  %2218 = vmatmul.mubr.f32.gmra.mrb[0].mxu0 %v2119
  %v2219 = vpop.f32.mrb[0].mxu0
  %v2220 = vadd.f32 0.0, %v2219
  %v2221 = vpop.f32.mrb[0].mxu0
  %2222 = vmatprep.mubr.f32.mxu0 0.0
  %2223 = vmatmul.mubr.f32.gmra.mrb[0].mxu0 %v2122
  %v2224 = vpop.f32.mrb[0].mxu0
  %v2225 = vadd.f32 0.0, %v2224
  %v2226 = vpop.f32.mrb[0].mxu0
  %2227 = vmatprep.mubr.f32.mxu0 0.0
  %2228 = vmatmul.mubr.f32.gmra.mrb[0].mxu0 %v2125
  %v2229 = vpop.f32.mrb[0].mxu0
  %v2230 = vadd.f32 0.0, %v2229
  %v2231 = vpop.f32.mrb[0].mxu0
  %2232 = vmatprep.mubr.f32.mxu0 0.0
  %2233 = vmatmul.mubr.f32.gmra.mrb[0].mxu0 %v2128
  %v2234 = vpop.f32.mrb[0].mxu0
  %v2235 = vadd.f32 0.0, %v2234
  %v2236 = vpop.f32.mrb[0].mxu0
  %2237 = vmatprep.mubr.f32.mxu0 0.0
  %2238 = vmatmul.mubr.f32.gmra.mrb[0].mxu0 %v2131
  %v2239 = vpop.f32.mrb[0].mxu0
  %v2240 = vadd.f32 0.0, %v2239
  %v2241 = vpop.f32.mrb[0].mxu0
  %2242 = vdwg.mxu0
  %v2243 = vadd.f32 %v2097, %v2200
  %v2244 = vadd.f32 %v2098, %v2205
  %v2245 = vadd.f32 %v2099, %v2210
  %v2246 = vadd.f32 %v2100, %v2215
  %v2247 = vadd.f32 %v2101, %v2220
  %v2248 = vadd.f32 %v2102, %v2225
  %v2249 = vadd.f32 %v2103, %v2230
  %v2250 = vadd.f32 %v2104, %v2235
  %v2251 = vadd.f32 %v2105, %v2240
  %v2253 = vsel %vm1101, %v1092, 0
  %v2256 = vsel %vm1101, %v1093, 0
  %v2259 = vsel %vm1101, %v1094, 0
  %v2262 = vsel %vm1101, %v1095, 0
  %v2265 = vsel %vm1101, %v1096, 0
  %v2268 = vsel %vm1101, %v1097, 0
  %v2271 = vsel %vm1101, %v1098, 0
  %v2274 = vsel %vm1101, %v1099, 0
  %v2277 = vsel %vm1101, %v1100, 0
  %2279 = vmatprep.subr.mxu0 0.0
  %2280 = vmatpush1.msra.mxu0 %v108
  %2281 = vmatprep.subr.mxu0 0.0
  %2282 = vmatpush1.msra.mxu0 0.0
  %2283 = vmatprep.subr.mxu0 0.0
  %2284 = vmatpush1.msra.mxu0 0.0
  %2285 = vmatprep.subr.mxu0 0.0
  %2286 = vmatpush1.msra.mxu0 0.0
  %2287 = vmatprep.subr.mxu0 0.0
  %2288 = vmatpush1.msra.mxu0 0.0
  %2289 = vmatprep.subr.mxu0 0.0
  %2290 = vmatpush1.msra.mxu0 0.0
  %2291 = vmatprep.subr.mxu0 0.0
  %2292 = vmatpush1.msra.mxu0 0.0
  %2293 = vmatprep.subr.mxu0 0.0
  %2294 = vmatpush1.msra.mxu0 0.0
  %2295 = vmatprep.subr.mxu0 0.0
  %2296 = vmatpush1.msra.mxu0 0.0
  %2297 = vmatprep.subr.mxu0 0.0
  %2298 = vmatpush1.msra.mxu0 0.0
  %2299 = vmatprep.subr.mxu0 0.0
  %2300 = vmatpush1.msra.mxu0 0.0
  %2301 = vmatprep.subr.mxu0 0.0
  %2302 = vmatpush1.msra.mxu0 0.0
  %2303 = vmatprep.subr.mxu0 0.0
  %2304 = vmatpush1.msra.mxu0 0.0
  %2305 = vmatprep.subr.mxu0 0.0
  %2306 = vmatpush1.msra.mxu0 0.0
  %2307 = vmatprep.subr.mxu0 0.0
  %2308 = vmatpush1.msra.mxu0 0.0
  %2309 = vmatprep.subr.mxu0 0.0
  %2310 = vmatpush1.msra.mxu0 0.0
  %2311 = vmatprep.subr.mxu0 0.0
  %2312 = vmatpush1.msra.mxu0 0.0
  %2313 = vmatprep.subr.mxu0 0.0
  %2314 = vmatpush1.msra.mxu0 0.0
  %2315 = vmatprep.subr.mxu0 0.0
  %2316 = vmatpush1.msra.mxu0 0.0
  %2317 = vmatprep.subr.mxu0 0.0
  %2318 = vmatpush1.msra.mxu0 0.0
  %2319 = vmatprep.subr.mxu0 0.0
  %2320 = vmatpush1.msra.mxu0 0.0
  %2321 = vmatprep.subr.mxu0 0.0
  %2322 = vmatpush1.msra.mxu0 0.0
  %2323 = vmatprep.subr.mxu0 0.0
  %2324 = vmatpush1.msra.mxu0 0.0
  %2325 = vmatprep.subr.mxu0 0.0
  %2326 = vmatpush1.msra.mxu0 0.0
  %2327 = vmatprep.subr.mxu0 0.0
  %2328 = vmatpush1.msra.mxu0 0.0
  %2329 = vmatprep.subr.mxu0 0.0
  %2330 = vmatpush1.msra.mxu0 0.0
  %2331 = vmatprep.subr.mxu0 0.0
  %2332 = vmatpush1.msra.mxu0 0.0
  %2333 = vmatprep.subr.mxu0 0.0
  %2334 = vmatpush1.msra.mxu0 0.0
  %2335 = vmatprep.subr.mxu0 0.0
  %2336 = vmatpush1.msra.mxu0 0.0
  %2337 = vmatprep.subr.mxu0 0.0
  %2338 = vmatpush1.msra.mxu0 0.0
  %2339 = vmatprep.subr.mxu0 0.0
  %2340 = vmatpush1.msra.mxu0 0.0
  %2341 = vmatprep.subr.mxu0 0.0
  %2342 = vmatpush1.msra.mxu0 0.0
  %2343 = vmatprep.mubr.f32.mxu0 0.0
  %2344 = vmatmul.mubr.f32.gmra.mrb[0].mxu0 %v2253
  %v2345 = vpop.f32.mrb[0].mxu0
  %v2346 = vadd.f32 0.0, %v2345
  %v2347 = vpop.f32.mrb[0].mxu0
  %2348 = vmatprep.mubr.f32.mxu0 0.0
  %2349 = vmatmul.mubr.f32.gmra.mrb[0].mxu0 %v2256
  %v2350 = vpop.f32.mrb[0].mxu0
  %v2351 = vadd.f32 0.0, %v2350
  %v2352 = vpop.f32.mrb[0].mxu0
  %2353 = vmatprep.mubr.f32.mxu0 0.0
  %2354 = vmatmul.mubr.f32.gmra.mrb[0].mxu0 %v2259
  %v2355 = vpop.f32.mrb[0].mxu0
  %v2356 = vadd.f32 0.0, %v2355
  %v2357 = vpop.f32.mrb[0].mxu0
  %2358 = vmatprep.mubr.f32.mxu0 0.0
  %2359 = vmatmul.mubr.f32.gmra.mrb[0].mxu0 %v2262
  %v2360 = vpop.f32.mrb[0].mxu0
  %v2361 = vadd.f32 0.0, %v2360
  %v2362 = vpop.f32.mrb[0].mxu0
  %2363 = vmatprep.mubr.f32.mxu0 0.0
  %2364 = vmatmul.mubr.f32.gmra.mrb[0].mxu0 %v2265
  %v2365 = vpop.f32.mrb[0].mxu0
  %v2366 = vadd.f32 0.0, %v2365
  %v2367 = vpop.f32.mrb[0].mxu0
  %2368 = vmatprep.mubr.f32.mxu0 0.0
  %2369 = vmatmul.mubr.f32.gmra.mrb[0].mxu0 %v2268
  %v2370 = vpop.f32.mrb[0].mxu0
  %v2371 = vadd.f32 0.0, %v2370
  %v2372 = vpop.f32.mrb[0].mxu0
  %2373 = vmatprep.mubr.f32.mxu0 0.0
  %2374 = vmatmul.mubr.f32.gmra.mrb[0].mxu0 %v2271
  %v2375 = vpop.f32.mrb[0].mxu0
  %v2376 = vadd.f32 0.0, %v2375
  %v2377 = vpop.f32.mrb[0].mxu0
  %2378 = vmatprep.mubr.f32.mxu0 0.0
  %2379 = vmatmul.mubr.f32.gmra.mrb[0].mxu0 %v2274
  %v2380 = vpop.f32.mrb[0].mxu0
  %v2381 = vadd.f32 0.0, %v2380
  %v2382 = vpop.f32.mrb[0].mxu0
  %2383 = vmatprep.mubr.f32.mxu0 0.0
  %2384 = vmatmul.mubr.f32.gmra.mrb[0].mxu0 %v2277
  %v2385 = vpop.f32.mrb[0].mxu0
  %v2386 = vadd.f32 0.0, %v2385
  %v2387 = vpop.f32.mrb[0].mxu0
  %2388 = vdwg.mxu0
  %v2389 = vadd.f32 %v2243, %v2346
  %v2390 = vadd.f32 %v2244, %v2351
  %v2391 = vadd.f32 %v2245, %v2356
  %v2392 = vadd.f32 %v2246, %v2361
  %v2393 = vadd.f32 %v2247, %v2366
  %v2394 = vadd.f32 %v2248, %v2371
  %v2395 = vadd.f32 %v2249, %v2376
  %v2396 = vadd.f32 %v2250, %v2381
  %v2397 = vadd.f32 %v2251, %v2386
  %v2398 = vlaneseq
  %v2399 = vshrl.u32 %v2398, 7
  %v2400 = vsub.s32 1, %v2399
  %v2401 = vrot.slane %v135, %v2400
  %v2402 = vadd.f32 %v2389, %v2401
  %v2403 = vadd.f32 %v2390, %v2401
  %v2404 = vadd.f32 %v2391, %v2401
  %v2405 = vadd.f32 %v2392, %v2401
  %v2406 = vadd.f32 %v2393, %v2401
  %v2407 = vadd.f32 %v2394, %v2401
  %v2408 = vadd.f32 %v2395, %v2401
  %v2409 = vadd.f32 %v2396, %v2401
  %v2410 = vadd.f32 %v2397, %v2401
  %vm2411 = vcmp.ge.f32.partialorder %v2402, 0.0
  %vm2412 = vcmp.ge.f32.partialorder %v2403, 0.0
  %vm2413 = vcmp.ge.f32.partialorder %v2404, 0.0
  %vm2414 = vcmp.ge.f32.partialorder %v2405, 0.0
  %vm2415 = vcmp.ge.f32.partialorder %v2406, 0.0
  %vm2416 = vcmp.ge.f32.partialorder %v2407, 0.0
  %vm2417 = vcmp.ge.f32.partialorder %v2408, 0.0
  %vm2418 = vcmp.ge.f32.partialorder %v2409, 0.0
  %vm2419 = vcmp.ge.f32.partialorder %v2410, 0.0
  %v2420 = vmul.f32 %v2402, 0.01
  %v2421 = vmul.f32 %v2403, 0.01
  %v2422 = vmul.f32 %v2404, 0.01
  %v2423 = vmul.f32 %v2405, 0.01
  %v2424 = vmul.f32 %v2406, 0.01
  %v2425 = vmul.f32 %v2407, 0.01
  %v2426 = vmul.f32 %v2408, 0.01
  %v2427 = vmul.f32 %v2409, 0.01
  %v2428 = vmul.f32 %v2410, 0.01
  %v2429 = vsel %vm2411, %v2402, %v2420
  %v2430 = vsel %vm2412, %v2403, %v2421
  %v2431 = vsel %vm2413, %v2404, %v2422
  %v2432 = vsel %vm2414, %v2405, %v2423
  %v2433 = vsel %vm2415, %v2406, %v2424
  %v2434 = vsel %vm2416, %v2407, %v2425
  %v2435 = vsel %vm2417, %v2408, %v2426
  %v2436 = vsel %vm2418, %v2409, %v2427
  %v2437 = vsel %vm2419, %v2410, %v2428
  %vm2438 = vcmask 130048
  %v2440 = vsel %vm2438, %v2430, 0
  %2442 = vmatprep.subr.mxu0 0.0
  %2443 = vmatpush1.msra.mxu0 %v111
  %2444 = vmatprep.subr.mxu0 0.0
  %2445 = vmatpush1.msra.mxu0 %v112
  %2446 = vmatprep.subr.mxu0 0.0
  %2447 = vmatpush1.msra.mxu0 0.0
  %2448 = vmatprep.subr.mxu0 0.0
  %2449 = vmatpush1.msra.mxu0 0.0
  %2450 = vmatprep.subr.mxu0 0.0
  %2451 = vmatpush1.msra.mxu0 0.0
  %2452 = vmatprep.subr.mxu0 0.0
  %2453 = vmatpush1.msra.mxu0 0.0
  %2454 = vmatprep.subr.mxu0 0.0
  %2455 = vmatpush1.msra.mxu0 0.0
  %2456 = vmatprep.subr.mxu0 0.0
  %2457 = vmatpush1.msra.mxu0 0.0
  %2458 = vmatprep.subr.mxu0 0.0
  %2459 = vmatpush1.msra.mxu0 0.0
  %2460 = vmatprep.subr.mxu0 0.0
  %2461 = vmatpush1.msra.mxu0 0.0
  %2462 = vmatprep.subr.mxu0 0.0
  %2463 = vmatpush1.msra.mxu0 0.0
  %2464 = vmatprep.subr.mxu0 0.0
  %2465 = vmatpush1.msra.mxu0 0.0
  %2466 = vmatprep.subr.mxu0 0.0
  %2467 = vmatpush1.msra.mxu0 0.0
  %2468 = vmatprep.subr.mxu0 0.0
  %2469 = vmatpush1.msra.mxu0 0.0
  %2470 = vmatprep.subr.mxu0 0.0
  %2471 = vmatpush1.msra.mxu0 0.0
  %2472 = vmatprep.subr.mxu0 0.0
  %2473 = vmatpush1.msra.mxu0 0.0
  %2474 = vmatprep.subr.mxu0 0.0
  %2475 = vmatpush1.msra.mxu0 0.0
  %2476 = vmatprep.subr.mxu0 0.0
  %2477 = vmatpush1.msra.mxu0 0.0
  %2478 = vmatprep.subr.mxu0 0.0
  %2479 = vmatpush1.msra.mxu0 0.0
  %2480 = vmatprep.subr.mxu0 0.0
  %2481 = vmatpush1.msra.mxu0 0.0
  %2482 = vmatprep.subr.mxu0 0.0
  %2483 = vmatpush1.msra.mxu0 0.0
  %2484 = vmatprep.subr.mxu0 0.0
  %2485 = vmatpush1.msra.mxu0 0.0
  %2486 = vmatprep.subr.mxu0 0.0
  %2487 = vmatpush1.msra.mxu0 0.0
  %2488 = vmatprep.subr.mxu0 0.0
  %2489 = vmatpush1.msra.mxu0 0.0
  %2490 = vmatprep.subr.mxu0 0.0
  %2491 = vmatpush1.msra.mxu0 0.0
  %2492 = vmatprep.subr.mxu0 0.0
  %2493 = vmatpush1.msra.mxu0 0.0
  %2494 = vmatprep.subr.mxu0 0.0
  %2495 = vmatpush1.msra.mxu0 0.0
  %2496 = vmatprep.subr.mxu0 0.0
  %2497 = vmatpush1.msra.mxu0 0.0
  %2498 = vmatprep.subr.mxu0 0.0
  %2499 = vmatpush1.msra.mxu0 0.0
  %2500 = vmatprep.subr.mxu0 0.0
  %2501 = vmatpush1.msra.mxu0 0.0
  %2502 = vmatprep.subr.mxu0 0.0
  %2503 = vmatpush1.msra.mxu0 0.0
  %2504 = vmatprep.subr.mxu0 0.0
  %2505 = vmatpush1.msra.mxu0 0.0
  %2506 = vmatprep.mubr.f32.mxu0 0.0
  %2507 = vmatmul.mubr.f32.gmra.mrb[0].mxu0 %v2440
  %v2508 = vpop.f32.mrb[0].mxu0
  %v2509 = vadd.f32 0.0, %v2508
  %v2510 = vpop.f32.mrb[0].mxu0
  %2511 = vdwg.mxu0
  %v2513 = vsel %vm2438, %v2429, 0
  %2515 = vmatprep.subr.mxu0 0.0
  %2516 = vmatpush1.msra.mxu0 %v109
  %2517 = vmatprep.subr.mxu0 0.0
  %2518 = vmatpush1.msra.mxu0 %v110
  %2519 = vmatprep.subr.mxu0 0.0
  %2520 = vmatpush1.msra.mxu0 0.0
  %2521 = vmatprep.subr.mxu0 0.0
  %2522 = vmatpush1.msra.mxu0 0.0
  %2523 = vmatprep.subr.mxu0 0.0
  %2524 = vmatpush1.msra.mxu0 0.0
  %2525 = vmatprep.subr.mxu0 0.0
  %2526 = vmatpush1.msra.mxu0 0.0
  %2527 = vmatprep.subr.mxu0 0.0
  %2528 = vmatpush1.msra.mxu0 0.0
  %2529 = vmatprep.subr.mxu0 0.0
  %2530 = vmatpush1.msra.mxu0 0.0
  %2531 = vmatprep.subr.mxu0 0.0
  %2532 = vmatpush1.msra.mxu0 0.0
  %2533 = vmatprep.subr.mxu0 0.0
  %2534 = vmatpush1.msra.mxu0 0.0
  %2535 = vmatprep.subr.mxu0 0.0
  %2536 = vmatpush1.msra.mxu0 0.0
  %2537 = vmatprep.subr.mxu0 0.0
  %2538 = vmatpush1.msra.mxu0 0.0
  %2539 = vmatprep.subr.mxu0 0.0
  %2540 = vmatpush1.msra.mxu0 0.0
  %2541 = vmatprep.subr.mxu0 0.0
  %2542 = vmatpush1.msra.mxu0 0.0
  %2543 = vmatprep.subr.mxu0 0.0
  %2544 = vmatpush1.msra.mxu0 0.0
  %2545 = vmatprep.subr.mxu0 0.0
  %2546 = vmatpush1.msra.mxu0 0.0
  %2547 = vmatprep.subr.mxu0 0.0
  %2548 = vmatpush1.msra.mxu0 0.0
  %2549 = vmatprep.subr.mxu0 0.0
  %2550 = vmatpush1.msra.mxu0 0.0
  %2551 = vmatprep.subr.mxu0 0.0
  %2552 = vmatpush1.msra.mxu0 0.0
  %2553 = vmatprep.subr.mxu0 0.0
  %2554 = vmatpush1.msra.mxu0 0.0
  %2555 = vmatprep.subr.mxu0 0.0
  %2556 = vmatpush1.msra.mxu0 0.0
  %2557 = vmatprep.subr.mxu0 0.0
  %2558 = vmatpush1.msra.mxu0 0.0
  %2559 = vmatprep.subr.mxu0 0.0
  %2560 = vmatpush1.msra.mxu0 0.0
  %2561 = vmatprep.subr.mxu0 0.0
  %2562 = vmatpush1.msra.mxu0 0.0
  %2563 = vmatprep.subr.mxu0 0.0
  %2564 = vmatpush1.msra.mxu0 0.0
  %2565 = vmatprep.subr.mxu0 0.0
  %2566 = vmatpush1.msra.mxu0 0.0
  %2567 = vmatprep.subr.mxu0 0.0
  %2568 = vmatpush1.msra.mxu0 0.0
  %2569 = vmatprep.subr.mxu0 0.0
  %2570 = vmatpush1.msra.mxu0 0.0
  %2571 = vmatprep.subr.mxu0 0.0
  %2572 = vmatpush1.msra.mxu0 0.0
  %2573 = vmatprep.subr.mxu0 0.0
  %2574 = vmatpush1.msra.mxu0 0.0
  %2575 = vmatprep.subr.mxu0 0.0
  %2576 = vmatpush1.msra.mxu0 0.0
  %2577 = vmatprep.subr.mxu0 0.0
  %2578 = vmatpush1.msra.mxu0 0.0
  %2579 = vmatprep.mubr.f32.mxu0 0.0
  %2580 = vmatmul.mubr.f32.gmra.mrb[0].mxu0 %v2513
  %v2581 = vpop.f32.mrb[0].mxu0
  %v2582 = vadd.f32 %v2509, %v2581
  %v2583 = vpop.f32.mrb[0].mxu0
  %2584 = vdwg.mxu0
  %v2586 = vsel %vm2438, %v2431, 0
  %2588 = vmatprep.subr.mxu0 0.0
  %2589 = vmatpush1.msra.mxu0 %v113
  %2590 = vmatprep.subr.mxu0 0.0
  %2591 = vmatpush1.msra.mxu0 %v114
  %2592 = vmatprep.subr.mxu0 0.0
  %2593 = vmatpush1.msra.mxu0 0.0
  %2594 = vmatprep.subr.mxu0 0.0
  %2595 = vmatpush1.msra.mxu0 0.0
  %2596 = vmatprep.subr.mxu0 0.0
  %2597 = vmatpush1.msra.mxu0 0.0
  %2598 = vmatprep.subr.mxu0 0.0
  %2599 = vmatpush1.msra.mxu0 0.0
  %2600 = vmatprep.subr.mxu0 0.0
  %2601 = vmatpush1.msra.mxu0 0.0
  %2602 = vmatprep.subr.mxu0 0.0
  %2603 = vmatpush1.msra.mxu0 0.0
  %2604 = vmatprep.subr.mxu0 0.0
  %2605 = vmatpush1.msra.mxu0 0.0
  %2606 = vmatprep.subr.mxu0 0.0
  %2607 = vmatpush1.msra.mxu0 0.0
  %2608 = vmatprep.subr.mxu0 0.0
  %2609 = vmatpush1.msra.mxu0 0.0
  %2610 = vmatprep.subr.mxu0 0.0
  %2611 = vmatpush1.msra.mxu0 0.0
  %2612 = vmatprep.subr.mxu0 0.0
  %2613 = vmatpush1.msra.mxu0 0.0
  %2614 = vmatprep.subr.mxu0 0.0
  %2615 = vmatpush1.msra.mxu0 0.0
  %2616 = vmatprep.subr.mxu0 0.0
  %2617 = vmatpush1.msra.mxu0 0.0
  %2618 = vmatprep.subr.mxu0 0.0
  %2619 = vmatpush1.msra.mxu0 0.0
  %2620 = vmatprep.subr.mxu0 0.0
  %2621 = vmatpush1.msra.mxu0 0.0
  %2622 = vmatprep.subr.mxu0 0.0
  %2623 = vmatpush1.msra.mxu0 0.0
  %2624 = vmatprep.subr.mxu0 0.0
  %2625 = vmatpush1.msra.mxu0 0.0
  %2626 = vmatprep.subr.mxu0 0.0
  %2627 = vmatpush1.msra.mxu0 0.0
  %2628 = vmatprep.subr.mxu0 0.0
  %2629 = vmatpush1.msra.mxu0 0.0
  %2630 = vmatprep.subr.mxu0 0.0
  %2631 = vmatpush1.msra.mxu0 0.0
  %2632 = vmatprep.subr.mxu0 0.0
  %2633 = vmatpush1.msra.mxu0 0.0
  %2634 = vmatprep.subr.mxu0 0.0
  %2635 = vmatpush1.msra.mxu0 0.0
  %2636 = vmatprep.subr.mxu0 0.0
  %2637 = vmatpush1.msra.mxu0 0.0
  %2638 = vmatprep.subr.mxu0 0.0
  %2639 = vmatpush1.msra.mxu0 0.0
  %2640 = vmatprep.subr.mxu0 0.0
  %2641 = vmatpush1.msra.mxu0 0.0
  %2642 = vmatprep.subr.mxu0 0.0
  %2643 = vmatpush1.msra.mxu0 0.0
  %2644 = vmatprep.subr.mxu0 0.0
  %2645 = vmatpush1.msra.mxu0 0.0
  %2646 = vmatprep.subr.mxu0 0.0
  %2647 = vmatpush1.msra.mxu0 0.0
  %2648 = vmatprep.subr.mxu0 0.0
  %2649 = vmatpush1.msra.mxu0 0.0
  %2650 = vmatprep.subr.mxu0 0.0
  %2651 = vmatpush1.msra.mxu0 0.0
  %2652 = vmatprep.mubr.f32.mxu0 0.0
  %2653 = vmatmul.mubr.f32.gmra.mrb[0].mxu0 %v2586
  %v2654 = vpop.f32.mrb[0].mxu0
  %v2655 = vadd.f32 0.0, %v2654
  %v2656 = vpop.f32.mrb[0].mxu0
  %2657 = vdwg.mxu0
  %v2658 = vadd.f32 %v2582, %v2655
  %v2660 = vsel %vm2438, %v2432, 0
  %2662 = vmatprep.subr.mxu0 0.0
  %2663 = vmatpush1.msra.mxu0 %v115
  %2664 = vmatprep.subr.mxu0 0.0
  %2665 = vmatpush1.msra.mxu0 %v116
  %2666 = vmatprep.subr.mxu0 0.0
  %2667 = vmatpush1.msra.mxu0 0.0
  %2668 = vmatprep.subr.mxu0 0.0
  %2669 = vmatpush1.msra.mxu0 0.0
  %2670 = vmatprep.subr.mxu0 0.0
  %2671 = vmatpush1.msra.mxu0 0.0
  %2672 = vmatprep.subr.mxu0 0.0
  %2673 = vmatpush1.msra.mxu0 0.0
  %2674 = vmatprep.subr.mxu0 0.0
  %2675 = vmatpush1.msra.mxu0 0.0
  %2676 = vmatprep.subr.mxu0 0.0
  %2677 = vmatpush1.msra.mxu0 0.0
  %2678 = vmatprep.subr.mxu0 0.0
  %2679 = vmatpush1.msra.mxu0 0.0
  %2680 = vmatprep.subr.mxu0 0.0
  %2681 = vmatpush1.msra.mxu0 0.0
  %2682 = vmatprep.subr.mxu0 0.0
  %2683 = vmatpush1.msra.mxu0 0.0
  %2684 = vmatprep.subr.mxu0 0.0
  %2685 = vmatpush1.msra.mxu0 0.0
  %2686 = vmatprep.subr.mxu0 0.0
  %2687 = vmatpush1.msra.mxu0 0.0
  %2688 = vmatprep.subr.mxu0 0.0
  %2689 = vmatpush1.msra.mxu0 0.0
  %2690 = vmatprep.subr.mxu0 0.0
  %2691 = vmatpush1.msra.mxu0 0.0
  %2692 = vmatprep.subr.mxu0 0.0
  %2693 = vmatpush1.msra.mxu0 0.0
  %2694 = vmatprep.subr.mxu0 0.0
  %2695 = vmatpush1.msra.mxu0 0.0
  %2696 = vmatprep.subr.mxu0 0.0
  %2697 = vmatpush1.msra.mxu0 0.0
  %2698 = vmatprep.subr.mxu0 0.0
  %2699 = vmatpush1.msra.mxu0 0.0
  %2700 = vmatprep.subr.mxu0 0.0
  %2701 = vmatpush1.msra.mxu0 0.0
  %2702 = vmatprep.subr.mxu0 0.0
  %2703 = vmatpush1.msra.mxu0 0.0
  %2704 = vmatprep.subr.mxu0 0.0
  %2705 = vmatpush1.msra.mxu0 0.0
  %2706 = vmatprep.subr.mxu0 0.0
  %2707 = vmatpush1.msra.mxu0 0.0
  %2708 = vmatprep.subr.mxu0 0.0
  %2709 = vmatpush1.msra.mxu0 0.0
  %2710 = vmatprep.subr.mxu0 0.0
  %2711 = vmatpush1.msra.mxu0 0.0
  %2712 = vmatprep.subr.mxu0 0.0
  %2713 = vmatpush1.msra.mxu0 0.0
  %2714 = vmatprep.subr.mxu0 0.0
  %2715 = vmatpush1.msra.mxu0 0.0
  %2716 = vmatprep.subr.mxu0 0.0
  %2717 = vmatpush1.msra.mxu0 0.0
  %2718 = vmatprep.subr.mxu0 0.0
  %2719 = vmatpush1.msra.mxu0 0.0
  %2720 = vmatprep.subr.mxu0 0.0
  %2721 = vmatpush1.msra.mxu0 0.0
  %2722 = vmatprep.subr.mxu0 0.0
  %2723 = vmatpush1.msra.mxu0 0.0
  %2724 = vmatprep.subr.mxu0 0.0
  %2725 = vmatpush1.msra.mxu0 0.0
  %2726 = vmatprep.mubr.f32.mxu0 0.0
  %2727 = vmatmul.mubr.f32.gmra.mrb[0].mxu0 %v2660
  %v2728 = vpop.f32.mrb[0].mxu0
  %v2729 = vadd.f32 0.0, %v2728
  %v2730 = vpop.f32.mrb[0].mxu0
  %2731 = vdwg.mxu0
  %v2732 = vadd.f32 %v2658, %v2729
  %v2734 = vsel %vm2438, %v2433, 0
  %2736 = vmatprep.subr.mxu0 0.0
  %2737 = vmatpush1.msra.mxu0 %v117
  %2738 = vmatprep.subr.mxu0 0.0
  %2739 = vmatpush1.msra.mxu0 %v118
  %2740 = vmatprep.subr.mxu0 0.0
  %2741 = vmatpush1.msra.mxu0 0.0
  %2742 = vmatprep.subr.mxu0 0.0
  %2743 = vmatpush1.msra.mxu0 0.0
  %2744 = vmatprep.subr.mxu0 0.0
  %2745 = vmatpush1.msra.mxu0 0.0
  %2746 = vmatprep.subr.mxu0 0.0
  %2747 = vmatpush1.msra.mxu0 0.0
  %2748 = vmatprep.subr.mxu0 0.0
  %2749 = vmatpush1.msra.mxu0 0.0
  %2750 = vmatprep.subr.mxu0 0.0
  %2751 = vmatpush1.msra.mxu0 0.0
  %2752 = vmatprep.subr.mxu0 0.0
  %2753 = vmatpush1.msra.mxu0 0.0
  %2754 = vmatprep.subr.mxu0 0.0
  %2755 = vmatpush1.msra.mxu0 0.0
  %2756 = vmatprep.subr.mxu0 0.0
  %2757 = vmatpush1.msra.mxu0 0.0
  %2758 = vmatprep.subr.mxu0 0.0
  %2759 = vmatpush1.msra.mxu0 0.0
  %2760 = vmatprep.subr.mxu0 0.0
  %2761 = vmatpush1.msra.mxu0 0.0
  %2762 = vmatprep.subr.mxu0 0.0
  %2763 = vmatpush1.msra.mxu0 0.0
  %2764 = vmatprep.subr.mxu0 0.0
  %2765 = vmatpush1.msra.mxu0 0.0
  %2766 = vmatprep.subr.mxu0 0.0
  %2767 = vmatpush1.msra.mxu0 0.0
  %2768 = vmatprep.subr.mxu0 0.0
  %2769 = vmatpush1.msra.mxu0 0.0
  %2770 = vmatprep.subr.mxu0 0.0
  %2771 = vmatpush1.msra.mxu0 0.0
  %2772 = vmatprep.subr.mxu0 0.0
  %2773 = vmatpush1.msra.mxu0 0.0
  %2774 = vmatprep.subr.mxu0 0.0
  %2775 = vmatpush1.msra.mxu0 0.0
  %2776 = vmatprep.subr.mxu0 0.0
  %2777 = vmatpush1.msra.mxu0 0.0
  %2778 = vmatprep.subr.mxu0 0.0
  %2779 = vmatpush1.msra.mxu0 0.0
  %2780 = vmatprep.subr.mxu0 0.0
  %2781 = vmatpush1.msra.mxu0 0.0
  %2782 = vmatprep.subr.mxu0 0.0
  %2783 = vmatpush1.msra.mxu0 0.0
  %2784 = vmatprep.subr.mxu0 0.0
  %2785 = vmatpush1.msra.mxu0 0.0
  %2786 = vmatprep.subr.mxu0 0.0
  %2787 = vmatpush1.msra.mxu0 0.0
  %2788 = vmatprep.subr.mxu0 0.0
  %2789 = vmatpush1.msra.mxu0 0.0
  %2790 = vmatprep.subr.mxu0 0.0
  %2791 = vmatpush1.msra.mxu0 0.0
  %2792 = vmatprep.subr.mxu0 0.0
  %2793 = vmatpush1.msra.mxu0 0.0
  %2794 = vmatprep.subr.mxu0 0.0
  %2795 = vmatpush1.msra.mxu0 0.0
  %2796 = vmatprep.subr.mxu0 0.0
  %2797 = vmatpush1.msra.mxu0 0.0
  %2798 = vmatprep.subr.mxu0 0.0
  %2799 = vmatpush1.msra.mxu0 0.0
  %2800 = vmatprep.mubr.f32.mxu0 0.0
  %2801 = vmatmul.mubr.f32.gmra.mrb[0].mxu0 %v2734
  %v2802 = vpop.f32.mrb[0].mxu0
  %v2803 = vadd.f32 0.0, %v2802
  %v2804 = vpop.f32.mrb[0].mxu0
  %2805 = vdwg.mxu0
  %v2806 = vadd.f32 %v2732, %v2803
  %v2808 = vsel %vm2438, %v2434, 0
  %2810 = vmatprep.subr.mxu0 0.0
  %2811 = vmatpush1.msra.mxu0 %v119
  %2812 = vmatprep.subr.mxu0 0.0
  %2813 = vmatpush1.msra.mxu0 %v120
  %2814 = vmatprep.subr.mxu0 0.0
  %2815 = vmatpush1.msra.mxu0 0.0
  %2816 = vmatprep.subr.mxu0 0.0
  %2817 = vmatpush1.msra.mxu0 0.0
  %2818 = vmatprep.subr.mxu0 0.0
  %2819 = vmatpush1.msra.mxu0 0.0
  %2820 = vmatprep.subr.mxu0 0.0
  %2821 = vmatpush1.msra.mxu0 0.0
  %2822 = vmatprep.subr.mxu0 0.0
  %2823 = vmatpush1.msra.mxu0 0.0
  %2824 = vmatprep.subr.mxu0 0.0
  %2825 = vmatpush1.msra.mxu0 0.0
  %2826 = vmatprep.subr.mxu0 0.0
  %2827 = vmatpush1.msra.mxu0 0.0
  %2828 = vmatprep.subr.mxu0 0.0
  %2829 = vmatpush1.msra.mxu0 0.0
  %2830 = vmatprep.subr.mxu0 0.0
  %2831 = vmatpush1.msra.mxu0 0.0
  %2832 = vmatprep.subr.mxu0 0.0
  %2833 = vmatpush1.msra.mxu0 0.0
  %2834 = vmatprep.subr.mxu0 0.0
  %2835 = vmatpush1.msra.mxu0 0.0
  %2836 = vmatprep.subr.mxu0 0.0
  %2837 = vmatpush1.msra.mxu0 0.0
  %2838 = vmatprep.subr.mxu0 0.0
  %2839 = vmatpush1.msra.mxu0 0.0
  %2840 = vmatprep.subr.mxu0 0.0
  %2841 = vmatpush1.msra.mxu0 0.0
  %2842 = vmatprep.subr.mxu0 0.0
  %2843 = vmatpush1.msra.mxu0 0.0
  %2844 = vmatprep.subr.mxu0 0.0
  %2845 = vmatpush1.msra.mxu0 0.0
  %2846 = vmatprep.subr.mxu0 0.0
  %2847 = vmatpush1.msra.mxu0 0.0
  %2848 = vmatprep.subr.mxu0 0.0
  %2849 = vmatpush1.msra.mxu0 0.0
  %2850 = vmatprep.subr.mxu0 0.0
  %2851 = vmatpush1.msra.mxu0 0.0
  %2852 = vmatprep.subr.mxu0 0.0
  %2853 = vmatpush1.msra.mxu0 0.0
  %2854 = vmatprep.subr.mxu0 0.0
  %2855 = vmatpush1.msra.mxu0 0.0
  %2856 = vmatprep.subr.mxu0 0.0
  %2857 = vmatpush1.msra.mxu0 0.0
  %2858 = vmatprep.subr.mxu0 0.0
  %2859 = vmatpush1.msra.mxu0 0.0
  %2860 = vmatprep.subr.mxu0 0.0
  %2861 = vmatpush1.msra.mxu0 0.0
  %2862 = vmatprep.subr.mxu0 0.0
  %2863 = vmatpush1.msra.mxu0 0.0
  %2864 = vmatprep.subr.mxu0 0.0
  %2865 = vmatpush1.msra.mxu0 0.0
  %2866 = vmatprep.subr.mxu0 0.0
  %2867 = vmatpush1.msra.mxu0 0.0
  %2868 = vmatprep.subr.mxu0 0.0
  %2869 = vmatpush1.msra.mxu0 0.0
  %2870 = vmatprep.subr.mxu0 0.0
  %2871 = vmatpush1.msra.mxu0 0.0
  %2872 = vmatprep.subr.mxu0 0.0
  %2873 = vmatpush1.msra.mxu0 0.0
  %2874 = vmatprep.mubr.f32.mxu0 0.0
  %2875 = vmatmul.mubr.f32.gmra.mrb[0].mxu0 %v2808
  %v2876 = vpop.f32.mrb[0].mxu0
  %v2877 = vadd.f32 0.0, %v2876
  %v2878 = vpop.f32.mrb[0].mxu0
  %2879 = vdwg.mxu0
  %v2880 = vadd.f32 %v2806, %v2877
  %v2882 = vsel %vm2438, %v2435, 0
  %2884 = vmatprep.subr.mxu0 0.0
  %2885 = vmatpush1.msra.mxu0 %v121
  %2886 = vmatprep.subr.mxu0 0.0
  %2887 = vmatpush1.msra.mxu0 %v122
  %2888 = vmatprep.subr.mxu0 0.0
  %2889 = vmatpush1.msra.mxu0 0.0
  %2890 = vmatprep.subr.mxu0 0.0
  %2891 = vmatpush1.msra.mxu0 0.0
  %2892 = vmatprep.subr.mxu0 0.0
  %2893 = vmatpush1.msra.mxu0 0.0
  %2894 = vmatprep.subr.mxu0 0.0
  %2895 = vmatpush1.msra.mxu0 0.0
  %2896 = vmatprep.subr.mxu0 0.0
  %2897 = vmatpush1.msra.mxu0 0.0
  %2898 = vmatprep.subr.mxu0 0.0
  %2899 = vmatpush1.msra.mxu0 0.0
  %2900 = vmatprep.subr.mxu0 0.0
  %2901 = vmatpush1.msra.mxu0 0.0
  %2902 = vmatprep.subr.mxu0 0.0
  %2903 = vmatpush1.msra.mxu0 0.0
  %2904 = vmatprep.subr.mxu0 0.0
  %2905 = vmatpush1.msra.mxu0 0.0
  %2906 = vmatprep.subr.mxu0 0.0
  %2907 = vmatpush1.msra.mxu0 0.0
  %2908 = vmatprep.subr.mxu0 0.0
  %2909 = vmatpush1.msra.mxu0 0.0
  %2910 = vmatprep.subr.mxu0 0.0
  %2911 = vmatpush1.msra.mxu0 0.0
  %2912 = vmatprep.subr.mxu0 0.0
  %2913 = vmatpush1.msra.mxu0 0.0
  %2914 = vmatprep.subr.mxu0 0.0
  %2915 = vmatpush1.msra.mxu0 0.0
  %2916 = vmatprep.subr.mxu0 0.0
  %2917 = vmatpush1.msra.mxu0 0.0
  %2918 = vmatprep.subr.mxu0 0.0
  %2919 = vmatpush1.msra.mxu0 0.0
  %2920 = vmatprep.subr.mxu0 0.0
  %2921 = vmatpush1.msra.mxu0 0.0
  %2922 = vmatprep.subr.mxu0 0.0
  %2923 = vmatpush1.msra.mxu0 0.0
  %2924 = vmatprep.subr.mxu0 0.0
  %2925 = vmatpush1.msra.mxu0 0.0
  %2926 = vmatprep.subr.mxu0 0.0
  %2927 = vmatpush1.msra.mxu0 0.0
  %2928 = vmatprep.subr.mxu0 0.0
  %2929 = vmatpush1.msra.mxu0 0.0
  %2930 = vmatprep.subr.mxu0 0.0
  %2931 = vmatpush1.msra.mxu0 0.0
  %2932 = vmatprep.subr.mxu0 0.0
  %2933 = vmatpush1.msra.mxu0 0.0
  %2934 = vmatprep.subr.mxu0 0.0
  %2935 = vmatpush1.msra.mxu0 0.0
  %2936 = vmatprep.subr.mxu0 0.0
  %2937 = vmatpush1.msra.mxu0 0.0
  %2938 = vmatprep.subr.mxu0 0.0
  %2939 = vmatpush1.msra.mxu0 0.0
  %2940 = vmatprep.subr.mxu0 0.0
  %2941 = vmatpush1.msra.mxu0 0.0
  %2942 = vmatprep.subr.mxu0 0.0
  %2943 = vmatpush1.msra.mxu0 0.0
  %2944 = vmatprep.subr.mxu0 0.0
  %2945 = vmatpush1.msra.mxu0 0.0
  %2946 = vmatprep.subr.mxu0 0.0
  %2947 = vmatpush1.msra.mxu0 0.0
  %2948 = vmatprep.mubr.f32.mxu0 0.0
  %2949 = vmatmul.mubr.f32.gmra.mrb[0].mxu0 %v2882
  %v2950 = vpop.f32.mrb[0].mxu0
  %v2951 = vadd.f32 0.0, %v2950
  %v2952 = vpop.f32.mrb[0].mxu0
  %2953 = vdwg.mxu0
  %v2954 = vadd.f32 %v2880, %v2951
  %v2956 = vsel %vm2438, %v2436, 0
  %2958 = vmatprep.subr.mxu0 0.0
  %2959 = vmatpush1.msra.mxu0 %v123
  %2960 = vmatprep.subr.mxu0 0.0
  %2961 = vmatpush1.msra.mxu0 %v124
  %2962 = vmatprep.subr.mxu0 0.0
  %2963 = vmatpush1.msra.mxu0 0.0
  %2964 = vmatprep.subr.mxu0 0.0
  %2965 = vmatpush1.msra.mxu0 0.0
  %2966 = vmatprep.subr.mxu0 0.0
  %2967 = vmatpush1.msra.mxu0 0.0
  %2968 = vmatprep.subr.mxu0 0.0
  %2969 = vmatpush1.msra.mxu0 0.0
  %2970 = vmatprep.subr.mxu0 0.0
  %2971 = vmatpush1.msra.mxu0 0.0
  %2972 = vmatprep.subr.mxu0 0.0
  %2973 = vmatpush1.msra.mxu0 0.0
  %2974 = vmatprep.subr.mxu0 0.0
  %2975 = vmatpush1.msra.mxu0 0.0
  %2976 = vmatprep.subr.mxu0 0.0
  %2977 = vmatpush1.msra.mxu0 0.0
  %2978 = vmatprep.subr.mxu0 0.0
  %2979 = vmatpush1.msra.mxu0 0.0
  %2980 = vmatprep.subr.mxu0 0.0
  %2981 = vmatpush1.msra.mxu0 0.0
  %2982 = vmatprep.subr.mxu0 0.0
  %2983 = vmatpush1.msra.mxu0 0.0
  %2984 = vmatprep.subr.mxu0 0.0
  %2985 = vmatpush1.msra.mxu0 0.0
  %2986 = vmatprep.subr.mxu0 0.0
  %2987 = vmatpush1.msra.mxu0 0.0
  %2988 = vmatprep.subr.mxu0 0.0
  %2989 = vmatpush1.msra.mxu0 0.0
  %2990 = vmatprep.subr.mxu0 0.0
  %2991 = vmatpush1.msra.mxu0 0.0
  %2992 = vmatprep.subr.mxu0 0.0
  %2993 = vmatpush1.msra.mxu0 0.0
  %2994 = vmatprep.subr.mxu0 0.0
  %2995 = vmatpush1.msra.mxu0 0.0
  %2996 = vmatprep.subr.mxu0 0.0
  %2997 = vmatpush1.msra.mxu0 0.0
  %2998 = vmatprep.subr.mxu0 0.0
  %2999 = vmatpush1.msra.mxu0 0.0
  %3000 = vmatprep.subr.mxu0 0.0
  %3001 = vmatpush1.msra.mxu0 0.0
  %3002 = vmatprep.subr.mxu0 0.0
  %3003 = vmatpush1.msra.mxu0 0.0
  %3004 = vmatprep.subr.mxu0 0.0
  %3005 = vmatpush1.msra.mxu0 0.0
  %3006 = vmatprep.subr.mxu0 0.0
  %3007 = vmatpush1.msra.mxu0 0.0
  %3008 = vmatprep.subr.mxu0 0.0
  %3009 = vmatpush1.msra.mxu0 0.0
  %3010 = vmatprep.subr.mxu0 0.0
  %3011 = vmatpush1.msra.mxu0 0.0
  %3012 = vmatprep.subr.mxu0 0.0
  %3013 = vmatpush1.msra.mxu0 0.0
  %3014 = vmatprep.subr.mxu0 0.0
  %3015 = vmatpush1.msra.mxu0 0.0
  %3016 = vmatprep.subr.mxu0 0.0
  %3017 = vmatpush1.msra.mxu0 0.0
  %3018 = vmatprep.subr.mxu0 0.0
  %3019 = vmatpush1.msra.mxu0 0.0
  %3020 = vmatprep.subr.mxu0 0.0
  %3021 = vmatpush1.msra.mxu0 0.0
  %3022 = vmatprep.mubr.f32.mxu0 0.0
  %3023 = vmatmul.mubr.f32.gmra.mrb[0].mxu0 %v2956
  %v3024 = vpop.f32.mrb[0].mxu0
  %v3025 = vadd.f32 0.0, %v3024
  %v3026 = vpop.f32.mrb[0].mxu0
  %3027 = vdwg.mxu0
  %v3028 = vadd.f32 %v2954, %v3025
  %v3030 = vsel %vm2438, %v2437, 0
  %3032 = vmatprep.subr.mxu0 0.0
  %3033 = vmatpush1.msra.mxu0 %v125
  %3034 = vmatprep.subr.mxu0 0.0
  %3035 = vmatpush1.msra.mxu0 %v126
  %3036 = vmatprep.subr.mxu0 0.0
  %3037 = vmatpush1.msra.mxu0 0.0
  %3038 = vmatprep.subr.mxu0 0.0
  %3039 = vmatpush1.msra.mxu0 0.0
  %3040 = vmatprep.subr.mxu0 0.0
  %3041 = vmatpush1.msra.mxu0 0.0
  %3042 = vmatprep.subr.mxu0 0.0
  %3043 = vmatpush1.msra.mxu0 0.0
  %3044 = vmatprep.subr.mxu0 0.0
  %3045 = vmatpush1.msra.mxu0 0.0
  %3046 = vmatprep.subr.mxu0 0.0
  %3047 = vmatpush1.msra.mxu0 0.0
  %3048 = vmatprep.subr.mxu0 0.0
  %3049 = vmatpush1.msra.mxu0 0.0
  %3050 = vmatprep.subr.mxu0 0.0
  %3051 = vmatpush1.msra.mxu0 0.0
  %3052 = vmatprep.subr.mxu0 0.0
  %3053 = vmatpush1.msra.mxu0 0.0
  %3054 = vmatprep.subr.mxu0 0.0
  %3055 = vmatpush1.msra.mxu0 0.0
  %3056 = vmatprep.subr.mxu0 0.0
  %3057 = vmatpush1.msra.mxu0 0.0
  %3058 = vmatprep.subr.mxu0 0.0
  %3059 = vmatpush1.msra.mxu0 0.0
  %3060 = vmatprep.subr.mxu0 0.0
  %3061 = vmatpush1.msra.mxu0 0.0
  %3062 = vmatprep.subr.mxu0 0.0
  %3063 = vmatpush1.msra.mxu0 0.0
  %3064 = vmatprep.subr.mxu0 0.0
  %3065 = vmatpush1.msra.mxu0 0.0
  %3066 = vmatprep.subr.mxu0 0.0
  %3067 = vmatpush1.msra.mxu0 0.0
  %3068 = vmatprep.subr.mxu0 0.0
  %3069 = vmatpush1.msra.mxu0 0.0
  %3070 = vmatprep.subr.mxu0 0.0
  %3071 = vmatpush1.msra.mxu0 0.0
  %3072 = vmatprep.subr.mxu0 0.0
  %3073 = vmatpush1.msra.mxu0 0.0
  %3074 = vmatprep.subr.mxu0 0.0
  %3075 = vmatpush1.msra.mxu0 0.0
  %3076 = vmatprep.subr.mxu0 0.0
  %3077 = vmatpush1.msra.mxu0 0.0
  %3078 = vmatprep.subr.mxu0 0.0
  %3079 = vmatpush1.msra.mxu0 0.0
  %3080 = vmatprep.subr.mxu0 0.0
  %3081 = vmatpush1.msra.mxu0 0.0
  %3082 = vmatprep.subr.mxu0 0.0
  %3083 = vmatpush1.msra.mxu0 0.0
  %3084 = vmatprep.subr.mxu0 0.0
  %3085 = vmatpush1.msra.mxu0 0.0
  %3086 = vmatprep.subr.mxu0 0.0
  %3087 = vmatpush1.msra.mxu0 0.0
  %3088 = vmatprep.subr.mxu0 0.0
  %3089 = vmatpush1.msra.mxu0 0.0
  %3090 = vmatprep.subr.mxu0 0.0
  %3091 = vmatpush1.msra.mxu0 0.0
  %3092 = vmatprep.subr.mxu0 0.0
  %3093 = vmatpush1.msra.mxu0 0.0
  %3094 = vmatprep.subr.mxu0 0.0
  %3095 = vmatpush1.msra.mxu0 0.0
  %3096 = vmatprep.mubr.f32.mxu0 0.0
  %3097 = vmatmul.mubr.f32.gmra.mrb[0].mxu0 %v3030
  %v3098 = vpop.f32.mrb[0].mxu0
  %v3099 = vadd.f32 0.0, %v3098
  %v3100 = vpop.f32.mrb[0].mxu0
  %3101 = vdwg.mxu0
  %v3102 = vadd.f32 %v3028, %v3099
  %v3103 = vlaneseq
  %v3104 = vshrl.u32 %v3103, 7
  %v3105 = vsub.s32 2, %v3104
  %v3106 = vrot.slane %v135, %v3105
  %v3107 = vadd.f32 %v3102, %v3106
  %vm3108 = vcmp.ge.f32.partialorder %v3107, 0.0
  %v3109 = vmul.f32 %v3107, 0.01
  %v3110 = vsel %vm3108, %v3107, %v3109
  %v3111 = vlaneseq
  %v3112 = vshrl.u32 %v3111, 7
  %v3113 = vsub.s32 3, %v3112
  %v3114 = vrot.slane %v135, %v3113
  %vm3115 = vcmask 261120
  %v3117 = vsel %vm3115, %v3110, 0
  %3119 = vmatprep.subr.mxu0 0.0
  %3120 = vmatpush1.msra.mxu0 %v127
  %3121 = vmatprep.subr.mxu0 0.0
  %3122 = vmatpush1.msra.mxu0 %v128
  %3123 = vmatprep.subr.mxu0 0.0
  %3124 = vmatpush1.msra.mxu0 %v129
  %3125 = vmatprep.subr.mxu0 0.0
  %3126 = vmatpush1.msra.mxu0 %v130
  %3127 = vmatprep.subr.mxu0 0.0
  %3128 = vmatpush1.msra.mxu0 0.0
  %3129 = vmatprep.subr.mxu0 0.0
  %3130 = vmatpush1.msra.mxu0 0.0
  %3131 = vmatprep.subr.mxu0 0.0
  %3132 = vmatpush1.msra.mxu0 0.0
  %3133 = vmatprep.subr.mxu0 0.0
  %3134 = vmatpush1.msra.mxu0 0.0
  %3135 = vmatprep.subr.mxu0 0.0
  %3136 = vmatpush1.msra.mxu0 0.0
  %3137 = vmatprep.subr.mxu0 0.0
  %3138 = vmatpush1.msra.mxu0 0.0
  %3139 = vmatprep.subr.mxu0 0.0
  %3140 = vmatpush1.msra.mxu0 0.0
  %3141 = vmatprep.subr.mxu0 0.0
  %3142 = vmatpush1.msra.mxu0 0.0
  %3143 = vmatprep.subr.mxu0 0.0
  %3144 = vmatpush1.msra.mxu0 0.0
  %3145 = vmatprep.subr.mxu0 0.0
  %3146 = vmatpush1.msra.mxu0 0.0
  %3147 = vmatprep.subr.mxu0 0.0
  %3148 = vmatpush1.msra.mxu0 0.0
  %3149 = vmatprep.subr.mxu0 0.0
  %3150 = vmatpush1.msra.mxu0 0.0
  %3151 = vmatprep.subr.mxu0 0.0
  %3152 = vmatpush1.msra.mxu0 0.0
  %3153 = vmatprep.subr.mxu0 0.0
  %3154 = vmatpush1.msra.mxu0 0.0
  %3155 = vmatprep.subr.mxu0 0.0
  %3156 = vmatpush1.msra.mxu0 0.0
  %3157 = vmatprep.subr.mxu0 0.0
  %3158 = vmatpush1.msra.mxu0 0.0
  %3159 = vmatprep.subr.mxu0 0.0
  %3160 = vmatpush1.msra.mxu0 0.0
  %3161 = vmatprep.subr.mxu0 0.0
  %3162 = vmatpush1.msra.mxu0 0.0
  %3163 = vmatprep.subr.mxu0 0.0
  %3164 = vmatpush1.msra.mxu0 0.0
  %3165 = vmatprep.subr.mxu0 0.0
  %3166 = vmatpush1.msra.mxu0 0.0
  %3167 = vmatprep.subr.mxu0 0.0
  %3168 = vmatpush1.msra.mxu0 0.0
  %3169 = vmatprep.subr.mxu0 0.0
  %3170 = vmatpush1.msra.mxu0 0.0
  %3171 = vmatprep.subr.mxu0 0.0
  %3172 = vmatpush1.msra.mxu0 0.0
  %3173 = vmatprep.subr.mxu0 0.0
  %3174 = vmatpush1.msra.mxu0 0.0
  %3175 = vmatprep.subr.mxu0 0.0
  %3176 = vmatpush1.msra.mxu0 0.0
  %3177 = vmatprep.subr.mxu0 0.0
  %3178 = vmatpush1.msra.mxu0 0.0
  %3179 = vmatprep.subr.mxu0 0.0
  %3180 = vmatpush1.msra.mxu0 0.0
  %3181 = vmatprep.subr.mxu0 0.0
  %3182 = vmatpush1.msra.mxu0 0.0
  %3183 = vmatprep.mubr.f32.mxu0 0.0
  %3184 = vmatmul.mubr.f32.gmra.mrb[0].mxu0 %v3117
  %v3185 = vpop.f32.mrb[0].mxu0
  %v3186 = vadd.f32 %v3114, %v3185
  %v3187 = vpop.f32.mrb[0].mxu0
  %3188 = vdwg.mxu0
  %vm3189 = vcmp.ge.f32.partialorder %v3186, 0.0
  %v3190 = vmul.f32 %v3186, 0.01
  %v3191 = vsel %vm3189, %v3186, %v3190
  %v3192 = vlaneseq
  %v3193 = vshrl.u32 %v3192, 7
  %v3194 = vsub.s32 4, %v3193
  %v3195 = vrot.slane %v135, %v3194
  %v3197 = vsel %vm3115, %v3191, 0
  %3199 = vmatprep.subr.mxu0 0.0
  %3200 = vmatpush1.msra.mxu0 %v131
  %3201 = vmatprep.subr.mxu0 0.0
  %3202 = vmatpush1.msra.mxu0 %v132
  %3203 = vmatprep.subr.mxu0 0.0
  %3204 = vmatpush1.msra.mxu0 %v133
  %3205 = vmatprep.subr.mxu0 0.0
  %3206 = vmatpush1.msra.mxu0 %v134
  %3207 = vmatprep.subr.mxu0 0.0
  %3208 = vmatpush1.msra.mxu0 0.0
  %3209 = vmatprep.subr.mxu0 0.0
  %3210 = vmatpush1.msra.mxu0 0.0
  %3211 = vmatprep.subr.mxu0 0.0
  %3212 = vmatpush1.msra.mxu0 0.0
  %3213 = vmatprep.subr.mxu0 0.0
  %3214 = vmatpush1.msra.mxu0 0.0
  %3215 = vmatprep.subr.mxu0 0.0
  %3216 = vmatpush1.msra.mxu0 0.0
  %3217 = vmatprep.subr.mxu0 0.0
  %3218 = vmatpush1.msra.mxu0 0.0
  %3219 = vmatprep.subr.mxu0 0.0
  %3220 = vmatpush1.msra.mxu0 0.0
  %3221 = vmatprep.subr.mxu0 0.0
  %3222 = vmatpush1.msra.mxu0 0.0
  %3223 = vmatprep.subr.mxu0 0.0
  %3224 = vmatpush1.msra.mxu0 0.0
  %3225 = vmatprep.subr.mxu0 0.0
  %3226 = vmatpush1.msra.mxu0 0.0
  %3227 = vmatprep.subr.mxu0 0.0
  %3228 = vmatpush1.msra.mxu0 0.0
  %3229 = vmatprep.subr.mxu0 0.0
  %3230 = vmatpush1.msra.mxu0 0.0
  %3231 = vmatprep.subr.mxu0 0.0
  %3232 = vmatpush1.msra.mxu0 0.0
  %3233 = vmatprep.subr.mxu0 0.0
  %3234 = vmatpush1.msra.mxu0 0.0
  %3235 = vmatprep.subr.mxu0 0.0
  %3236 = vmatpush1.msra.mxu0 0.0
  %3237 = vmatprep.subr.mxu0 0.0
  %3238 = vmatpush1.msra.mxu0 0.0
  %3239 = vmatprep.subr.mxu0 0.0
  %3240 = vmatpush1.msra.mxu0 0.0
  %3241 = vmatprep.subr.mxu0 0.0
  %3242 = vmatpush1.msra.mxu0 0.0
  %3243 = vmatprep.subr.mxu0 0.0
  %3244 = vmatpush1.msra.mxu0 0.0
  %3245 = vmatprep.subr.mxu0 0.0
  %3246 = vmatpush1.msra.mxu0 0.0
  %3247 = vmatprep.subr.mxu0 0.0
  %3248 = vmatpush1.msra.mxu0 0.0
  %3249 = vmatprep.subr.mxu0 0.0
  %3250 = vmatpush1.msra.mxu0 0.0
  %3251 = vmatprep.subr.mxu0 0.0
  %3252 = vmatpush1.msra.mxu0 0.0
  %3253 = vmatprep.subr.mxu0 0.0
  %3254 = vmatpush1.msra.mxu0 0.0
  %3255 = vmatprep.subr.mxu0 0.0
  %3256 = vmatpush1.msra.mxu0 0.0
  %3257 = vmatprep.subr.mxu0 0.0
  %3258 = vmatpush1.msra.mxu0 0.0
  %3259 = vmatprep.subr.mxu0 0.0
  %3260 = vmatpush1.msra.mxu0 0.0
  %3261 = vmatprep.subr.mxu0 0.0
  %3262 = vmatpush1.msra.mxu0 0.0
  %3263 = vmatprep.mubr.f32.mxu0 0.0
  %3264 = vmatmul.mubr.f32.gmra.mrb[0].mxu0 %v3197
  %v3265 = vpop.f32.mrb[0].mxu0
  %v3266 = vadd.f32 %v3195, %v3265
  %v3267 = vpop.f32.mrb[0].mxu0
  %3268 = vdwg.mxu0
  %v3269 = vlaneseq
  %v3270 = vand.u32 %v3269, 127
  %vm3271 = vcmp.lt.s32.totalorder %v3270, 8
  %v3272 = vtanh.pop %v3266
  %v3273 = vsel %vm3271, %v3272, %v3266
  %3274 = vst.msk [vmem:[%s3] sm:$0xff] %vm2438, %v3273
  // Predicated region
  $region14: #{encoder_forward.1} parent=0 // pred_check
    _
  $region15: #{encoder_forward.1} parent=0 // pred_check_branch
    %3276 = sbr.rel (0) target = $region17
  $region16: #{encoder_forward.1} parent=0 // pred_region
    _
  $region17: #{encoder_forward.1} parent=0 // pred_fallthru
    _
  // Predicated region
  $region18: #{encoder_forward.1} parent=0 // pred_check
    _
  $region19: #{encoder_forward.1} parent=0 // pred_check_branch
    %3278 = sbr.rel (0) target = $region21
  $region20: #{encoder_forward.1} parent=0 // pred_region
    _
  $region21: #{encoder_forward.1} parent=0 // pred_fallthru
    _

</llo_original>
